<compile_context>
chip_gen: v7x
topology: tpu7x:2x2x1
jax: 0.10.0
libtpu: 0.0.40
codegen_flags: <defaults>
</compile_context>

<pallas_src>
import functools

import jax
import jax.numpy as jnp
from jax.experimental import pallas as pl
from jax.experimental.pallas import tpu as pltpu


def _fused_resblock_kernel(x_ref, w1_ref, b1_ref, w2_ref, b2_ref, wb_ref,
                           bb_ref, m_ref, p_ref, o_ref, h1pad_ref,
                           *, Wp, p0, S):
    """One image: conv3x3 -> ReLU -> conv3x3 -> pool  (+)  pool -> conv1x1."""
    f32 = jnp.float32
    cout = w1_ref.shape[1]

    def conv3x3(load_slice, w_ref):
        acc = jnp.zeros((cout, S), f32)
        for k in range(9):                      # unrolled, static offsets
            dh, dw = divmod(k, 3)
            start = p0 + (dh - 1) * Wp + (dw - 1)
            acc = acc + jnp.dot(w_ref[k], load_slice(start),
                                preferred_element_type=f32)
        return acc

    # ---- conv1 + bias + ReLU (mask zeroes the horizontal-padding columns so
    # ---- conv2 reads correct zeros there) --------------------------------
    acc1 = conv3x3(lambda s: x_ref[0, :, s:s + S], w1_ref)
    h1 = jnp.maximum(acc1 + b1_ref[...], 0.0) * m_ref[...]

    # write h1 back into the padded-flat layout (zeros everywhere else)
    h1pad_ref[...] = jnp.zeros_like(h1pad_ref)
    h1pad_ref[:, p0:p0 + S] = h1

    # ---- conv2 (bias added after pooling: avgpool(y + b) == avgpool(y) + b)
    acc2 = conv3x3(lambda s: h1pad_ref[:, s:s + S], w2_ref)

    # ---- 2x2 average pool as a matmul with the pooling matrix P ----------
    pool = p_ref[...]                                        # (S, Ho*Wo)
    main = jnp.dot(acc2, pool, preferred_element_type=f32) + b2_ref[...]

    # ---- bypass branch: avgpool(x) then 1x1 conv --------------------------
    x_span = x_ref[0, :, p0:p0 + S].astype(f32)              # (Cin, S)
    pooled_x = jnp.dot(x_span, pool, preferred_element_type=f32)
    byp = jnp.dot(wb_ref[...], pooled_x, preferred_element_type=f32) + bb_ref[...]

    o_ref[0] = (main + byp).astype(o_ref.dtype)


@jax.jit
def first_resblock_forward(x, w1, b1, w2, b2, wb, bb):
    """x: (N, Cin, H, W); weights in PyTorch OIHW layout (already SN'd)."""
    N, Cin, H, W = x.shape
    Cout = w1.shape[0]
    Hp, Wp = H + 2, W + 2
    pad_flat = Hp * Wp
    p0 = Wp + 1                      # flat index of output pixel (0, 0)
    S = (H - 1) * Wp + W             # span covering all output pixels
    Ho, Wo = H // 2, W // 2
    HoWo = Ho * Wo
    f32 = jnp.float32

    # padded flat input layout (one cheap XLA pad+reshape in the wrapper)
    xp2d = jnp.pad(x, ((0, 0), (0, 0), (1, 1), (1, 1))).reshape(N, Cin, pad_flat)

    # weights reorganized: (kh*3+kw, Cout, Cin)
    w1r = jnp.transpose(w1, (2, 3, 0, 1)).reshape(9, Cout, Cin)
    w2r = jnp.transpose(w2, (2, 3, 0, 1)).reshape(9, Cout, Cout)
    wbr = wb.reshape(Cout, Cin)
    b1c = b1.reshape(Cout, 1).astype(f32)
    b2c = b2.reshape(Cout, 1).astype(f32)
    bbc = bb.reshape(Cout, 1).astype(f32)

    # interior mask over the span (1 where the flat position is a real pixel)
    q = p0 + jnp.arange(S)
    wcoord = q % Wp - 1
    hcoord = q // Wp - 1
    valid = (wcoord >= 0) & (wcoord < W)
    mask = valid.astype(f32).reshape(1, S)

    # pooling matrix: span position -> pooled output position, weight 0.25
    o_idx = (hcoord // 2) * Wo + (wcoord // 2)
    P = (valid[:, None] & (o_idx[:, None] == jnp.arange(HoWo)[None, :]))
    P = P.astype(f32) * 0.25

    flops_per_img = (2 * 9 * Cout * Cin * S + 2 * 9 * Cout * Cout * S
                     + 2 * Cout * S * HoWo + 2 * Cin * S * HoWo
                     + 2 * Cout * Cin * HoWo)
    bytes_accessed = 4 * (xp2d.size + w1r.size + w2r.size + wbr.size
                          + b1c.size + b2c.size + bbc.size + mask.size
                          + P.size + N * Cout * HoWo)

    out = pl.pallas_call(
        functools.partial(_fused_resblock_kernel, Wp=Wp, p0=p0, S=S),
        out_shape=jax.ShapeDtypeStruct((N, Cout, HoWo), x.dtype),
        grid_spec=pltpu.PrefetchScalarGridSpec(
            num_scalar_prefetch=0,
            grid=(N,),
            in_specs=[
                pl.BlockSpec((1, Cin, pad_flat), lambda n: (n, 0, 0)),
                pl.BlockSpec((9, Cout, Cin), lambda n: (0, 0, 0)),
                pl.BlockSpec((Cout, 1), lambda n: (0, 0)),
                pl.BlockSpec((9, Cout, Cout), lambda n: (0, 0, 0)),
                pl.BlockSpec((Cout, 1), lambda n: (0, 0)),
                pl.BlockSpec((Cout, Cin), lambda n: (0, 0)),
                pl.BlockSpec((Cout, 1), lambda n: (0, 0)),
                pl.BlockSpec((1, S), lambda n: (0, 0)),
                pl.BlockSpec((S, HoWo), lambda n: (0, 0)),
            ],
            out_specs=pl.BlockSpec((1, Cout, HoWo), lambda n: (n, 0, 0)),
            scratch_shapes=[pltpu.VMEM((Cout, pad_flat), f32)],
        ),
        compiler_params=pltpu.CompilerParams(
            dimension_semantics=("parallel",)),
        cost_estimate=pl.CostEstimate(
            flops=int(N * flops_per_img), transcendentals=0,
            bytes_accessed=int(bytes_accessed)),
    )(xp2d, w1r, b1c, w2r, b2c, wbr, bbc, mask, P)

    return out.reshape(N, Cout, Ho, Wo)


def spectral_normalize(w, key, n_iter=1, eps=1e-12):
    """Inference-time spectral norm: w / sigma_max(w), one power iteration."""
    w_mat = w.reshape(w.shape[0], -1).astype(jnp.float32)
    u = jax.random.normal(key, (w.shape[0],), dtype=jnp.float32)
    u = u / (jnp.linalg.norm(u) + eps)
    v = None
    for _ in range(n_iter):
        v = w_mat.T @ u
        v = v / (jnp.linalg.norm(v) + eps)
        u = w_mat @ v
        u = u / (jnp.linalg.norm(u) + eps)
    sigma = jnp.dot(u, w_mat @ v)
    return (w / sigma).astype(w.dtype)


def _ref_forward(x, w1, b1, w2, b2, wb, bb):
    """Pure-JAX reference mirroring the PyTorch forward."""
    dn = ('NCHW', 'OIHW', 'NCHW')

    def conv(a, w, pad):
        return jax.lax.conv_general_dilated(
            a, w, window_strides=(1, 1), padding=((pad, pad), (pad, pad)),
            dimension_numbers=dn)

    def avgpool2(a):
        n, c, h, w = a.shape
        return a.reshape(n, c, h // 2, 2, w // 2, 2).mean(axis=(3, 5))

    h = conv(x, w1, 1) + b1[None, :, None, None]
    h = jax.nn.relu(h)
    h = conv(h, w2, 1) + b2[None, :, None, None]
    h = avgpool2(h)
    bp = avgpool2(x)
    bp = conv(bp, wb, 0) + bb[None, :, None, None]
    return h + bp


if __name__ == "__main__":
    key = jax.random.PRNGKey(0)
    N, Cin, Cout, H, W = 2, 4, 8, 16, 16
    ks = jax.random.split(key, 10)
    x = jax.random.normal(ks[0], (N, Cin, H, W), dtype=jnp.float32)

    def xavier(k, shape, gain):
        fan_in = shape[1] * shape[2] * shape[3]
        fan_out = shape[0] * shape[2] * shape[3]
        a = gain * (6.0 / (fan_in + fan_out)) ** 0.5
        return jax.random.uniform(k, shape, jnp.float32, -a, a)

    w1 = xavier(ks[1], (Cout, Cin, 3, 3), 1.0)
    w2 = xavier(ks[2], (Cout, Cout, 3, 3), 1.0)
    wb = xavier(ks[3], (Cout, Cin, 1, 1), 2.0 ** 0.5)
    b1 = 0.1 * jax.random.normal(ks[4], (Cout,), jnp.float32)
    b2 = 0.1 * jax.random.normal(ks[5], (Cout,), jnp.float32)
    bb = 0.1 * jax.random.normal(ks[6], (Cout,), jnp.float32)

    # spectral normalization (weight preprocessing, shared by kernel & reference)
    w1n = spectral_normalize(w1, ks[7])
    w2n = spectral_normalize(w2, ks[8])
    wbn = spectral_normalize(wb, ks[9])

    y = jax.block_until_ready(
        first_resblock_forward(x, w1n, b1, w2n, b2, wbn, bb))
    y_ref = _ref_forward(x, w1n, b1, w2n, b2, wbn, bb)

    assert y.shape == (N, Cout, H // 2, W // 2)
    err = float(jnp.max(jnp.abs(y - y_ref)))
    assert jnp.allclose(y, y_ref, atol=1e-4, rtol=1e-4), f"max abs err {err}"
    print("KERNEL_OK")
</pallas_src>

<mosaic_0001>
module attributes {stable_mosaic.version = 11 : i64} {
  func.func @_fused_resblock_kernel(%arg0: i32, %arg1: memref<1x4x324xf32, #tpu.memory_space<vmem>>, %arg2: memref<9x8x4xf32, #tpu.memory_space<vmem>>, %arg3: memref<8x1xf32, #tpu.memory_space<vmem>>, %arg4: memref<9x8x8xf32, #tpu.memory_space<vmem>>, %arg5: memref<8x1xf32, #tpu.memory_space<vmem>>, %arg6: memref<8x4xf32, #tpu.memory_space<vmem>>, %arg7: memref<8x1xf32, #tpu.memory_space<vmem>>, %arg8: memref<1x286xf32, #tpu.memory_space<vmem>>, %arg9: memref<286x64xf32, #tpu.memory_space<vmem>>, %arg10: memref<1x8x64xf32, #tpu.memory_space<vmem>>, %arg11: memref<8x324xf32, #tpu.memory_space<vmem>>) attributes {dimension_semantics = [#tpu.dimension_semantics<parallel>], iteration_bounds = array<i64: 2>, scalar_prefetch = 0 : i64, scratch_operands = 1 : i64, tpu.core_type = #tpu.core_type<tc>, window_params = [{transform_indices = @transform_0, window_bounds = array<i64: 1, 4, 324>}, {pipeline_mode = #tpu.pipeline_mode<synchronous>, transform_indices = @transform_1, window_bounds = array<i64: 9, 8, 4>}, {pipeline_mode = #tpu.pipeline_mode<synchronous>, transform_indices = @transform_2, window_bounds = array<i64: 8, 1>}, {pipeline_mode = #tpu.pipeline_mode<synchronous>, transform_indices = @transform_3, window_bounds = array<i64: 9, 8, 8>}, {pipeline_mode = #tpu.pipeline_mode<synchronous>, transform_indices = @transform_4, window_bounds = array<i64: 8, 1>}, {pipeline_mode = #tpu.pipeline_mode<synchronous>, transform_indices = @transform_5, window_bounds = array<i64: 8, 4>}, {pipeline_mode = #tpu.pipeline_mode<synchronous>, transform_indices = @transform_6, window_bounds = array<i64: 8, 1>}, {pipeline_mode = #tpu.pipeline_mode<synchronous>, transform_indices = @transform_7, window_bounds = array<i64: 1, 286>}, {pipeline_mode = #tpu.pipeline_mode<synchronous>, transform_indices = @transform_8, window_bounds = array<i64: 286, 64>}, {transform_indices = @transform_9, window_bounds = array<i64: 1, 8, 64>}]} {
    %cst = arith.constant 0.000000e+00 : f32
    %0 = vector.broadcast %cst : f32 to vector<8x286xf32>
    %c0 = arith.constant 0 : index
    %c0_0 = arith.constant 0 : index
    %c0_1 = arith.constant 0 : index
    %1 = vector.load %arg2[%c0, %c0_0, %c0_1] : memref<9x8x4xf32, #tpu.memory_space<vmem>>, vector<1x8x4xf32>
    %2 = vector.shape_cast %1 : vector<1x8x4xf32> to vector<8x4xf32>
    %c0_2 = arith.constant 0 : index
    %c0_3 = arith.constant 0 : index
    %c0_4 = arith.constant 0 : index
    %3 = vector.load %arg1[%c0_2, %c0_3, %c0_4] : memref<1x4x324xf32, #tpu.memory_space<vmem>>, vector<1x4x286xf32>
    %4 = vector.shape_cast %3 : vector<1x4x286xf32> to vector<4x286xf32>
    %cst_5 = arith.constant dense<0.000000e+00> : vector<8x286xf32>
    %5 = tpu.matmul %2, %4, %cst_5 {dimension_numbers = #tpu.dot_dimension_numbers<[1], [0], [0], [1], [0, 0, 1, 1], [], []>} : vector<8x4xf32>, vector<4x286xf32>, vector<8x286xf32> -> vector<8x286xf32>
    %6 = arith.addf %0, %5 : vector<8x286xf32>
    %c1 = arith.constant 1 : index
    %c0_6 = arith.constant 0 : index
    %c0_7 = arith.constant 0 : index
    %7 = vector.load %arg2[%c1, %c0_6, %c0_7] : memref<9x8x4xf32, #tpu.memory_space<vmem>>, vector<1x8x4xf32>
    %8 = vector.shape_cast %7 : vector<1x8x4xf32> to vector<8x4xf32>
    %c0_8 = arith.constant 0 : index
    %c0_9 = arith.constant 0 : index
    %c1_10 = arith.constant 1 : index
    %9 = vector.load %arg1[%c0_8, %c0_9, %c1_10] : memref<1x4x324xf32, #tpu.memory_space<vmem>>, vector<1x4x286xf32>
    %10 = vector.shape_cast %9 : vector<1x4x286xf32> to vector<4x286xf32>
    %cst_11 = arith.constant dense<0.000000e+00> : vector<8x286xf32>
    %11 = tpu.matmul %8, %10, %cst_11 {dimension_numbers = #tpu.dot_dimension_numbers<[1], [0], [0], [1], [0, 0, 1, 1], [], []>} : vector<8x4xf32>, vector<4x286xf32>, vector<8x286xf32> -> vector<8x286xf32>
    %12 = arith.addf %6, %11 : vector<8x286xf32>
    %c2 = arith.constant 2 : index
    %c0_12 = arith.constant 0 : index
    %c0_13 = arith.constant 0 : index
    %13 = vector.load %arg2[%c2, %c0_12, %c0_13] : memref<9x8x4xf32, #tpu.memory_space<vmem>>, vector<1x8x4xf32>
    %14 = vector.shape_cast %13 : vector<1x8x4xf32> to vector<8x4xf32>
    %c0_14 = arith.constant 0 : index
    %c0_15 = arith.constant 0 : index
    %c2_16 = arith.constant 2 : index
    %15 = vector.load %arg1[%c0_14, %c0_15, %c2_16] : memref<1x4x324xf32, #tpu.memory_space<vmem>>, vector<1x4x286xf32>
    %16 = vector.shape_cast %15 : vector<1x4x286xf32> to vector<4x286xf32>
    %cst_17 = arith.constant dense<0.000000e+00> : vector<8x286xf32>
    %17 = tpu.matmul %14, %16, %cst_17 {dimension_numbers = #tpu.dot_dimension_numbers<[1], [0], [0], [1], [0, 0, 1, 1], [], []>} : vector<8x4xf32>, vector<4x286xf32>, vector<8x286xf32> -> vector<8x286xf32>
    %18 = arith.addf %12, %17 : vector<8x286xf32>
    %c3 = arith.constant 3 : index
    %c0_18 = arith.constant 0 : index
    %c0_19 = arith.constant 0 : index
    %19 = vector.load %arg2[%c3, %c0_18, %c0_19] : memref<9x8x4xf32, #tpu.memory_space<vmem>>, vector<1x8x4xf32>
    %20 = vector.shape_cast %19 : vector<1x8x4xf32> to vector<8x4xf32>
    %c0_20 = arith.constant 0 : index
    %c0_21 = arith.constant 0 : index
    %c18 = arith.constant 18 : index
    %21 = vector.load %arg1[%c0_20, %c0_21, %c18] : memref<1x4x324xf32, #tpu.memory_space<vmem>>, vector<1x4x286xf32>
    %22 = vector.shape_cast %21 : vector<1x4x286xf32> to vector<4x286xf32>
    %cst_22 = arith.constant dense<0.000000e+00> : vector<8x286xf32>
    %23 = tpu.matmul %20, %22, %cst_22 {dimension_numbers = #tpu.dot_dimension_numbers<[1], [0], [0], [1], [0, 0, 1, 1], [], []>} : vector<8x4xf32>, vector<4x286xf32>, vector<8x286xf32> -> vector<8x286xf32>
    %24 = arith.addf %18, %23 : vector<8x286xf32>
    %c4 = arith.constant 4 : index
    %c0_23 = arith.constant 0 : index
    %c0_24 = arith.constant 0 : index
    %25 = vector.load %arg2[%c4, %c0_23, %c0_24] : memref<9x8x4xf32, #tpu.memory_space<vmem>>, vector<1x8x4xf32>
    %26 = vector.shape_cast %25 : vector<1x8x4xf32> to vector<8x4xf32>
    %c0_25 = arith.constant 0 : index
    %c0_26 = arith.constant 0 : index
    %c19 = arith.constant 19 : index
    %27 = vector.load %arg1[%c0_25, %c0_26, %c19] : memref<1x4x324xf32, #tpu.memory_space<vmem>>, vector<1x4x286xf32>
    %28 = vector.shape_cast %27 : vector<1x4x286xf32> to vector<4x286xf32>
    %cst_27 = arith.constant dense<0.000000e+00> : vector<8x286xf32>
    %29 = tpu.matmul %26, %28, %cst_27 {dimension_numbers = #tpu.dot_dimension_numbers<[1], [0], [0], [1], [0, 0, 1, 1], [], []>} : vector<8x4xf32>, vector<4x286xf32>, vector<8x286xf32> -> vector<8x286xf32>
    %30 = arith.addf %24, %29 : vector<8x286xf32>
    %c5 = arith.constant 5 : index
    %c0_28 = arith.constant 0 : index
    %c0_29 = arith.constant 0 : index
    %31 = vector.load %arg2[%c5, %c0_28, %c0_29] : memref<9x8x4xf32, #tpu.memory_space<vmem>>, vector<1x8x4xf32>
    %32 = vector.shape_cast %31 : vector<1x8x4xf32> to vector<8x4xf32>
    %c0_30 = arith.constant 0 : index
    %c0_31 = arith.constant 0 : index
    %c20 = arith.constant 20 : index
    %33 = vector.load %arg1[%c0_30, %c0_31, %c20] : memref<1x4x324xf32, #tpu.memory_space<vmem>>, vector<1x4x286xf32>
    %34 = vector.shape_cast %33 : vector<1x4x286xf32> to vector<4x286xf32>
    %cst_32 = arith.constant dense<0.000000e+00> : vector<8x286xf32>
    %35 = tpu.matmul %32, %34, %cst_32 {dimension_numbers = #tpu.dot_dimension_numbers<[1], [0], [0], [1], [0, 0, 1, 1], [], []>} : vector<8x4xf32>, vector<4x286xf32>, vector<8x286xf32> -> vector<8x286xf32>
    %36 = arith.addf %30, %35 : vector<8x286xf32>
    %c6 = arith.constant 6 : index
    %c0_33 = arith.constant 0 : index
    %c0_34 = arith.constant 0 : index
    %37 = vector.load %arg2[%c6, %c0_33, %c0_34] : memref<9x8x4xf32, #tpu.memory_space<vmem>>, vector<1x8x4xf32>
    %38 = vector.shape_cast %37 : vector<1x8x4xf32> to vector<8x4xf32>
    %c0_35 = arith.constant 0 : index
    %c0_36 = arith.constant 0 : index
    %c36 = arith.constant 36 : index
    %39 = vector.load %arg1[%c0_35, %c0_36, %c36] : memref<1x4x324xf32, #tpu.memory_space<vmem>>, vector<1x4x286xf32>
    %40 = vector.shape_cast %39 : vector<1x4x286xf32> to vector<4x286xf32>
    %cst_37 = arith.constant dense<0.000000e+00> : vector<8x286xf32>
    %41 = tpu.matmul %38, %40, %cst_37 {dimension_numbers = #tpu.dot_dimension_numbers<[1], [0], [0], [1], [0, 0, 1, 1], [], []>} : vector<8x4xf32>, vector<4x286xf32>, vector<8x286xf32> -> vector<8x286xf32>
    %42 = arith.addf %36, %41 : vector<8x286xf32>
    %c7 = arith.constant 7 : index
    %c0_38 = arith.constant 0 : index
    %c0_39 = arith.constant 0 : index
    %43 = vector.load %arg2[%c7, %c0_38, %c0_39] : memref<9x8x4xf32, #tpu.memory_space<vmem>>, vector<1x8x4xf32>
    %44 = vector.shape_cast %43 : vector<1x8x4xf32> to vector<8x4xf32>
    %c0_40 = arith.constant 0 : index
    %c0_41 = arith.constant 0 : index
    %c37 = arith.constant 37 : index
    %45 = vector.load %arg1[%c0_40, %c0_41, %c37] : memref<1x4x324xf32, #tpu.memory_space<vmem>>, vector<1x4x286xf32>
    %46 = vector.shape_cast %45 : vector<1x4x286xf32> to vector<4x286xf32>
    %cst_42 = arith.constant dense<0.000000e+00> : vector<8x286xf32>
    %47 = tpu.matmul %44, %46, %cst_42 {dimension_numbers = #tpu.dot_dimension_numbers<[1], [0], [0], [1], [0, 0, 1, 1], [], []>} : vector<8x4xf32>, vector<4x286xf32>, vector<8x286xf32> -> vector<8x286xf32>
    %48 = arith.addf %42, %47 : vector<8x286xf32>
    %c8 = arith.constant 8 : index
    %c0_43 = arith.constant 0 : index
    %c0_44 = arith.constant 0 : index
    %49 = vector.load %arg2[%c8, %c0_43, %c0_44] : memref<9x8x4xf32, #tpu.memory_space<vmem>>, vector<1x8x4xf32>
    %50 = vector.shape_cast %49 : vector<1x8x4xf32> to vector<8x4xf32>
    %c0_45 = arith.constant 0 : index
    %c0_46 = arith.constant 0 : index
    %c38 = arith.constant 38 : index
    %51 = vector.load %arg1[%c0_45, %c0_46, %c38] : memref<1x4x324xf32, #tpu.memory_space<vmem>>, vector<1x4x286xf32>
    %52 = vector.shape_cast %51 : vector<1x4x286xf32> to vector<4x286xf32>
    %cst_47 = arith.constant dense<0.000000e+00> : vector<8x286xf32>
    %53 = tpu.matmul %50, %52, %cst_47 {dimension_numbers = #tpu.dot_dimension_numbers<[1], [0], [0], [1], [0, 0, 1, 1], [], []>} : vector<8x4xf32>, vector<4x286xf32>, vector<8x286xf32> -> vector<8x286xf32>
    %54 = arith.addf %48, %53 : vector<8x286xf32>
    %c0_48 = arith.constant 0 : index
    %c0_49 = arith.constant 0 : index
    %55 = vector.load %arg3[%c0_48, %c0_49] : memref<8x1xf32, #tpu.memory_space<vmem>>, vector<8x1xf32>
    %56 = vector.broadcast %55 : vector<8x1xf32> to vector<8x286xf32>
    %57 = arith.addf %54, %56 : vector<8x286xf32>
    %cst_50 = arith.constant 0.000000e+00 : f32
    %58 = vector.broadcast %cst_50 : f32 to vector<8x286xf32>
    %59 = arith.maximumf %57, %58 : vector<8x286xf32>
    %c0_51 = arith.constant 0 : index
    %c0_52 = arith.constant 0 : index
    %60 = vector.load %arg8[%c0_51, %c0_52] : memref<1x286xf32, #tpu.memory_space<vmem>>, vector<1x286xf32>
    %61 = vector.broadcast %60 : vector<1x286xf32> to vector<8x286xf32>
    %62 = arith.mulf %59, %61 : vector<8x286xf32>
    %cst_53 = arith.constant 0.000000e+00 : f32
    %63 = vector.broadcast %cst_53 : f32 to vector<8x324xf32>
    %c0_54 = arith.constant 0 : index
    %c0_55 = arith.constant 0 : index
    %64 = vector.load %arg11[%c0_54, %c0_55] : memref<8x324xf32, #tpu.memory_space<vmem>>, vector<8x324xf32>
    tpu.vector_store %arg11[%c0_54, %c0_55], %63 {strides = array<i32>} : memref<8x324xf32, #tpu.memory_space<vmem>>, vector<8x324xf32>,
    %c0_56 = arith.constant 0 : index
    %c19_57 = arith.constant 19 : index
    %65 = vector.load %arg11[%c0_56, %c19_57] : memref<8x324xf32, #tpu.memory_space<vmem>>, vector<8x286xf32>
    tpu.vector_store %arg11[%c0_56, %c19_57], %62 {strides = array<i32>} : memref<8x324xf32, #tpu.memory_space<vmem>>, vector<8x286xf32>,
    %cst_58 = arith.constant 0.000000e+00 : f32
    %66 = vector.broadcast %cst_58 : f32 to vector<8x286xf32>
    %c0_59 = arith.constant 0 : index
    %c0_60 = arith.constant 0 : index
    %c0_61 = arith.constant 0 : index
    %67 = vector.load %arg4[%c0_59, %c0_60, %c0_61] : memref<9x8x8xf32, #tpu.memory_space<vmem>>, vector<1x8x8xf32>
    %68 = vector.shape_cast %67 : vector<1x8x8xf32> to vector<8x8xf32>
    %c0_62 = arith.constant 0 : index
    %c0_63 = arith.constant 0 : index
    %69 = vector.load %arg11[%c0_62, %c0_63] : memref<8x324xf32, #tpu.memory_space<vmem>>, vector<8x286xf32>
    %cst_64 = arith.constant dense<0.000000e+00> : vector<8x286xf32>
    %70 = tpu.matmul %68, %69, %cst_64 {dimension_numbers = #tpu.dot_dimension_numbers<[1], [0], [0], [1], [0, 0, 1, 1], [], []>} : vector<8x8xf32>, vector<8x286xf32>, vector<8x286xf32> -> vector<8x286xf32>
    %71 = arith.addf %66, %70 : vector<8x286xf32>
    %c1_65 = arith.constant 1 : index
    %c0_66 = arith.constant 0 : index
    %c0_67 = arith.constant 0 : index
    %72 = vector.load %arg4[%c1_65, %c0_66, %c0_67] : memref<9x8x8xf32, #tpu.memory_space<vmem>>, vector<1x8x8xf32>
    %73 = vector.shape_cast %72 : vector<1x8x8xf32> to vector<8x8xf32>
    %c0_68 = arith.constant 0 : index
    %c1_69 = arith.constant 1 : index
    %74 = vector.load %arg11[%c0_68, %c1_69] : memref<8x324xf32, #tpu.memory_space<vmem>>, vector<8x286xf32>
    %cst_70 = arith.constant dense<0.000000e+00> : vector<8x286xf32>
    %75 = tpu.matmul %73, %74, %cst_70 {dimension_numbers = #tpu.dot_dimension_numbers<[1], [0], [0], [1], [0, 0, 1, 1], [], []>} : vector<8x8xf32>, vector<8x286xf32>, vector<8x286xf32> -> vector<8x286xf32>
    %76 = arith.addf %71, %75 : vector<8x286xf32>
    %c2_71 = arith.constant 2 : index
    %c0_72 = arith.constant 0 : index
    %c0_73 = arith.constant 0 : index
    %77 = vector.load %arg4[%c2_71, %c0_72, %c0_73] : memref<9x8x8xf32, #tpu.memory_space<vmem>>, vector<1x8x8xf32>
    %78 = vector.shape_cast %77 : vector<1x8x8xf32> to vector<8x8xf32>
    %c0_74 = arith.constant 0 : index
    %c2_75 = arith.constant 2 : index
    %79 = vector.load %arg11[%c0_74, %c2_75] : memref<8x324xf32, #tpu.memory_space<vmem>>, vector<8x286xf32>
    %cst_76 = arith.constant dense<0.000000e+00> : vector<8x286xf32>
    %80 = tpu.matmul %78, %79, %cst_76 {dimension_numbers = #tpu.dot_dimension_numbers<[1], [0], [0], [1], [0, 0, 1, 1], [], []>} : vector<8x8xf32>, vector<8x286xf32>, vector<8x286xf32> -> vector<8x286xf32>
    %81 = arith.addf %76, %80 : vector<8x286xf32>
    %c3_77 = arith.constant 3 : index
    %c0_78 = arith.constant 0 : index
    %c0_79 = arith.constant 0 : index
    %82 = vector.load %arg4[%c3_77, %c0_78, %c0_79] : memref<9x8x8xf32, #tpu.memory_space<vmem>>, vector<1x8x8xf32>
    %83 = vector.shape_cast %82 : vector<1x8x8xf32> to vector<8x8xf32>
    %c0_80 = arith.constant 0 : index
    %c18_81 = arith.constant 18 : index
    %84 = vector.load %arg11[%c0_80, %c18_81] : memref<8x324xf32, #tpu.memory_space<vmem>>, vector<8x286xf32>
    %cst_82 = arith.constant dense<0.000000e+00> : vector<8x286xf32>
    %85 = tpu.matmul %83, %84, %cst_82 {dimension_numbers = #tpu.dot_dimension_numbers<[1], [0], [0], [1], [0, 0, 1, 1], [], []>} : vector<8x8xf32>, vector<8x286xf32>, vector<8x286xf32> -> vector<8x286xf32>
    %86 = arith.addf %81, %85 : vector<8x286xf32>
    %c4_83 = arith.constant 4 : index
    %c0_84 = arith.constant 0 : index
    %c0_85 = arith.constant 0 : index
    %87 = vector.load %arg4[%c4_83, %c0_84, %c0_85] : memref<9x8x8xf32, #tpu.memory_space<vmem>>, vector<1x8x8xf32>
    %88 = vector.shape_cast %87 : vector<1x8x8xf32> to vector<8x8xf32>
    %c0_86 = arith.constant 0 : index
    %c19_87 = arith.constant 19 : index
    %89 = vector.load %arg11[%c0_86, %c19_87] : memref<8x324xf32, #tpu.memory_space<vmem>>, vector<8x286xf32>
    %cst_88 = arith.constant dense<0.000000e+00> : vector<8x286xf32>
    %90 = tpu.matmul %88, %89, %cst_88 {dimension_numbers = #tpu.dot_dimension_numbers<[1], [0], [0], [1], [0, 0, 1, 1], [], []>} : vector<8x8xf32>, vector<8x286xf32>, vector<8x286xf32> -> vector<8x286xf32>
    %91 = arith.addf %86, %90 : vector<8x286xf32>
    %c5_89 = arith.constant 5 : index
    %c0_90 = arith.constant 0 : index
    %c0_91 = arith.constant 0 : index
    %92 = vector.load %arg4[%c5_89, %c0_90, %c0_91] : memref<9x8x8xf32, #tpu.memory_space<vmem>>, vector<1x8x8xf32>
    %93 = vector.shape_cast %92 : vector<1x8x8xf32> to vector<8x8xf32>
    %c0_92 = arith.constant 0 : index
    %c20_93 = arith.constant 20 : index
    %94 = vector.load %arg11[%c0_92, %c20_93] : memref<8x324xf32, #tpu.memory_space<vmem>>, vector<8x286xf32>
    %cst_94 = arith.constant dense<0.000000e+00> : vector<8x286xf32>
    %95 = tpu.matmul %93, %94, %cst_94 {dimension_numbers = #tpu.dot_dimension_numbers<[1], [0], [0], [1], [0, 0, 1, 1], [], []>} : vector<8x8xf32>, vector<8x286xf32>, vector<8x286xf32> -> vector<8x286xf32>
    %96 = arith.addf %91, %95 : vector<8x286xf32>
    %c6_95 = arith.constant 6 : index
    %c0_96 = arith.constant 0 : index
    %c0_97 = arith.constant 0 : index
    %97 = vector.load %arg4[%c6_95, %c0_96, %c0_97] : memref<9x8x8xf32, #tpu.memory_space<vmem>>, vector<1x8x8xf32>
    %98 = vector.shape_cast %97 : vector<1x8x8xf32> to vector<8x8xf32>
    %c0_98 = arith.constant 0 : index
    %c36_99 = arith.constant 36 : index
    %99 = vector.load %arg11[%c0_98, %c36_99] : memref<8x324xf32, #tpu.memory_space<vmem>>, vector<8x286xf32>
    %cst_100 = arith.constant dense<0.000000e+00> : vector<8x286xf32>
    %100 = tpu.matmul %98, %99, %cst_100 {dimension_numbers = #tpu.dot_dimension_numbers<[1], [0], [0], [1], [0, 0, 1, 1], [], []>} : vector<8x8xf32>, vector<8x286xf32>, vector<8x286xf32> -> vector<8x286xf32>
    %101 = arith.addf %96, %100 : vector<8x286xf32>
    %c7_101 = arith.constant 7 : index
    %c0_102 = arith.constant 0 : index
    %c0_103 = arith.constant 0 : index
    %102 = vector.load %arg4[%c7_101, %c0_102, %c0_103] : memref<9x8x8xf32, #tpu.memory_space<vmem>>, vector<1x8x8xf32>
    %103 = vector.shape_cast %102 : vector<1x8x8xf32> to vector<8x8xf32>
    %c0_104 = arith.constant 0 : index
    %c37_105 = arith.constant 37 : index
    %104 = vector.load %arg11[%c0_104, %c37_105] : memref<8x324xf32, #tpu.memory_space<vmem>>, vector<8x286xf32>
    %cst_106 = arith.constant dense<0.000000e+00> : vector<8x286xf32>
    %105 = tpu.matmul %103, %104, %cst_106 {dimension_numbers = #tpu.dot_dimension_numbers<[1], [0], [0], [1], [0, 0, 1, 1], [], []>} : vector<8x8xf32>, vector<8x286xf32>, vector<8x286xf32> -> vector<8x286xf32>
    %106 = arith.addf %101, %105 : vector<8x286xf32>
    %c8_107 = arith.constant 8 : index
    %c0_108 = arith.constant 0 : index
    %c0_109 = arith.constant 0 : index
    %107 = vector.load %arg4[%c8_107, %c0_108, %c0_109] : memref<9x8x8xf32, #tpu.memory_space<vmem>>, vector<1x8x8xf32>
    %108 = vector.shape_cast %107 : vector<1x8x8xf32> to vector<8x8xf32>
    %c0_110 = arith.constant 0 : index
    %c38_111 = arith.constant 38 : index
    %109 = vector.load %arg11[%c0_110, %c38_111] : memref<8x324xf32, #tpu.memory_space<vmem>>, vector<8x286xf32>
    %cst_112 = arith.constant dense<0.000000e+00> : vector<8x286xf32>
    %110 = tpu.matmul %108, %109, %cst_112 {dimension_numbers = #tpu.dot_dimension_numbers<[1], [0], [0], [1], [0, 0, 1, 1], [], []>} : vector<8x8xf32>, vector<8x286xf32>, vector<8x286xf32> -> vector<8x286xf32>
    %111 = arith.addf %106, %110 : vector<8x286xf32>
    %c0_113 = arith.constant 0 : index
    %c0_114 = arith.constant 0 : index
    %112 = vector.load %arg9[%c0_113, %c0_114] : memref<286x64xf32, #tpu.memory_space<vmem>>, vector<286x64xf32>
    %cst_115 = arith.constant dense<0.000000e+00> : vector<8x64xf32>
    %113 = tpu.matmul %111, %112, %cst_115 {dimension_numbers = #tpu.dot_dimension_numbers<[1], [0], [0], [1], [0, 0, 1, 1], [], []>} : vector<8x286xf32>, vector<286x64xf32>, vector<8x64xf32> -> vector<8x64xf32>
    %c0_116 = arith.constant 0 : index
    %c0_117 = arith.constant 0 : index
    %114 = vector.load %arg5[%c0_116, %c0_117] : memref<8x1xf32, #tpu.memory_space<vmem>>, vector<8x1xf32>
    %115 = vector.broadcast %114 : vector<8x1xf32> to vector<8x64xf32>
    %116 = arith.addf %113, %115 : vector<8x64xf32>
    %c0_118 = arith.constant 0 : index
    %c0_119 = arith.constant 0 : index
    %c19_120 = arith.constant 19 : index
    %117 = vector.load %arg1[%c0_118, %c0_119, %c19_120] : memref<1x4x324xf32, #tpu.memory_space<vmem>>, vector<1x4x286xf32>
    %118 = vector.shape_cast %117 : vector<1x4x286xf32> to vector<4x286xf32>
    %cst_121 = arith.constant dense<0.000000e+00> : vector<4x64xf32>
    %119 = tpu.matmul %118, %112, %cst_121 {dimension_numbers = #tpu.dot_dimension_numbers<[1], [0], [0], [1], [0, 0, 1, 1], [], []>} : vector<4x286xf32>, vector<286x64xf32>, vector<4x64xf32> -> vector<4x64xf32>
    %c0_122 = arith.constant 0 : index
    %c0_123 = arith.constant 0 : index
    %120 = vector.load %arg6[%c0_122, %c0_123] : memref<8x4xf32, #tpu.memory_space<vmem>>, vector<8x4xf32>
    %cst_124 = arith.constant dense<0.000000e+00> : vector<8x64xf32>
    %121 = tpu.matmul %120, %119, %cst_124 {dimension_numbers = #tpu.dot_dimension_numbers<[1], [0], [0], [1], [0, 0, 1, 1], [], []>} : vector<8x4xf32>, vector<4x64xf32>, vector<8x64xf32> -> vector<8x64xf32>
    %c0_125 = arith.constant 0 : index
    %c0_126 = arith.constant 0 : index
    %122 = vector.load %arg7[%c0_125, %c0_126] : memref<8x1xf32, #tpu.memory_space<vmem>>, vector<8x1xf32>
    %123 = vector.broadcast %122 : vector<8x1xf32> to vector<8x64xf32>
    %124 = arith.addf %121, %123 : vector<8x64xf32>
    %125 = arith.addf %116, %124 : vector<8x64xf32>
    %c0_127 = arith.constant 0 : index
    %c0_128 = arith.constant 0 : index
    %c0_129 = arith.constant 0 : index
    %126 = vector.load %arg10[%c0_127, %c0_128, %c0_129] : memref<1x8x64xf32, #tpu.memory_space<vmem>>, vector<1x8x64xf32>
    %127 = vector.shape_cast %126 : vector<1x8x64xf32> to vector<8x64xf32>
    %128 = vector.shape_cast %125 : vector<8x64xf32> to vector<1x8x64xf32>
    tpu.vector_store %arg10[%c0_127, %c0_128, %c0_129], %128 {strides = array<i32>} : memref<1x8x64xf32, #tpu.memory_space<vmem>>, vector<1x8x64xf32>,
    return
  }
  func.func @transform_0(%arg0: i32) -> (i32, i32, i32) {
    %c0_i32 = arith.constant 0 : i32
    %c0_i32_0 = arith.constant 0 : i32
    %c0_i32_1 = arith.constant 0 : i32
    return %arg0, %c0_i32, %c0_i32_0 : i32, i32, i32
  }
  func.func @transform_1(%arg0: i32) -> (i32, i32, i32) {
    %c0_i32 = arith.constant 0 : i32
    %c0_i32_0 = arith.constant 0 : i32
    %c0_i32_1 = arith.constant 0 : i32
    %c0_i32_2 = arith.constant 0 : i32
    return %c0_i32, %c0_i32_0, %c0_i32_1 : i32, i32, i32
  }
  func.func @transform_2(%arg0: i32) -> (i32, i32) {
    %c0_i32 = arith.constant 0 : i32
    %c0_i32_0 = arith.constant 0 : i32
    %c0_i32_1 = arith.constant 0 : i32
    return %c0_i32, %c0_i32_0 : i32, i32
  }
  func.func @transform_3(%arg0: i32) -> (i32, i32, i32) {
    %c0_i32 = arith.constant 0 : i32
    %c0_i32_0 = arith.constant 0 : i32
    %c0_i32_1 = arith.constant 0 : i32
    %c0_i32_2 = arith.constant 0 : i32
    return %c0_i32, %c0_i32_0, %c0_i32_1 : i32, i32, i32
  }
  func.func @transform_4(%arg0: i32) -> (i32, i32) {
    %c0_i32 = arith.constant 0 : i32
    %c0_i32_0 = arith.constant 0 : i32
    %c0_i32_1 = arith.constant 0 : i32
    return %c0_i32, %c0_i32_0 : i32, i32
  }
  func.func @transform_5(%arg0: i32) -> (i32, i32) {
    %c0_i32 = arith.constant 0 : i32
    %c0_i32_0 = arith.constant 0 : i32
    %c0_i32_1 = arith.constant 0 : i32
    return %c0_i32, %c0_i32_0 : i32, i32
  }
  func.func @transform_6(%arg0: i32) -> (i32, i32) {
    %c0_i32 = arith.constant 0 : i32
    %c0_i32_0 = arith.constant 0 : i32
    %c0_i32_1 = arith.constant 0 : i32
    return %c0_i32, %c0_i32_0 : i32, i32
  }
  func.func @transform_7(%arg0: i32) -> (i32, i32) {
    %c0_i32 = arith.constant 0 : i32
    %c0_i32_0 = arith.constant 0 : i32
    %c0_i32_1 = arith.constant 0 : i32
    return %c0_i32, %c0_i32_0 : i32, i32
  }
  func.func @transform_8(%arg0: i32) -> (i32, i32) {
    %c0_i32 = arith.constant 0 : i32
    %c0_i32_0 = arith.constant 0 : i32
    %c0_i32_1 = arith.constant 0 : i32
    return %c0_i32, %c0_i32_0 : i32, i32
  }
  func.func @transform_9(%arg0: i32) -> (i32, i32, i32) {
    %c0_i32 = arith.constant 0 : i32
    %c0_i32_0 = arith.constant 0 : i32
    %c0_i32_1 = arith.constant 0 : i32
    return %arg0, %c0_i32, %c0_i32_0 : i32, i32, i32
  }
}

</mosaic_0001>

<llo_original>
// kernel: first_resblock_forward.1
$region0: #{first_resblock_forward.1}
  #allocation0 [shape = 'u32[]', space=smem, size = 0x4, offset = 0x4, fixed_abs, tag = 'smem constant byte address 0x4 - core index']
  #allocation1 [shape = 'u32[144,128]{1,0:T(1,128)}', space=vmem, size = 0x12000, scoped, tag = 'internal scratch']
  #allocation2 [shape = 'f32[8,324]{1,0:T(8,128)}', space=vmem, size = 0x3000, scoped, tag = 'scratch operand']
  %s0 = inlined_call_operand.vmem [shape: f32[2,4,324], index: 0, kind: input, shape index: {}]
  %s1 = inlined_call_operand.vmem [shape: f32[9,8,4], index: 1, kind: input, shape index: {}]
  %s2 = inlined_call_operand.vmem [shape: f32[8,1], index: 2, kind: input, shape index: {}]
  %s3 = inlined_call_operand.vmem [shape: f32[9,8,8], index: 3, kind: input, shape index: {}]
  %s4 = inlined_call_operand.vmem [shape: f32[8,1], index: 4, kind: input, shape index: {}]
  %s5 = inlined_call_operand.vmem [shape: f32[8,4], index: 5, kind: input, shape index: {}]
  %s6 = inlined_call_operand.vmem [shape: f32[8,1], index: 6, kind: input, shape index: {}]
  %s7 = inlined_call_operand.vmem [shape: f32[1,286], index: 7, kind: input, shape index: {}]
  %s8 = inlined_call_operand.vmem [shape: f32[286,64], index: 8, kind: input, shape index: {}]
  %s9 = inlined_call_operand.vmem [shape: f32[2,8,64], index: 9, kind: output, shape index: {}]
  %s10 = sld [smem:[#allocation0]]
  $region69: #{first_resblock_forward.1} parent=0
    _
  %s12 = ssub.s32 1, %s10
  %s13 = scalar_select 0, %s12, %s10
  loop: start=0, step=1, limit=4
  $region2: #{first_resblock_forward.1} parent=0 // loop_pre_header
    _
  $region3: #{first_resblock_forward.1} parent=0 // loop_header
    %s15 = sphi 0, %s19
    %p16 = scmp.ge.s32.totalorder %s15, 4
    %s25 = sphi 0, %s27
    %s28 = sphi 0, %s25
    %s29 = sphi 0, %s28
    %s45 = sphi 0, %s29
    %s49 = sphi 0, %s49
    %s51 = sphi 0, %s49
    %s52 = sphi 0, %s51
    %s66 = sphi 0, %s52
    %s70 = sphi 0, %s70
    %s72 = sphi 0, %s70
    %s73 = sphi 0, %s72
    %s87 = sphi 0, %s73
    %s91 = sphi 0, %s91
    %s93 = sphi 0, %s91
    %s94 = sphi 0, %s93
    %s108 = sphi 0, %s94
    %s112 = sphi 0, %s112
    %s114 = sphi 0, %s112
    %s115 = sphi 0, %s114
    %s129 = sphi 0, %s115
    %s133 = sphi 0, %s133
    %s135 = sphi 0, %s133
    %s136 = sphi 0, %s135
    %s150 = sphi 0, %s136
    %s154 = sphi 0, %s154
    %s156 = sphi 0, %s154
    %s157 = sphi 0, %s156
    %s171 = sphi 0, %s157
    %s175 = sphi 0, %s175
    %s177 = sphi 0, %s175
    %s178 = sphi 0, %s177
    %s192 = sphi 0, %s178
    %s196 = sphi 0, %s196
    %s198 = sphi 0, %s196
    %s199 = sphi 0, %s198
    %s213 = sphi 0, %s199
    %s219 = sphi 0, %s221
    %s222 = sphi 0, %s219
    %s223 = sphi 0, %s222
    %s239 = sphi 0, %s223
  $region4: #{first_resblock_forward.1} parent=0 // loop_header_branch
    %18 = sbr.rel (%p16) target = $region8
  $region5: #{first_resblock_forward.1} parent=0 // loop_body
    %s20 = ssub.s32 %s15, 1
    %s21 = ssub.s32 %s15, 2
    %s22 = sadd.s32 %s15, 1
    %s23 = ssub.s32 %s15, %s22
    %p24 = scmp.eq.s32.totalorder %s23, 0
    %s26 = sadd.s32 %s25, 1
    %s27 = scalar_select %p24, %s25, %s26
    %p30 = pneg %p24
    %p31 = scmp.eq.s32.totalorder %s15, 1
    %p32 = por %p30, %p31
    %p33 = scmp.ne.s32.totalorder %s25, %s28
    %p34 = scmp.eq.s32.totalorder %s15, 0
    %p35 = por %p33, %p34
    %p36 = scmp.ne.s32.totalorder %s25, %s28
    %p37 = scmp.eq.s32.totalorder %s20, 1
    %p38 = por %p36, %p37
    %p39 = scmp.ne.s32.totalorder %s28, %s29
    %p40 = scmp.eq.s32.totalorder %s20, 0
    %p41 = por %p39, %p40
    %p42 = scmp.ne.s32.totalorder %s28, %s29
    %p43 = scmp.eq.s32.totalorder %s21, 1
    %p44 = por %p42, %p43
    %p46 = scmp.ne.s32.totalorder %s29, %s45
    %p47 = scmp.eq.s32.totalorder %s21, 0
    %p48 = por %p46, %p47
    %s50 = sadd.s32 %s49, 1
    %p53 = scmp.eq.s32.totalorder %s15, 1
    %p54 = scmp.ne.s32.totalorder %s49, %s51
    %p55 = scmp.eq.s32.totalorder %s15, 0
    %p56 = por %p54, %p55
    %p57 = scmp.ne.s32.totalorder %s49, %s51
    %p58 = scmp.eq.s32.totalorder %s20, 1
    %p59 = por %p57, %p58
    %p60 = scmp.ne.s32.totalorder %s51, %s52
    %p61 = scmp.eq.s32.totalorder %s20, 0
    %p62 = por %p60, %p61
    %p63 = scmp.ne.s32.totalorder %s51, %s52
    %p64 = scmp.eq.s32.totalorder %s21, 1
    %p65 = por %p63, %p64
    %p67 = scmp.ne.s32.totalorder %s52, %s66
    %p68 = scmp.eq.s32.totalorder %s21, 0
    %p69 = por %p67, %p68
    %s71 = sadd.s32 %s70, 1
    %p74 = scmp.eq.s32.totalorder %s15, 1
    %p75 = scmp.ne.s32.totalorder %s70, %s72
    %p76 = scmp.eq.s32.totalorder %s15, 0
    %p77 = por %p75, %p76
    %p78 = scmp.ne.s32.totalorder %s70, %s72
    %p79 = scmp.eq.s32.totalorder %s20, 1
    %p80 = por %p78, %p79
    %p81 = scmp.ne.s32.totalorder %s72, %s73
    %p82 = scmp.eq.s32.totalorder %s20, 0
    %p83 = por %p81, %p82
    %p84 = scmp.ne.s32.totalorder %s72, %s73
    %p85 = scmp.eq.s32.totalorder %s21, 1
    %p86 = por %p84, %p85
    %p88 = scmp.ne.s32.totalorder %s73, %s87
    %p89 = scmp.eq.s32.totalorder %s21, 0
    %p90 = por %p88, %p89
    %s92 = sadd.s32 %s91, 1
    %p95 = scmp.eq.s32.totalorder %s15, 1
    %p96 = scmp.ne.s32.totalorder %s91, %s93
    %p97 = scmp.eq.s32.totalorder %s15, 0
    %p98 = por %p96, %p97
    %p99 = scmp.ne.s32.totalorder %s91, %s93
    %p100 = scmp.eq.s32.totalorder %s20, 1
    %p101 = por %p99, %p100
    %p102 = scmp.ne.s32.totalorder %s93, %s94
    %p103 = scmp.eq.s32.totalorder %s20, 0
    %p104 = por %p102, %p103
    %p105 = scmp.ne.s32.totalorder %s93, %s94
    %p106 = scmp.eq.s32.totalorder %s21, 1
    %p107 = por %p105, %p106
    %p109 = scmp.ne.s32.totalorder %s94, %s108
    %p110 = scmp.eq.s32.totalorder %s21, 0
    %p111 = por %p109, %p110
    %s113 = sadd.s32 %s112, 1
    %p116 = scmp.eq.s32.totalorder %s15, 1
    %p117 = scmp.ne.s32.totalorder %s112, %s114
    %p118 = scmp.eq.s32.totalorder %s15, 0
    %p119 = por %p117, %p118
    %p120 = scmp.ne.s32.totalorder %s112, %s114
    %p121 = scmp.eq.s32.totalorder %s20, 1
    %p122 = por %p120, %p121
    %p123 = scmp.ne.s32.totalorder %s114, %s115
    %p124 = scmp.eq.s32.totalorder %s20, 0
    %p125 = por %p123, %p124
    %p126 = scmp.ne.s32.totalorder %s114, %s115
    %p127 = scmp.eq.s32.totalorder %s21, 1
    %p128 = por %p126, %p127
    %p130 = scmp.ne.s32.totalorder %s115, %s129
    %p131 = scmp.eq.s32.totalorder %s21, 0
    %p132 = por %p130, %p131
    %s134 = sadd.s32 %s133, 1
    %p137 = scmp.eq.s32.totalorder %s15, 1
    %p138 = scmp.ne.s32.totalorder %s133, %s135
    %p139 = scmp.eq.s32.totalorder %s15, 0
    %p140 = por %p138, %p139
    %p141 = scmp.ne.s32.totalorder %s133, %s135
    %p142 = scmp.eq.s32.totalorder %s20, 1
    %p143 = por %p141, %p142
    %p144 = scmp.ne.s32.totalorder %s135, %s136
    %p145 = scmp.eq.s32.totalorder %s20, 0
    %p146 = por %p144, %p145
    %p147 = scmp.ne.s32.totalorder %s135, %s136
    %p148 = scmp.eq.s32.totalorder %s21, 1
    %p149 = por %p147, %p148
    %p151 = scmp.ne.s32.totalorder %s136, %s150
    %p152 = scmp.eq.s32.totalorder %s21, 0
    %p153 = por %p151, %p152
    %s155 = sadd.s32 %s154, 1
    %p158 = scmp.eq.s32.totalorder %s15, 1
    %p159 = scmp.ne.s32.totalorder %s154, %s156
    %p160 = scmp.eq.s32.totalorder %s15, 0
    %p161 = por %p159, %p160
    %p162 = scmp.ne.s32.totalorder %s154, %s156
    %p163 = scmp.eq.s32.totalorder %s20, 1
    %p164 = por %p162, %p163
    %p165 = scmp.ne.s32.totalorder %s156, %s157
    %p166 = scmp.eq.s32.totalorder %s20, 0
    %p167 = por %p165, %p166
    %p168 = scmp.ne.s32.totalorder %s156, %s157
    %p169 = scmp.eq.s32.totalorder %s21, 1
    %p170 = por %p168, %p169
    %p172 = scmp.ne.s32.totalorder %s157, %s171
    %p173 = scmp.eq.s32.totalorder %s21, 0
    %p174 = por %p172, %p173
    %s176 = sadd.s32 %s175, 1
    %p179 = scmp.eq.s32.totalorder %s15, 1
    %p180 = scmp.ne.s32.totalorder %s175, %s177
    %p181 = scmp.eq.s32.totalorder %s15, 0
    %p182 = por %p180, %p181
    %p183 = scmp.ne.s32.totalorder %s175, %s177
    %p184 = scmp.eq.s32.totalorder %s20, 1
    %p185 = por %p183, %p184
    %p186 = scmp.ne.s32.totalorder %s177, %s178
    %p187 = scmp.eq.s32.totalorder %s20, 0
    %p188 = por %p186, %p187
    %p189 = scmp.ne.s32.totalorder %s177, %s178
    %p190 = scmp.eq.s32.totalorder %s21, 1
    %p191 = por %p189, %p190
    %p193 = scmp.ne.s32.totalorder %s178, %s192
    %p194 = scmp.eq.s32.totalorder %s21, 0
    %p195 = por %p193, %p194
    %s197 = sadd.s32 %s196, 1
    %p200 = scmp.eq.s32.totalorder %s15, 1
    %p201 = scmp.ne.s32.totalorder %s196, %s198
    %p202 = scmp.eq.s32.totalorder %s15, 0
    %p203 = por %p201, %p202
    %p204 = scmp.ne.s32.totalorder %s196, %s198
    %p205 = scmp.eq.s32.totalorder %s20, 1
    %p206 = por %p204, %p205
    %p207 = scmp.ne.s32.totalorder %s198, %s199
    %p208 = scmp.eq.s32.totalorder %s20, 0
    %p209 = por %p207, %p208
    %p210 = scmp.ne.s32.totalorder %s198, %s199
    %p211 = scmp.eq.s32.totalorder %s21, 1
    %p212 = por %p210, %p211
    %p214 = scmp.ne.s32.totalorder %s199, %s213
    %p215 = scmp.eq.s32.totalorder %s21, 0
    %p216 = por %p214, %p215
    %s217 = ssub.s32 %s15, %s22
    %p218 = scmp.eq.s32.totalorder %s217, 0
    %s220 = sadd.s32 %s219, 1
    %s221 = scalar_select %p218, %s219, %s220
    %p224 = pneg %p218
    %p225 = scmp.eq.s32.totalorder %s15, 1
    %p226 = por %p224, %p225
    %p227 = scmp.ne.s32.totalorder %s219, %s222
    %p228 = scmp.eq.s32.totalorder %s15, 0
    %p229 = por %p227, %p228
    %p230 = scmp.ne.s32.totalorder %s219, %s222
    %p231 = scmp.eq.s32.totalorder %s20, 1
    %p232 = por %p230, %p231
    %p233 = scmp.ne.s32.totalorder %s222, %s223
    %p234 = scmp.eq.s32.totalorder %s20, 0
    %p235 = por %p233, %p234
    %p236 = scmp.ne.s32.totalorder %s222, %s223
    %p237 = scmp.eq.s32.totalorder %s21, 1
    %p238 = por %p236, %p237
    %p240 = scmp.ne.s32.totalorder %s223, %s239
    %p241 = scmp.eq.s32.totalorder %s21, 0
    %p242 = por %p240, %p241
    %p243 = scmp.le.s32.totalorder 1, %s15
    %p244 = scmp.lt.s32.totalorder %s15, 3
    %p245 = pnand %p243, %p244
    %p246 = pneg %p245
    // Predicated region
    $region9: #{first_resblock_forward.1} parent=5 // pred_check
      _
    $region10: #{first_resblock_forward.1} parent=5 // pred_check_branch
      %248 = sbr.rel (%p245) target = $region12
    $region11: #{first_resblock_forward.1} parent=5 // pred_region
      %s249 = ssub.s32 %s15, 1
      // Predicated region
      $region13: #{first_resblock_forward.1} parent=11 // pred_check
        %p250 = pneg %p62
      $region14: #{first_resblock_forward.1} parent=11 // pred_check_branch
        %252 = sbr.rel (%p250) target = $region16
      $region15: #{first_resblock_forward.1} parent=11 // pred_region
        _
      $region16: #{first_resblock_forward.1} parent=11 // pred_fallthru
        _
      // Predicated region
      $region17: #{first_resblock_forward.1} parent=11 // pred_check
        %p253 = pneg %p83
      $region18: #{first_resblock_forward.1} parent=11 // pred_check_branch
        %255 = sbr.rel (%p253) target = $region20
      $region19: #{first_resblock_forward.1} parent=11 // pred_region
        _
      $region20: #{first_resblock_forward.1} parent=11 // pred_fallthru
        _
      // Predicated region
      $region21: #{first_resblock_forward.1} parent=11 // pred_check
        %p256 = pneg %p104
      $region22: #{first_resblock_forward.1} parent=11 // pred_check_branch
        %258 = sbr.rel (%p256) target = $region24
      $region23: #{first_resblock_forward.1} parent=11 // pred_region
        _
      $region24: #{first_resblock_forward.1} parent=11 // pred_fallthru
        _
      // Predicated region
      $region25: #{first_resblock_forward.1} parent=11 // pred_check
        %p259 = pneg %p125
      $region26: #{first_resblock_forward.1} parent=11 // pred_check_branch
        %261 = sbr.rel (%p259) target = $region28
      $region27: #{first_resblock_forward.1} parent=11 // pred_region
        _
      $region28: #{first_resblock_forward.1} parent=11 // pred_fallthru
        _
      // Predicated region
      $region29: #{first_resblock_forward.1} parent=11 // pred_check
        %p262 = pneg %p146
      $region30: #{first_resblock_forward.1} parent=11 // pred_check_branch
        %264 = sbr.rel (%p262) target = $region32
      $region31: #{first_resblock_forward.1} parent=11 // pred_region
        _
      $region32: #{first_resblock_forward.1} parent=11 // pred_fallthru
        _
      // Predicated region
      $region33: #{first_resblock_forward.1} parent=11 // pred_check
        %p265 = pneg %p167
      $region34: #{first_resblock_forward.1} parent=11 // pred_check_branch
        %267 = sbr.rel (%p265) target = $region36
      $region35: #{first_resblock_forward.1} parent=11 // pred_region
        _
      $region36: #{first_resblock_forward.1} parent=11 // pred_fallthru
        _
      // Predicated region
      $region37: #{first_resblock_forward.1} parent=11 // pred_check
        %p268 = pneg %p188
      $region38: #{first_resblock_forward.1} parent=11 // pred_check_branch
        %270 = sbr.rel (%p268) target = $region40
      $region39: #{first_resblock_forward.1} parent=11 // pred_region
        _
      $region40: #{first_resblock_forward.1} parent=11 // pred_fallthru
        _
      // Predicated region
      $region41: #{first_resblock_forward.1} parent=11 // pred_check
        %p271 = pneg %p209
      $region42: #{first_resblock_forward.1} parent=11 // pred_check_branch
        %273 = sbr.rel (%p271) target = $region44
      $region43: #{first_resblock_forward.1} parent=11 // pred_region
        _
      $region44: #{first_resblock_forward.1} parent=11 // pred_fallthru
        _
    $region12: #{first_resblock_forward.1} parent=5 // pred_fallthru
      _
    %p274 = scmp.lt.s32.totalorder %s15, 2
    // Predicated region
    $region45: #{first_resblock_forward.1} parent=5 // pred_check
      %p275 = pneg %p274
    $region46: #{first_resblock_forward.1} parent=5 // pred_check_branch
      %277 = sbr.rel (%p275) target = $region48
    $region47: #{first_resblock_forward.1} parent=5 // pred_region
      // Predicated region
      $region49: #{first_resblock_forward.1} parent=47 // pred_check
        %p278 = pneg %p35
      $region50: #{first_resblock_forward.1} parent=47 // pred_check_branch
        %280 = sbr.rel (%p278) target = $region52
      $region51: #{first_resblock_forward.1} parent=47 // pred_region
        %p281 = scmp.lt.s32.totalorder %s15, 1
        %s282 = scalar_select %p281, %s15, 1
        %s283 = smul.addr %s282, 3
        %s284 = smul.addr %s283, 4
        %s285 = scalar_lea.vmem %s0, %s284
      $region52: #{first_resblock_forward.1} parent=47 // pred_fallthru
        _
    $region48: #{first_resblock_forward.1} parent=5 // pred_fallthru
      _
    %p286 = scmp.le.s32.totalorder 1, %s15
    %p287 = scmp.lt.s32.totalorder %s15, 3
    %p288 = pnand %p286, %p287
    %p289 = pneg %p288
    // Predicated region
    $region53: #{first_resblock_forward.1} parent=5 // pred_check
      _
    $region54: #{first_resblock_forward.1} parent=5 // pred_check_branch
      %291 = sbr.rel (%p288) target = $region56
    $region55: #{first_resblock_forward.1} parent=5 // pred_region
      %s292 = ssub.s32 %s15, 1
      %p293 = scmp.lt.s32.totalorder %s20, 1
      %s294 = scalar_select %p293, %s20, 1
      %s295 = smul.addr %s294, 3
      %s296 = smul.addr %s295, 4
      %s297 = scalar_lea.vmem %s0, %s296
      %p298 = pneg %p41
      %p299 = pneg %p38
      %p300 = pneg %p62
      %p301 = pneg %p59
      %p302 = pneg %p83
      %p303 = pneg %p80
      %p304 = pneg %p104
      %p305 = pneg %p101
      %p306 = pneg %p125
      %p307 = pneg %p122
      %p308 = pneg %p146
      %p309 = pneg %p143
      %p310 = pneg %p167
      %p311 = pneg %p164
      %p312 = pneg %p188
      %p313 = pneg %p185
      %p314 = pneg %p209
      %p315 = pneg %p206
      %p316 = pneg %p235
      %p317 = pneg %p232
      %p318 = scmp.lt.s32.totalorder %s20, 1
      %s319 = scalar_select %p318, %s20, 1
      %s320 = smul.addr %s319, 8
      %s321 = scalar_lea.vmem %s9, %s320
      %p322 = scmp.lt.s32.totalorder %s20, 1
      %s323 = scalar_select %p322, %s20, 1
      %s324 = smul.addr %s323, 3
      %s325 = smul.addr %s324, 4
      %s326 = scalar_lea.vmem %s0, %s325
      %p327 = scmp.lt.s32.totalorder %s20, 1
      %s328 = scalar_select %p327, %s20, 1
      %s329 = smul.addr %s328, 8
      %s330 = scalar_lea.vmem %s9, %s329
      %v331 = vld [vmem:[%s1] sm:$0xff]
      %v332 = vld [vmem:[%s326] sm:$0xff]
      %v333 = vld [vmem:[%s326 + $0x8] sm:$0xf]
      %s334 = scalar_lea.vmem %s1, 8
      %v335 = vld [vmem:[%s334] sm:$0xff]
      %v338 = vcombine.high %v332, %v332
      %339 = vrot.lane.b32.xlu0 %v332, 127
      %v340 = vpop.permute.xlu0 %339
      %341 = vrot.lane.b32.xlu0 %v338, 127
      %v342 = vpop.permute.xlu0 %341
      %343 = vrot.lane.b32.xlu0 %v333, 127
      %v344 = vpop.permute.xlu0 %343
      %vm345 = vcmask 1039360
      %v346 = vsel %vm345, %v340, %v342
      %v347 = vsel %vm345, %v342, %v344
      %vm348 = vcmask 31744
      %v350 = vsel %vm348, %v335, 0
      %vm352 = vcmask 1043456
      %v353 = vsel %vm352, %v346, 0
      %v355 = vsel %vm352, %v347, 0
      %v357 = vsel %vm352, %v344, 0
      %359 = vmatprep.subr.mxu0 %v355
      %360 = vmatpush1.msra.mxu0 %v353
      %361 = vmatprep.subr.mxu0 0.0
      %362 = vmatpush1.msra.mxu0 0.0
      %363 = vmatprep.subr.mxu0 0.0
      %364 = vmatpush1.msra.mxu0 0.0
      %365 = vmatprep.subr.mxu0 0.0
      %366 = vmatpush1.msra.mxu0 0.0
      %367 = vmatprep.subr.mxu0 0.0
      %368 = vmatpush1.msra.mxu0 0.0
      %369 = vmatprep.subr.mxu0 0.0
      %370 = vmatpush1.msra.mxu0 0.0
      %371 = vmatprep.subr.mxu0 0.0
      %372 = vmatpush1.msra.mxu0 0.0
      %373 = vmatprep.subr.mxu0 0.0
      %374 = vmatpush1.msra.mxu0 0.0
      %375 = vmatprep.subr.mxu0 0.0
      %376 = vmatpush1.msra.mxu0 0.0
      %377 = vmatprep.subr.mxu0 0.0
      %378 = vmatpush1.msra.mxu0 0.0
      %379 = vmatprep.subr.mxu0 0.0
      %380 = vmatpush1.msra.mxu0 0.0
      %381 = vmatprep.subr.mxu0 0.0
      %382 = vmatpush1.msra.mxu0 0.0
      %383 = vmatprep.subr.mxu0 0.0
      %384 = vmatpush1.msra.mxu0 0.0
      %385 = vmatprep.subr.mxu0 0.0
      %386 = vmatpush1.msra.mxu0 0.0
      %387 = vmatprep.subr.mxu0 0.0
      %388 = vmatpush1.msra.mxu0 0.0
      %389 = vmatprep.subr.mxu0 0.0
      %390 = vmatpush1.msra.mxu0 0.0
      %391 = vmatprep.subr.mxu0 0.0
      %392 = vmatpush1.msra.mxu0 0.0
      %393 = vmatprep.subr.mxu0 0.0
      %394 = vmatpush1.msra.mxu0 0.0
      %395 = vmatprep.subr.mxu0 0.0
      %396 = vmatpush1.msra.mxu0 0.0
      %397 = vmatprep.subr.mxu0 0.0
      %398 = vmatpush1.msra.mxu0 0.0
      %399 = vmatprep.subr.mxu0 0.0
      %400 = vmatpush1.msra.mxu0 0.0
      %401 = vmatprep.subr.mxu0 0.0
      %402 = vmatpush1.msra.mxu0 0.0
      %403 = vmatprep.subr.mxu0 0.0
      %404 = vmatpush1.msra.mxu0 0.0
      %405 = vmatprep.subr.mxu0 0.0
      %406 = vmatpush1.msra.mxu0 0.0
      %407 = vmatprep.subr.mxu0 0.0
      %408 = vmatpush1.msra.mxu0 0.0
      %409 = vmatprep.subr.mxu0 0.0
      %410 = vmatpush1.msra.mxu0 0.0
      %411 = vmatprep.subr.mxu0 0.0
      %412 = vmatpush1.msra.mxu0 0.0
      %413 = vmatprep.subr.mxu0 0.0
      %414 = vmatpush1.msra.mxu0 0.0
      %415 = vmatprep.subr.mxu0 0.0
      %416 = vmatpush1.msra.mxu0 0.0
      %417 = vmatprep.subr.mxu0 0.0
      %418 = vmatpush1.msra.mxu0 0.0
      %419 = vmatprep.subr.mxu0 0.0
      %420 = vmatpush1.msra.mxu0 0.0
      %421 = vmatprep.subr.mxu0 0.0
      %422 = vmatpush1.msra.mxu0 0.0
      %423 = vmatprep.mubr.f32.mxu0 0.0
      %424 = vmatmul.mubr.f32.gmra.mrb[0].mxu0 %v350
      %v425 = vpop.f32.mrb[0].mxu0
      %v426 = vadd.f32 0.0, %v425
      %v427 = vpop.f32.mrb[0].mxu0
      %v428 = vadd.f32 0.0, %v427
      %429 = vdwg.mxu0
      %430 = vmatprep.subr.mxu0 0.0
      %431 = vmatpush1.msra.mxu0 %v357
      %432 = vmatprep.subr.mxu0 0.0
      %433 = vmatpush1.msra.mxu0 0.0
      %434 = vmatprep.subr.mxu0 0.0
      %435 = vmatpush1.msra.mxu0 0.0
      %436 = vmatprep.subr.mxu0 0.0
      %437 = vmatpush1.msra.mxu0 0.0
      %438 = vmatprep.subr.mxu0 0.0
      %439 = vmatpush1.msra.mxu0 0.0
      %440 = vmatprep.subr.mxu0 0.0
      %441 = vmatpush1.msra.mxu0 0.0
      %442 = vmatprep.subr.mxu0 0.0
      %443 = vmatpush1.msra.mxu0 0.0
      %444 = vmatprep.subr.mxu0 0.0
      %445 = vmatpush1.msra.mxu0 0.0
      %446 = vmatprep.subr.mxu0 0.0
      %447 = vmatpush1.msra.mxu0 0.0
      %448 = vmatprep.subr.mxu0 0.0
      %449 = vmatpush1.msra.mxu0 0.0
      %450 = vmatprep.subr.mxu0 0.0
      %451 = vmatpush1.msra.mxu0 0.0
      %452 = vmatprep.subr.mxu0 0.0
      %453 = vmatpush1.msra.mxu0 0.0
      %454 = vmatprep.subr.mxu0 0.0
      %455 = vmatpush1.msra.mxu0 0.0
      %456 = vmatprep.subr.mxu0 0.0
      %457 = vmatpush1.msra.mxu0 0.0
      %458 = vmatprep.subr.mxu0 0.0
      %459 = vmatpush1.msra.mxu0 0.0
      %460 = vmatprep.subr.mxu0 0.0
      %461 = vmatpush1.msra.mxu0 0.0
      %462 = vmatprep.subr.mxu0 0.0
      %463 = vmatpush1.msra.mxu0 0.0
      %464 = vmatprep.subr.mxu0 0.0
      %465 = vmatpush1.msra.mxu0 0.0
      %466 = vmatprep.subr.mxu0 0.0
      %467 = vmatpush1.msra.mxu0 0.0
      %468 = vmatprep.subr.mxu0 0.0
      %469 = vmatpush1.msra.mxu0 0.0
      %470 = vmatprep.subr.mxu0 0.0
      %471 = vmatpush1.msra.mxu0 0.0
      %472 = vmatprep.subr.mxu0 0.0
      %473 = vmatpush1.msra.mxu0 0.0
      %474 = vmatprep.subr.mxu0 0.0
      %475 = vmatpush1.msra.mxu0 0.0
      %476 = vmatprep.subr.mxu0 0.0
      %477 = vmatpush1.msra.mxu0 0.0
      %478 = vmatprep.subr.mxu0 0.0
      %479 = vmatpush1.msra.mxu0 0.0
      %480 = vmatprep.subr.mxu0 0.0
      %481 = vmatpush1.msra.mxu0 0.0
      %482 = vmatprep.subr.mxu0 0.0
      %483 = vmatpush1.msra.mxu0 0.0
      %484 = vmatprep.subr.mxu0 0.0
      %485 = vmatpush1.msra.mxu0 0.0
      %486 = vmatprep.subr.mxu0 0.0
      %487 = vmatpush1.msra.mxu0 0.0
      %488 = vmatprep.subr.mxu0 0.0
      %489 = vmatpush1.msra.mxu0 0.0
      %490 = vmatprep.subr.mxu0 0.0
      %491 = vmatpush1.msra.mxu0 0.0
      %492 = vmatprep.subr.mxu0 0.0
      %493 = vmatpush1.msra.mxu0 0.0
      %494 = vmatprep.mubr.f32.mxu0 0.0
      %495 = vmatmul.mubr.f32.gmra.mrb[0].mxu0 %v350
      %v496 = vpop.f32.mrb[0].mxu0
      %v497 = vadd.f32 0.0, %v496
      %v498 = vpop.f32.mrb[0].mxu0
      %499 = vdwg.mxu0
      %v501 = vsel %vm348, %v331, 0
      %v503 = vsel %vm352, %v332, 0
      %v505 = vsel %vm352, %v338, 0
      %v507 = vsel %vm352, %v333, 0
      %509 = vmatprep.subr.mxu0 %v505
      %510 = vmatpush1.msra.mxu0 %v503
      %511 = vmatprep.subr.mxu0 0.0
      %512 = vmatpush1.msra.mxu0 0.0
      %513 = vmatprep.subr.mxu0 0.0
      %514 = vmatpush1.msra.mxu0 0.0
      %515 = vmatprep.subr.mxu0 0.0
      %516 = vmatpush1.msra.mxu0 0.0
      %517 = vmatprep.subr.mxu0 0.0
      %518 = vmatpush1.msra.mxu0 0.0
      %519 = vmatprep.subr.mxu0 0.0
      %520 = vmatpush1.msra.mxu0 0.0
      %521 = vmatprep.subr.mxu0 0.0
      %522 = vmatpush1.msra.mxu0 0.0
      %523 = vmatprep.subr.mxu0 0.0
      %524 = vmatpush1.msra.mxu0 0.0
      %525 = vmatprep.subr.mxu0 0.0
      %526 = vmatpush1.msra.mxu0 0.0
      %527 = vmatprep.subr.mxu0 0.0
      %528 = vmatpush1.msra.mxu0 0.0
      %529 = vmatprep.subr.mxu0 0.0
      %530 = vmatpush1.msra.mxu0 0.0
      %531 = vmatprep.subr.mxu0 0.0
      %532 = vmatpush1.msra.mxu0 0.0
      %533 = vmatprep.subr.mxu0 0.0
      %534 = vmatpush1.msra.mxu0 0.0
      %535 = vmatprep.subr.mxu0 0.0
      %536 = vmatpush1.msra.mxu0 0.0
      %537 = vmatprep.subr.mxu0 0.0
      %538 = vmatpush1.msra.mxu0 0.0
      %539 = vmatprep.subr.mxu0 0.0
      %540 = vmatpush1.msra.mxu0 0.0
      %541 = vmatprep.subr.mxu0 0.0
      %542 = vmatpush1.msra.mxu0 0.0
      %543 = vmatprep.subr.mxu0 0.0
      %544 = vmatpush1.msra.mxu0 0.0
      %545 = vmatprep.subr.mxu0 0.0
      %546 = vmatpush1.msra.mxu0 0.0
      %547 = vmatprep.subr.mxu0 0.0
      %548 = vmatpush1.msra.mxu0 0.0
      %549 = vmatprep.subr.mxu0 0.0
      %550 = vmatpush1.msra.mxu0 0.0
      %551 = vmatprep.subr.mxu0 0.0
      %552 = vmatpush1.msra.mxu0 0.0
      %553 = vmatprep.subr.mxu0 0.0
      %554 = vmatpush1.msra.mxu0 0.0
      %555 = vmatprep.subr.mxu0 0.0
      %556 = vmatpush1.msra.mxu0 0.0
      %557 = vmatprep.subr.mxu0 0.0
      %558 = vmatpush1.msra.mxu0 0.0
      %559 = vmatprep.subr.mxu0 0.0
      %560 = vmatpush1.msra.mxu0 0.0
      %561 = vmatprep.subr.mxu0 0.0
      %562 = vmatpush1.msra.mxu0 0.0
      %563 = vmatprep.subr.mxu0 0.0
      %564 = vmatpush1.msra.mxu0 0.0
      %565 = vmatprep.subr.mxu0 0.0
      %566 = vmatpush1.msra.mxu0 0.0
      %567 = vmatprep.subr.mxu0 0.0
      %568 = vmatpush1.msra.mxu0 0.0
      %569 = vmatprep.subr.mxu0 0.0
      %570 = vmatpush1.msra.mxu0 0.0
      %571 = vmatprep.subr.mxu0 0.0
      %572 = vmatpush1.msra.mxu0 0.0
      %573 = vmatprep.mubr.f32.mxu0 0.0
      %574 = vmatmul.mubr.f32.gmra.mrb[0].mxu0 %v501
      %v575 = vpop.f32.mrb[0].mxu0
      %v576 = vadd.f32 %v426, %v575
      %v577 = vpop.f32.mrb[0].mxu0
      %v578 = vadd.f32 %v428, %v577
      %579 = vdwg.mxu0
      %580 = vmatprep.subr.mxu0 0.0
      %581 = vmatpush1.msra.mxu0 %v507
      %582 = vmatprep.subr.mxu0 0.0
      %583 = vmatpush1.msra.mxu0 0.0
      %584 = vmatprep.subr.mxu0 0.0
      %585 = vmatpush1.msra.mxu0 0.0
      %586 = vmatprep.subr.mxu0 0.0
      %587 = vmatpush1.msra.mxu0 0.0
      %588 = vmatprep.subr.mxu0 0.0
      %589 = vmatpush1.msra.mxu0 0.0
      %590 = vmatprep.subr.mxu0 0.0
      %591 = vmatpush1.msra.mxu0 0.0
      %592 = vmatprep.subr.mxu0 0.0
      %593 = vmatpush1.msra.mxu0 0.0
      %594 = vmatprep.subr.mxu0 0.0
      %595 = vmatpush1.msra.mxu0 0.0
      %596 = vmatprep.subr.mxu0 0.0
      %597 = vmatpush1.msra.mxu0 0.0
      %598 = vmatprep.subr.mxu0 0.0
      %599 = vmatpush1.msra.mxu0 0.0
      %600 = vmatprep.subr.mxu0 0.0
      %601 = vmatpush1.msra.mxu0 0.0
      %602 = vmatprep.subr.mxu0 0.0
      %603 = vmatpush1.msra.mxu0 0.0
      %604 = vmatprep.subr.mxu0 0.0
      %605 = vmatpush1.msra.mxu0 0.0
      %606 = vmatprep.subr.mxu0 0.0
      %607 = vmatpush1.msra.mxu0 0.0
      %608 = vmatprep.subr.mxu0 0.0
      %609 = vmatpush1.msra.mxu0 0.0
      %610 = vmatprep.subr.mxu0 0.0
      %611 = vmatpush1.msra.mxu0 0.0
      %612 = vmatprep.subr.mxu0 0.0
      %613 = vmatpush1.msra.mxu0 0.0
      %614 = vmatprep.subr.mxu0 0.0
      %615 = vmatpush1.msra.mxu0 0.0
      %616 = vmatprep.subr.mxu0 0.0
      %617 = vmatpush1.msra.mxu0 0.0
      %618 = vmatprep.subr.mxu0 0.0
      %619 = vmatpush1.msra.mxu0 0.0
      %620 = vmatprep.subr.mxu0 0.0
      %621 = vmatpush1.msra.mxu0 0.0
      %622 = vmatprep.subr.mxu0 0.0
      %623 = vmatpush1.msra.mxu0 0.0
      %624 = vmatprep.subr.mxu0 0.0
      %625 = vmatpush1.msra.mxu0 0.0
      %626 = vmatprep.subr.mxu0 0.0
      %627 = vmatpush1.msra.mxu0 0.0
      %628 = vmatprep.subr.mxu0 0.0
      %629 = vmatpush1.msra.mxu0 0.0
      %630 = vmatprep.subr.mxu0 0.0
      %631 = vmatpush1.msra.mxu0 0.0
      %632 = vmatprep.subr.mxu0 0.0
      %633 = vmatpush1.msra.mxu0 0.0
      %634 = vmatprep.subr.mxu0 0.0
      %635 = vmatpush1.msra.mxu0 0.0
      %636 = vmatprep.subr.mxu0 0.0
      %637 = vmatpush1.msra.mxu0 0.0
      %638 = vmatprep.subr.mxu0 0.0
      %639 = vmatpush1.msra.mxu0 0.0
      %640 = vmatprep.subr.mxu0 0.0
      %641 = vmatpush1.msra.mxu0 0.0
      %642 = vmatprep.subr.mxu0 0.0
      %643 = vmatpush1.msra.mxu0 0.0
      %644 = vmatprep.mubr.f32.mxu0 0.0
      %645 = vmatmul.mubr.f32.gmra.mrb[0].mxu0 %v501
      %v646 = vpop.f32.mrb[0].mxu0
      %v647 = vadd.f32 %v497, %v646
      %v648 = vpop.f32.mrb[0].mxu0
      %649 = vdwg.mxu0
      %s650 = scalar_lea.vmem %s1, 16
      %v651 = vld [vmem:[%s650] sm:$0xff]
      %v652 = vld [vmem:[%s326] sm:$0xff]
      %v653 = vld [vmem:[%s326 + $0x8] sm:$0xf]
      %v656 = vcombine.high %v652, %v652
      %657 = vrot.lane.b32.xlu0 %v652, 126
      %v658 = vpop.permute.xlu0 %657
      %659 = vrot.lane.b32.xlu0 %v656, 126
      %v660 = vpop.permute.xlu0 %659
      %661 = vrot.lane.b32.xlu0 %v653, 126
      %v662 = vpop.permute.xlu0 %661
      %vm663 = vcmask 1031168
      %v664 = vsel %vm663, %v658, %v660
      %v665 = vsel %vm663, %v660, %v662
      %v667 = vsel %vm348, %v651, 0
      %v669 = vsel %vm352, %v664, 0
      %v671 = vsel %vm352, %v665, 0
      %v673 = vsel %vm352, %v662, 0
      %675 = vmatprep.subr.mxu0 %v671
      %676 = vmatpush1.msra.mxu0 %v669
      %677 = vmatprep.subr.mxu0 0.0
      %678 = vmatpush1.msra.mxu0 0.0
      %679 = vmatprep.subr.mxu0 0.0
      %680 = vmatpush1.msra.mxu0 0.0
      %681 = vmatprep.subr.mxu0 0.0
      %682 = vmatpush1.msra.mxu0 0.0
      %683 = vmatprep.subr.mxu0 0.0
      %684 = vmatpush1.msra.mxu0 0.0
      %685 = vmatprep.subr.mxu0 0.0
      %686 = vmatpush1.msra.mxu0 0.0
      %687 = vmatprep.subr.mxu0 0.0
      %688 = vmatpush1.msra.mxu0 0.0
      %689 = vmatprep.subr.mxu0 0.0
      %690 = vmatpush1.msra.mxu0 0.0
      %691 = vmatprep.subr.mxu0 0.0
      %692 = vmatpush1.msra.mxu0 0.0
      %693 = vmatprep.subr.mxu0 0.0
      %694 = vmatpush1.msra.mxu0 0.0
      %695 = vmatprep.subr.mxu0 0.0
      %696 = vmatpush1.msra.mxu0 0.0
      %697 = vmatprep.subr.mxu0 0.0
      %698 = vmatpush1.msra.mxu0 0.0
      %699 = vmatprep.subr.mxu0 0.0
      %700 = vmatpush1.msra.mxu0 0.0
      %701 = vmatprep.subr.mxu0 0.0
      %702 = vmatpush1.msra.mxu0 0.0
      %703 = vmatprep.subr.mxu0 0.0
      %704 = vmatpush1.msra.mxu0 0.0
      %705 = vmatprep.subr.mxu0 0.0
      %706 = vmatpush1.msra.mxu0 0.0
      %707 = vmatprep.subr.mxu0 0.0
      %708 = vmatpush1.msra.mxu0 0.0
      %709 = vmatprep.subr.mxu0 0.0
      %710 = vmatpush1.msra.mxu0 0.0
      %711 = vmatprep.subr.mxu0 0.0
      %712 = vmatpush1.msra.mxu0 0.0
      %713 = vmatprep.subr.mxu0 0.0
      %714 = vmatpush1.msra.mxu0 0.0
      %715 = vmatprep.subr.mxu0 0.0
      %716 = vmatpush1.msra.mxu0 0.0
      %717 = vmatprep.subr.mxu0 0.0
      %718 = vmatpush1.msra.mxu0 0.0
      %719 = vmatprep.subr.mxu0 0.0
      %720 = vmatpush1.msra.mxu0 0.0
      %721 = vmatprep.subr.mxu0 0.0
      %722 = vmatpush1.msra.mxu0 0.0
      %723 = vmatprep.subr.mxu0 0.0
      %724 = vmatpush1.msra.mxu0 0.0
      %725 = vmatprep.subr.mxu0 0.0
      %726 = vmatpush1.msra.mxu0 0.0
      %727 = vmatprep.subr.mxu0 0.0
      %728 = vmatpush1.msra.mxu0 0.0
      %729 = vmatprep.subr.mxu0 0.0
      %730 = vmatpush1.msra.mxu0 0.0
      %731 = vmatprep.subr.mxu0 0.0
      %732 = vmatpush1.msra.mxu0 0.0
      %733 = vmatprep.subr.mxu0 0.0
      %734 = vmatpush1.msra.mxu0 0.0
      %735 = vmatprep.subr.mxu0 0.0
      %736 = vmatpush1.msra.mxu0 0.0
      %737 = vmatprep.subr.mxu0 0.0
      %738 = vmatpush1.msra.mxu0 0.0
      %739 = vmatprep.mubr.f32.mxu0 0.0
      %740 = vmatmul.mubr.f32.gmra.mrb[0].mxu0 %v667
      %v741 = vpop.f32.mrb[0].mxu0
      %v742 = vadd.f32 0.0, %v741
      %v743 = vpop.f32.mrb[0].mxu0
      %v744 = vadd.f32 0.0, %v743
      %745 = vdwg.mxu0
      %746 = vmatprep.subr.mxu0 0.0
      %747 = vmatpush1.msra.mxu0 %v673
      %748 = vmatprep.subr.mxu0 0.0
      %749 = vmatpush1.msra.mxu0 0.0
      %750 = vmatprep.subr.mxu0 0.0
      %751 = vmatpush1.msra.mxu0 0.0
      %752 = vmatprep.subr.mxu0 0.0
      %753 = vmatpush1.msra.mxu0 0.0
      %754 = vmatprep.subr.mxu0 0.0
      %755 = vmatpush1.msra.mxu0 0.0
      %756 = vmatprep.subr.mxu0 0.0
      %757 = vmatpush1.msra.mxu0 0.0
      %758 = vmatprep.subr.mxu0 0.0
      %759 = vmatpush1.msra.mxu0 0.0
      %760 = vmatprep.subr.mxu0 0.0
      %761 = vmatpush1.msra.mxu0 0.0
      %762 = vmatprep.subr.mxu0 0.0
      %763 = vmatpush1.msra.mxu0 0.0
      %764 = vmatprep.subr.mxu0 0.0
      %765 = vmatpush1.msra.mxu0 0.0
      %766 = vmatprep.subr.mxu0 0.0
      %767 = vmatpush1.msra.mxu0 0.0
      %768 = vmatprep.subr.mxu0 0.0
      %769 = vmatpush1.msra.mxu0 0.0
      %770 = vmatprep.subr.mxu0 0.0
      %771 = vmatpush1.msra.mxu0 0.0
      %772 = vmatprep.subr.mxu0 0.0
      %773 = vmatpush1.msra.mxu0 0.0
      %774 = vmatprep.subr.mxu0 0.0
      %775 = vmatpush1.msra.mxu0 0.0
      %776 = vmatprep.subr.mxu0 0.0
      %777 = vmatpush1.msra.mxu0 0.0
      %778 = vmatprep.subr.mxu0 0.0
      %779 = vmatpush1.msra.mxu0 0.0
      %780 = vmatprep.subr.mxu0 0.0
      %781 = vmatpush1.msra.mxu0 0.0
      %782 = vmatprep.subr.mxu0 0.0
      %783 = vmatpush1.msra.mxu0 0.0
      %784 = vmatprep.subr.mxu0 0.0
      %785 = vmatpush1.msra.mxu0 0.0
      %786 = vmatprep.subr.mxu0 0.0
      %787 = vmatpush1.msra.mxu0 0.0
      %788 = vmatprep.subr.mxu0 0.0
      %789 = vmatpush1.msra.mxu0 0.0
      %790 = vmatprep.subr.mxu0 0.0
      %791 = vmatpush1.msra.mxu0 0.0
      %792 = vmatprep.subr.mxu0 0.0
      %793 = vmatpush1.msra.mxu0 0.0
      %794 = vmatprep.subr.mxu0 0.0
      %795 = vmatpush1.msra.mxu0 0.0
      %796 = vmatprep.subr.mxu0 0.0
      %797 = vmatpush1.msra.mxu0 0.0
      %798 = vmatprep.subr.mxu0 0.0
      %799 = vmatpush1.msra.mxu0 0.0
      %800 = vmatprep.subr.mxu0 0.0
      %801 = vmatpush1.msra.mxu0 0.0
      %802 = vmatprep.subr.mxu0 0.0
      %803 = vmatpush1.msra.mxu0 0.0
      %804 = vmatprep.subr.mxu0 0.0
      %805 = vmatpush1.msra.mxu0 0.0
      %806 = vmatprep.subr.mxu0 0.0
      %807 = vmatpush1.msra.mxu0 0.0
      %808 = vmatprep.subr.mxu0 0.0
      %809 = vmatpush1.msra.mxu0 0.0
      %810 = vmatprep.mubr.f32.mxu0 0.0
      %811 = vmatmul.mubr.f32.gmra.mrb[0].mxu0 %v667
      %v812 = vpop.f32.mrb[0].mxu0
      %v813 = vadd.f32 0.0, %v812
      %v814 = vpop.f32.mrb[0].mxu0
      %815 = vdwg.mxu0
      %v816 = vadd.f32 %v576, %v742
      %v817 = vadd.f32 %v578, %v744
      %v818 = vadd.f32 %v647, %v813
      %s819 = scalar_lea.vmem %s1, 24
      %v820 = vld [vmem:[%s819] sm:$0xff]
      %v821 = vld [vmem:[%s326] sm:$0xff]
      %v822 = vld [vmem:[%s326 + $0x8] sm:$0xf]
      %v825 = vcombine.high %v821, %v821
      %826 = vrot.lane.b32.xlu0 %v821, 110
      %v827 = vpop.permute.xlu0 %826
      %828 = vrot.lane.b32.xlu0 %v825, 110
      %v829 = vpop.permute.xlu0 %828
      %830 = vrot.lane.b32.xlu0 %v822, 110
      %v831 = vpop.permute.xlu0 %830
      %vm832 = vcmask 900096
      %v833 = vsel %vm832, %v827, %v829
      %v834 = vsel %vm832, %v829, %v831
      %v836 = vsel %vm348, %v820, 0
      %v838 = vsel %vm352, %v833, 0
      %v840 = vsel %vm352, %v834, 0
      %v842 = vsel %vm352, %v831, 0
      %844 = vmatprep.subr.mxu0 %v840
      %845 = vmatpush1.msra.mxu0 %v838
      %846 = vmatprep.subr.mxu0 0.0
      %847 = vmatpush1.msra.mxu0 0.0
      %848 = vmatprep.subr.mxu0 0.0
      %849 = vmatpush1.msra.mxu0 0.0
      %850 = vmatprep.subr.mxu0 0.0
      %851 = vmatpush1.msra.mxu0 0.0
      %852 = vmatprep.subr.mxu0 0.0
      %853 = vmatpush1.msra.mxu0 0.0
      %854 = vmatprep.subr.mxu0 0.0
      %855 = vmatpush1.msra.mxu0 0.0
      %856 = vmatprep.subr.mxu0 0.0
      %857 = vmatpush1.msra.mxu0 0.0
      %858 = vmatprep.subr.mxu0 0.0
      %859 = vmatpush1.msra.mxu0 0.0
      %860 = vmatprep.subr.mxu0 0.0
      %861 = vmatpush1.msra.mxu0 0.0
      %862 = vmatprep.subr.mxu0 0.0
      %863 = vmatpush1.msra.mxu0 0.0
      %864 = vmatprep.subr.mxu0 0.0
      %865 = vmatpush1.msra.mxu0 0.0
      %866 = vmatprep.subr.mxu0 0.0
      %867 = vmatpush1.msra.mxu0 0.0
      %868 = vmatprep.subr.mxu0 0.0
      %869 = vmatpush1.msra.mxu0 0.0
      %870 = vmatprep.subr.mxu0 0.0
      %871 = vmatpush1.msra.mxu0 0.0
      %872 = vmatprep.subr.mxu0 0.0
      %873 = vmatpush1.msra.mxu0 0.0
      %874 = vmatprep.subr.mxu0 0.0
      %875 = vmatpush1.msra.mxu0 0.0
      %876 = vmatprep.subr.mxu0 0.0
      %877 = vmatpush1.msra.mxu0 0.0
      %878 = vmatprep.subr.mxu0 0.0
      %879 = vmatpush1.msra.mxu0 0.0
      %880 = vmatprep.subr.mxu0 0.0
      %881 = vmatpush1.msra.mxu0 0.0
      %882 = vmatprep.subr.mxu0 0.0
      %883 = vmatpush1.msra.mxu0 0.0
      %884 = vmatprep.subr.mxu0 0.0
      %885 = vmatpush1.msra.mxu0 0.0
      %886 = vmatprep.subr.mxu0 0.0
      %887 = vmatpush1.msra.mxu0 0.0
      %888 = vmatprep.subr.mxu0 0.0
      %889 = vmatpush1.msra.mxu0 0.0
      %890 = vmatprep.subr.mxu0 0.0
      %891 = vmatpush1.msra.mxu0 0.0
      %892 = vmatprep.subr.mxu0 0.0
      %893 = vmatpush1.msra.mxu0 0.0
      %894 = vmatprep.subr.mxu0 0.0
      %895 = vmatpush1.msra.mxu0 0.0
      %896 = vmatprep.subr.mxu0 0.0
      %897 = vmatpush1.msra.mxu0 0.0
      %898 = vmatprep.subr.mxu0 0.0
      %899 = vmatpush1.msra.mxu0 0.0
      %900 = vmatprep.subr.mxu0 0.0
      %901 = vmatpush1.msra.mxu0 0.0
      %902 = vmatprep.subr.mxu0 0.0
      %903 = vmatpush1.msra.mxu0 0.0
      %904 = vmatprep.subr.mxu0 0.0
      %905 = vmatpush1.msra.mxu0 0.0
      %906 = vmatprep.subr.mxu0 0.0
      %907 = vmatpush1.msra.mxu0 0.0
      %908 = vmatprep.mubr.f32.mxu0 0.0
      %909 = vmatmul.mubr.f32.gmra.mrb[0].mxu0 %v836
      %v910 = vpop.f32.mrb[0].mxu0
      %v911 = vadd.f32 0.0, %v910
      %v912 = vpop.f32.mrb[0].mxu0
      %v913 = vadd.f32 0.0, %v912
      %914 = vdwg.mxu0
      %915 = vmatprep.subr.mxu0 0.0
      %916 = vmatpush1.msra.mxu0 %v842
      %917 = vmatprep.subr.mxu0 0.0
      %918 = vmatpush1.msra.mxu0 0.0
      %919 = vmatprep.subr.mxu0 0.0
      %920 = vmatpush1.msra.mxu0 0.0
      %921 = vmatprep.subr.mxu0 0.0
      %922 = vmatpush1.msra.mxu0 0.0
      %923 = vmatprep.subr.mxu0 0.0
      %924 = vmatpush1.msra.mxu0 0.0
      %925 = vmatprep.subr.mxu0 0.0
      %926 = vmatpush1.msra.mxu0 0.0
      %927 = vmatprep.subr.mxu0 0.0
      %928 = vmatpush1.msra.mxu0 0.0
      %929 = vmatprep.subr.mxu0 0.0
      %930 = vmatpush1.msra.mxu0 0.0
      %931 = vmatprep.subr.mxu0 0.0
      %932 = vmatpush1.msra.mxu0 0.0
      %933 = vmatprep.subr.mxu0 0.0
      %934 = vmatpush1.msra.mxu0 0.0
      %935 = vmatprep.subr.mxu0 0.0
      %936 = vmatpush1.msra.mxu0 0.0
      %937 = vmatprep.subr.mxu0 0.0
      %938 = vmatpush1.msra.mxu0 0.0
      %939 = vmatprep.subr.mxu0 0.0
      %940 = vmatpush1.msra.mxu0 0.0
      %941 = vmatprep.subr.mxu0 0.0
      %942 = vmatpush1.msra.mxu0 0.0
      %943 = vmatprep.subr.mxu0 0.0
      %944 = vmatpush1.msra.mxu0 0.0
      %945 = vmatprep.subr.mxu0 0.0
      %946 = vmatpush1.msra.mxu0 0.0
      %947 = vmatprep.subr.mxu0 0.0
      %948 = vmatpush1.msra.mxu0 0.0
      %949 = vmatprep.subr.mxu0 0.0
      %950 = vmatpush1.msra.mxu0 0.0
      %951 = vmatprep.subr.mxu0 0.0
      %952 = vmatpush1.msra.mxu0 0.0
      %953 = vmatprep.subr.mxu0 0.0
      %954 = vmatpush1.msra.mxu0 0.0
      %955 = vmatprep.subr.mxu0 0.0
      %956 = vmatpush1.msra.mxu0 0.0
      %957 = vmatprep.subr.mxu0 0.0
      %958 = vmatpush1.msra.mxu0 0.0
      %959 = vmatprep.subr.mxu0 0.0
      %960 = vmatpush1.msra.mxu0 0.0
      %961 = vmatprep.subr.mxu0 0.0
      %962 = vmatpush1.msra.mxu0 0.0
      %963 = vmatprep.subr.mxu0 0.0
      %964 = vmatpush1.msra.mxu0 0.0
      %965 = vmatprep.subr.mxu0 0.0
      %966 = vmatpush1.msra.mxu0 0.0
      %967 = vmatprep.subr.mxu0 0.0
      %968 = vmatpush1.msra.mxu0 0.0
      %969 = vmatprep.subr.mxu0 0.0
      %970 = vmatpush1.msra.mxu0 0.0
      %971 = vmatprep.subr.mxu0 0.0
      %972 = vmatpush1.msra.mxu0 0.0
      %973 = vmatprep.subr.mxu0 0.0
      %974 = vmatpush1.msra.mxu0 0.0
      %975 = vmatprep.subr.mxu0 0.0
      %976 = vmatpush1.msra.mxu0 0.0
      %977 = vmatprep.subr.mxu0 0.0
      %978 = vmatpush1.msra.mxu0 0.0
      %979 = vmatprep.mubr.f32.mxu0 0.0
      %980 = vmatmul.mubr.f32.gmra.mrb[0].mxu0 %v836
      %v981 = vpop.f32.mrb[0].mxu0
      %v982 = vadd.f32 0.0, %v981
      %v983 = vpop.f32.mrb[0].mxu0
      %984 = vdwg.mxu0
      %v985 = vadd.f32 %v816, %v911
      %v986 = vadd.f32 %v817, %v913
      %v987 = vadd.f32 %v818, %v982
      %s988 = scalar_lea.vmem %s1, 32
      %v989 = vld [vmem:[%s988] sm:$0xff]
      %v990 = vld [vmem:[%s326] sm:$0xff]
      %v991 = vld [vmem:[%s326 + $0x8] sm:$0xf]
      %v994 = vcombine.high %v990, %v990
      %995 = vrot.lane.b32.xlu0 %v990, 109
      %v996 = vpop.permute.xlu0 %995
      %997 = vrot.lane.b32.xlu0 %v994, 109
      %v998 = vpop.permute.xlu0 %997
      %999 = vrot.lane.b32.xlu0 %v991, 109
      %v1000 = vpop.permute.xlu0 %999
      %vm1001 = vcmask 891904
      %v1002 = vsel %vm1001, %v996, %v998
      %v1003 = vsel %vm1001, %v998, %v1000
      %v1005 = vsel %vm348, %v989, 0
      %v1007 = vsel %vm352, %v1002, 0
      %v1009 = vsel %vm352, %v1003, 0
      %v1011 = vsel %vm352, %v1000, 0
      %1013 = vmatprep.subr.mxu0 %v1009
      %1014 = vmatpush1.msra.mxu0 %v1007
      %1015 = vmatprep.subr.mxu0 0.0
      %1016 = vmatpush1.msra.mxu0 0.0
      %1017 = vmatprep.subr.mxu0 0.0
      %1018 = vmatpush1.msra.mxu0 0.0
      %1019 = vmatprep.subr.mxu0 0.0
      %1020 = vmatpush1.msra.mxu0 0.0
      %1021 = vmatprep.subr.mxu0 0.0
      %1022 = vmatpush1.msra.mxu0 0.0
      %1023 = vmatprep.subr.mxu0 0.0
      %1024 = vmatpush1.msra.mxu0 0.0
      %1025 = vmatprep.subr.mxu0 0.0
      %1026 = vmatpush1.msra.mxu0 0.0
      %1027 = vmatprep.subr.mxu0 0.0
      %1028 = vmatpush1.msra.mxu0 0.0
      %1029 = vmatprep.subr.mxu0 0.0
      %1030 = vmatpush1.msra.mxu0 0.0
      %1031 = vmatprep.subr.mxu0 0.0
      %1032 = vmatpush1.msra.mxu0 0.0
      %1033 = vmatprep.subr.mxu0 0.0
      %1034 = vmatpush1.msra.mxu0 0.0
      %1035 = vmatprep.subr.mxu0 0.0
      %1036 = vmatpush1.msra.mxu0 0.0
      %1037 = vmatprep.subr.mxu0 0.0
      %1038 = vmatpush1.msra.mxu0 0.0
      %1039 = vmatprep.subr.mxu0 0.0
      %1040 = vmatpush1.msra.mxu0 0.0
      %1041 = vmatprep.subr.mxu0 0.0
      %1042 = vmatpush1.msra.mxu0 0.0
      %1043 = vmatprep.subr.mxu0 0.0
      %1044 = vmatpush1.msra.mxu0 0.0
      %1045 = vmatprep.subr.mxu0 0.0
      %1046 = vmatpush1.msra.mxu0 0.0
      %1047 = vmatprep.subr.mxu0 0.0
      %1048 = vmatpush1.msra.mxu0 0.0
      %1049 = vmatprep.subr.mxu0 0.0
      %1050 = vmatpush1.msra.mxu0 0.0
      %1051 = vmatprep.subr.mxu0 0.0
      %1052 = vmatpush1.msra.mxu0 0.0
      %1053 = vmatprep.subr.mxu0 0.0
      %1054 = vmatpush1.msra.mxu0 0.0
      %1055 = vmatprep.subr.mxu0 0.0
      %1056 = vmatpush1.msra.mxu0 0.0
      %1057 = vmatprep.subr.mxu0 0.0
      %1058 = vmatpush1.msra.mxu0 0.0
      %1059 = vmatprep.subr.mxu0 0.0
      %1060 = vmatpush1.msra.mxu0 0.0
      %1061 = vmatprep.subr.mxu0 0.0
      %1062 = vmatpush1.msra.mxu0 0.0
      %1063 = vmatprep.subr.mxu0 0.0
      %1064 = vmatpush1.msra.mxu0 0.0
      %1065 = vmatprep.subr.mxu0 0.0
      %1066 = vmatpush1.msra.mxu0 0.0
      %1067 = vmatprep.subr.mxu0 0.0
      %1068 = vmatpush1.msra.mxu0 0.0
      %1069 = vmatprep.subr.mxu0 0.0
      %1070 = vmatpush1.msra.mxu0 0.0
      %1071 = vmatprep.subr.mxu0 0.0
      %1072 = vmatpush1.msra.mxu0 0.0
      %1073 = vmatprep.subr.mxu0 0.0
      %1074 = vmatpush1.msra.mxu0 0.0
      %1075 = vmatprep.subr.mxu0 0.0
      %1076 = vmatpush1.msra.mxu0 0.0
      %1077 = vmatprep.mubr.f32.mxu0 0.0
      %1078 = vmatmul.mubr.f32.gmra.mrb[0].mxu0 %v1005
      %v1079 = vpop.f32.mrb[0].mxu0
      %v1080 = vadd.f32 0.0, %v1079
      %v1081 = vpop.f32.mrb[0].mxu0
      %v1082 = vadd.f32 0.0, %v1081
      %1083 = vdwg.mxu0
      %1084 = vmatprep.subr.mxu0 0.0
      %1085 = vmatpush1.msra.mxu0 %v1011
      %1086 = vmatprep.subr.mxu0 0.0
      %1087 = vmatpush1.msra.mxu0 0.0
      %1088 = vmatprep.subr.mxu0 0.0
      %1089 = vmatpush1.msra.mxu0 0.0
      %1090 = vmatprep.subr.mxu0 0.0
      %1091 = vmatpush1.msra.mxu0 0.0
      %1092 = vmatprep.subr.mxu0 0.0
      %1093 = vmatpush1.msra.mxu0 0.0
      %1094 = vmatprep.subr.mxu0 0.0
      %1095 = vmatpush1.msra.mxu0 0.0
      %1096 = vmatprep.subr.mxu0 0.0
      %1097 = vmatpush1.msra.mxu0 0.0
      %1098 = vmatprep.subr.mxu0 0.0
      %1099 = vmatpush1.msra.mxu0 0.0
      %1100 = vmatprep.subr.mxu0 0.0
      %1101 = vmatpush1.msra.mxu0 0.0
      %1102 = vmatprep.subr.mxu0 0.0
      %1103 = vmatpush1.msra.mxu0 0.0
      %1104 = vmatprep.subr.mxu0 0.0
      %1105 = vmatpush1.msra.mxu0 0.0
      %1106 = vmatprep.subr.mxu0 0.0
      %1107 = vmatpush1.msra.mxu0 0.0
      %1108 = vmatprep.subr.mxu0 0.0
      %1109 = vmatpush1.msra.mxu0 0.0
      %1110 = vmatprep.subr.mxu0 0.0
      %1111 = vmatpush1.msra.mxu0 0.0
      %1112 = vmatprep.subr.mxu0 0.0
      %1113 = vmatpush1.msra.mxu0 0.0
      %1114 = vmatprep.subr.mxu0 0.0
      %1115 = vmatpush1.msra.mxu0 0.0
      %1116 = vmatprep.subr.mxu0 0.0
      %1117 = vmatpush1.msra.mxu0 0.0
      %1118 = vmatprep.subr.mxu0 0.0
      %1119 = vmatpush1.msra.mxu0 0.0
      %1120 = vmatprep.subr.mxu0 0.0
      %1121 = vmatpush1.msra.mxu0 0.0
      %1122 = vmatprep.subr.mxu0 0.0
      %1123 = vmatpush1.msra.mxu0 0.0
      %1124 = vmatprep.subr.mxu0 0.0
      %1125 = vmatpush1.msra.mxu0 0.0
      %1126 = vmatprep.subr.mxu0 0.0
      %1127 = vmatpush1.msra.mxu0 0.0
      %1128 = vmatprep.subr.mxu0 0.0
      %1129 = vmatpush1.msra.mxu0 0.0
      %1130 = vmatprep.subr.mxu0 0.0
      %1131 = vmatpush1.msra.mxu0 0.0
      %1132 = vmatprep.subr.mxu0 0.0
      %1133 = vmatpush1.msra.mxu0 0.0
      %1134 = vmatprep.subr.mxu0 0.0
      %1135 = vmatpush1.msra.mxu0 0.0
      %1136 = vmatprep.subr.mxu0 0.0
      %1137 = vmatpush1.msra.mxu0 0.0
      %1138 = vmatprep.subr.mxu0 0.0
      %1139 = vmatpush1.msra.mxu0 0.0
      %1140 = vmatprep.subr.mxu0 0.0
      %1141 = vmatpush1.msra.mxu0 0.0
      %1142 = vmatprep.subr.mxu0 0.0
      %1143 = vmatpush1.msra.mxu0 0.0
      %1144 = vmatprep.subr.mxu0 0.0
      %1145 = vmatpush1.msra.mxu0 0.0
      %1146 = vmatprep.subr.mxu0 0.0
      %1147 = vmatpush1.msra.mxu0 0.0
      %1148 = vmatprep.mubr.f32.mxu0 0.0
      %1149 = vmatmul.mubr.f32.gmra.mrb[0].mxu0 %v1005
      %v1150 = vpop.f32.mrb[0].mxu0
      %v1151 = vadd.f32 0.0, %v1150
      %v1152 = vpop.f32.mrb[0].mxu0
      %1153 = vdwg.mxu0
      %v1154 = vadd.f32 %v985, %v1080
      %v1155 = vadd.f32 %v986, %v1082
      %v1156 = vadd.f32 %v987, %v1151
      %s1157 = scalar_lea.vmem %s1, 40
      %v1158 = vld [vmem:[%s1157] sm:$0xff]
      %v1159 = vld [vmem:[%s326] sm:$0xff]
      %v1160 = vld [vmem:[%s326 + $0x8] sm:$0xf]
      %v1163 = vcombine.high %v1159, %v1159
      %1164 = vrot.lane.b32.xlu0 %v1159, 108
      %v1165 = vpop.permute.xlu0 %1164
      %1166 = vrot.lane.b32.xlu0 %v1163, 108
      %v1167 = vpop.permute.xlu0 %1166
      %1168 = vrot.lane.b32.xlu0 %v1160, 108
      %v1169 = vpop.permute.xlu0 %1168
      %vm1170 = vcmask 883712
      %v1171 = vsel %vm1170, %v1165, %v1167
      %v1172 = vsel %vm1170, %v1167, %v1169
      %v1174 = vsel %vm348, %v1158, 0
      %v1176 = vsel %vm352, %v1171, 0
      %v1178 = vsel %vm352, %v1172, 0
      %v1180 = vsel %vm352, %v1169, 0
      %1182 = vmatprep.subr.mxu0 %v1178
      %1183 = vmatpush1.msra.mxu0 %v1176
      %1184 = vmatprep.subr.mxu0 0.0
      %1185 = vmatpush1.msra.mxu0 0.0
      %1186 = vmatprep.subr.mxu0 0.0
      %1187 = vmatpush1.msra.mxu0 0.0
      %1188 = vmatprep.subr.mxu0 0.0
      %1189 = vmatpush1.msra.mxu0 0.0
      %1190 = vmatprep.subr.mxu0 0.0
      %1191 = vmatpush1.msra.mxu0 0.0
      %1192 = vmatprep.subr.mxu0 0.0
      %1193 = vmatpush1.msra.mxu0 0.0
      %1194 = vmatprep.subr.mxu0 0.0
      %1195 = vmatpush1.msra.mxu0 0.0
      %1196 = vmatprep.subr.mxu0 0.0
      %1197 = vmatpush1.msra.mxu0 0.0
      %1198 = vmatprep.subr.mxu0 0.0
      %1199 = vmatpush1.msra.mxu0 0.0
      %1200 = vmatprep.subr.mxu0 0.0
      %1201 = vmatpush1.msra.mxu0 0.0
      %1202 = vmatprep.subr.mxu0 0.0
      %1203 = vmatpush1.msra.mxu0 0.0
      %1204 = vmatprep.subr.mxu0 0.0
      %1205 = vmatpush1.msra.mxu0 0.0
      %1206 = vmatprep.subr.mxu0 0.0
      %1207 = vmatpush1.msra.mxu0 0.0
      %1208 = vmatprep.subr.mxu0 0.0
      %1209 = vmatpush1.msra.mxu0 0.0
      %1210 = vmatprep.subr.mxu0 0.0
      %1211 = vmatpush1.msra.mxu0 0.0
      %1212 = vmatprep.subr.mxu0 0.0
      %1213 = vmatpush1.msra.mxu0 0.0
      %1214 = vmatprep.subr.mxu0 0.0
      %1215 = vmatpush1.msra.mxu0 0.0
      %1216 = vmatprep.subr.mxu0 0.0
      %1217 = vmatpush1.msra.mxu0 0.0
      %1218 = vmatprep.subr.mxu0 0.0
      %1219 = vmatpush1.msra.mxu0 0.0
      %1220 = vmatprep.subr.mxu0 0.0
      %1221 = vmatpush1.msra.mxu0 0.0
      %1222 = vmatprep.subr.mxu0 0.0
      %1223 = vmatpush1.msra.mxu0 0.0
      %1224 = vmatprep.subr.mxu0 0.0
      %1225 = vmatpush1.msra.mxu0 0.0
      %1226 = vmatprep.subr.mxu0 0.0
      %1227 = vmatpush1.msra.mxu0 0.0
      %1228 = vmatprep.subr.mxu0 0.0
      %1229 = vmatpush1.msra.mxu0 0.0
      %1230 = vmatprep.subr.mxu0 0.0
      %1231 = vmatpush1.msra.mxu0 0.0
      %1232 = vmatprep.subr.mxu0 0.0
      %1233 = vmatpush1.msra.mxu0 0.0
      %1234 = vmatprep.subr.mxu0 0.0
      %1235 = vmatpush1.msra.mxu0 0.0
      %1236 = vmatprep.subr.mxu0 0.0
      %1237 = vmatpush1.msra.mxu0 0.0
      %1238 = vmatprep.subr.mxu0 0.0
      %1239 = vmatpush1.msra.mxu0 0.0
      %1240 = vmatprep.subr.mxu0 0.0
      %1241 = vmatpush1.msra.mxu0 0.0
      %1242 = vmatprep.subr.mxu0 0.0
      %1243 = vmatpush1.msra.mxu0 0.0
      %1244 = vmatprep.subr.mxu0 0.0
      %1245 = vmatpush1.msra.mxu0 0.0
      %1246 = vmatprep.mubr.f32.mxu0 0.0
      %1247 = vmatmul.mubr.f32.gmra.mrb[0].mxu0 %v1174
      %v1248 = vpop.f32.mrb[0].mxu0
      %v1249 = vadd.f32 0.0, %v1248
      %v1250 = vpop.f32.mrb[0].mxu0
      %v1251 = vadd.f32 0.0, %v1250
      %1252 = vdwg.mxu0
      %1253 = vmatprep.subr.mxu0 0.0
      %1254 = vmatpush1.msra.mxu0 %v1180
      %1255 = vmatprep.subr.mxu0 0.0
      %1256 = vmatpush1.msra.mxu0 0.0
      %1257 = vmatprep.subr.mxu0 0.0
      %1258 = vmatpush1.msra.mxu0 0.0
      %1259 = vmatprep.subr.mxu0 0.0
      %1260 = vmatpush1.msra.mxu0 0.0
      %1261 = vmatprep.subr.mxu0 0.0
      %1262 = vmatpush1.msra.mxu0 0.0
      %1263 = vmatprep.subr.mxu0 0.0
      %1264 = vmatpush1.msra.mxu0 0.0
      %1265 = vmatprep.subr.mxu0 0.0
      %1266 = vmatpush1.msra.mxu0 0.0
      %1267 = vmatprep.subr.mxu0 0.0
      %1268 = vmatpush1.msra.mxu0 0.0
      %1269 = vmatprep.subr.mxu0 0.0
      %1270 = vmatpush1.msra.mxu0 0.0
      %1271 = vmatprep.subr.mxu0 0.0
      %1272 = vmatpush1.msra.mxu0 0.0
      %1273 = vmatprep.subr.mxu0 0.0
      %1274 = vmatpush1.msra.mxu0 0.0
      %1275 = vmatprep.subr.mxu0 0.0
      %1276 = vmatpush1.msra.mxu0 0.0
      %1277 = vmatprep.subr.mxu0 0.0
      %1278 = vmatpush1.msra.mxu0 0.0
      %1279 = vmatprep.subr.mxu0 0.0
      %1280 = vmatpush1.msra.mxu0 0.0
      %1281 = vmatprep.subr.mxu0 0.0
      %1282 = vmatpush1.msra.mxu0 0.0
      %1283 = vmatprep.subr.mxu0 0.0
      %1284 = vmatpush1.msra.mxu0 0.0
      %1285 = vmatprep.subr.mxu0 0.0
      %1286 = vmatpush1.msra.mxu0 0.0
      %1287 = vmatprep.subr.mxu0 0.0
      %1288 = vmatpush1.msra.mxu0 0.0
      %1289 = vmatprep.subr.mxu0 0.0
      %1290 = vmatpush1.msra.mxu0 0.0
      %1291 = vmatprep.subr.mxu0 0.0
      %1292 = vmatpush1.msra.mxu0 0.0
      %1293 = vmatprep.subr.mxu0 0.0
      %1294 = vmatpush1.msra.mxu0 0.0
      %1295 = vmatprep.subr.mxu0 0.0
      %1296 = vmatpush1.msra.mxu0 0.0
      %1297 = vmatprep.subr.mxu0 0.0
      %1298 = vmatpush1.msra.mxu0 0.0
      %1299 = vmatprep.subr.mxu0 0.0
      %1300 = vmatpush1.msra.mxu0 0.0
      %1301 = vmatprep.subr.mxu0 0.0
      %1302 = vmatpush1.msra.mxu0 0.0
      %1303 = vmatprep.subr.mxu0 0.0
      %1304 = vmatpush1.msra.mxu0 0.0
      %1305 = vmatprep.subr.mxu0 0.0
      %1306 = vmatpush1.msra.mxu0 0.0
      %1307 = vmatprep.subr.mxu0 0.0
      %1308 = vmatpush1.msra.mxu0 0.0
      %1309 = vmatprep.subr.mxu0 0.0
      %1310 = vmatpush1.msra.mxu0 0.0
      %1311 = vmatprep.subr.mxu0 0.0
      %1312 = vmatpush1.msra.mxu0 0.0
      %1313 = vmatprep.subr.mxu0 0.0
      %1314 = vmatpush1.msra.mxu0 0.0
      %1315 = vmatprep.subr.mxu0 0.0
      %1316 = vmatpush1.msra.mxu0 0.0
      %1317 = vmatprep.mubr.f32.mxu0 0.0
      %1318 = vmatmul.mubr.f32.gmra.mrb[0].mxu0 %v1174
      %v1319 = vpop.f32.mrb[0].mxu0
      %v1320 = vadd.f32 0.0, %v1319
      %v1321 = vpop.f32.mrb[0].mxu0
      %1322 = vdwg.mxu0
      %v1323 = vadd.f32 %v1154, %v1249
      %v1324 = vadd.f32 %v1155, %v1251
      %v1325 = vadd.f32 %v1156, %v1320
      %s1326 = scalar_lea.vmem %s1, 48
      %v1327 = vld [vmem:[%s1326] sm:$0xff]
      %v1328 = vld [vmem:[%s326] sm:$0xff]
      %v1329 = vld [vmem:[%s326 + $0x8] sm:$0xf]
      %v1332 = vcombine.high %v1328, %v1328
      %1333 = vrot.lane.b32.xlu0 %v1328, 92
      %v1334 = vpop.permute.xlu0 %1333
      %1335 = vrot.lane.b32.xlu0 %v1332, 92
      %v1336 = vpop.permute.xlu0 %1335
      %1337 = vrot.lane.b32.xlu0 %v1329, 92
      %v1338 = vpop.permute.xlu0 %1337
      %vm1339 = vcmask 752640
      %v1340 = vsel %vm1339, %v1334, %v1336
      %v1341 = vsel %vm1339, %v1336, %v1338
      %v1343 = vsel %vm348, %v1327, 0
      %v1345 = vsel %vm352, %v1340, 0
      %v1347 = vsel %vm352, %v1341, 0
      %v1349 = vsel %vm352, %v1338, 0
      %1351 = vmatprep.subr.mxu0 %v1347
      %1352 = vmatpush1.msra.mxu0 %v1345
      %1353 = vmatprep.subr.mxu0 0.0
      %1354 = vmatpush1.msra.mxu0 0.0
      %1355 = vmatprep.subr.mxu0 0.0
      %1356 = vmatpush1.msra.mxu0 0.0
      %1357 = vmatprep.subr.mxu0 0.0
      %1358 = vmatpush1.msra.mxu0 0.0
      %1359 = vmatprep.subr.mxu0 0.0
      %1360 = vmatpush1.msra.mxu0 0.0
      %1361 = vmatprep.subr.mxu0 0.0
      %1362 = vmatpush1.msra.mxu0 0.0
      %1363 = vmatprep.subr.mxu0 0.0
      %1364 = vmatpush1.msra.mxu0 0.0
      %1365 = vmatprep.subr.mxu0 0.0
      %1366 = vmatpush1.msra.mxu0 0.0
      %1367 = vmatprep.subr.mxu0 0.0
      %1368 = vmatpush1.msra.mxu0 0.0
      %1369 = vmatprep.subr.mxu0 0.0
      %1370 = vmatpush1.msra.mxu0 0.0
      %1371 = vmatprep.subr.mxu0 0.0
      %1372 = vmatpush1.msra.mxu0 0.0
      %1373 = vmatprep.subr.mxu0 0.0
      %1374 = vmatpush1.msra.mxu0 0.0
      %1375 = vmatprep.subr.mxu0 0.0
      %1376 = vmatpush1.msra.mxu0 0.0
      %1377 = vmatprep.subr.mxu0 0.0
      %1378 = vmatpush1.msra.mxu0 0.0
      %1379 = vmatprep.subr.mxu0 0.0
      %1380 = vmatpush1.msra.mxu0 0.0
      %1381 = vmatprep.subr.mxu0 0.0
      %1382 = vmatpush1.msra.mxu0 0.0
      %1383 = vmatprep.subr.mxu0 0.0
      %1384 = vmatpush1.msra.mxu0 0.0
      %1385 = vmatprep.subr.mxu0 0.0
      %1386 = vmatpush1.msra.mxu0 0.0
      %1387 = vmatprep.subr.mxu0 0.0
      %1388 = vmatpush1.msra.mxu0 0.0
      %1389 = vmatprep.subr.mxu0 0.0
      %1390 = vmatpush1.msra.mxu0 0.0
      %1391 = vmatprep.subr.mxu0 0.0
      %1392 = vmatpush1.msra.mxu0 0.0
      %1393 = vmatprep.subr.mxu0 0.0
      %1394 = vmatpush1.msra.mxu0 0.0
      %1395 = vmatprep.subr.mxu0 0.0
      %1396 = vmatpush1.msra.mxu0 0.0
      %1397 = vmatprep.subr.mxu0 0.0
      %1398 = vmatpush1.msra.mxu0 0.0
      %1399 = vmatprep.subr.mxu0 0.0
      %1400 = vmatpush1.msra.mxu0 0.0
      %1401 = vmatprep.subr.mxu0 0.0
      %1402 = vmatpush1.msra.mxu0 0.0
      %1403 = vmatprep.subr.mxu0 0.0
      %1404 = vmatpush1.msra.mxu0 0.0
      %1405 = vmatprep.subr.mxu0 0.0
      %1406 = vmatpush1.msra.mxu0 0.0
      %1407 = vmatprep.subr.mxu0 0.0
      %1408 = vmatpush1.msra.mxu0 0.0
      %1409 = vmatprep.subr.mxu0 0.0
      %1410 = vmatpush1.msra.mxu0 0.0
      %1411 = vmatprep.subr.mxu0 0.0
      %1412 = vmatpush1.msra.mxu0 0.0
      %1413 = vmatprep.subr.mxu0 0.0
      %1414 = vmatpush1.msra.mxu0 0.0
      %1415 = vmatprep.mubr.f32.mxu0 0.0
      %1416 = vmatmul.mubr.f32.gmra.mrb[0].mxu0 %v1343
      %v1417 = vpop.f32.mrb[0].mxu0
      %v1418 = vadd.f32 0.0, %v1417
      %v1419 = vpop.f32.mrb[0].mxu0
      %v1420 = vadd.f32 0.0, %v1419
      %1421 = vdwg.mxu0
      %1422 = vmatprep.subr.mxu0 0.0
      %1423 = vmatpush1.msra.mxu0 %v1349
      %1424 = vmatprep.subr.mxu0 0.0
      %1425 = vmatpush1.msra.mxu0 0.0
      %1426 = vmatprep.subr.mxu0 0.0
      %1427 = vmatpush1.msra.mxu0 0.0
      %1428 = vmatprep.subr.mxu0 0.0
      %1429 = vmatpush1.msra.mxu0 0.0
      %1430 = vmatprep.subr.mxu0 0.0
      %1431 = vmatpush1.msra.mxu0 0.0
      %1432 = vmatprep.subr.mxu0 0.0
      %1433 = vmatpush1.msra.mxu0 0.0
      %1434 = vmatprep.subr.mxu0 0.0
      %1435 = vmatpush1.msra.mxu0 0.0
      %1436 = vmatprep.subr.mxu0 0.0
      %1437 = vmatpush1.msra.mxu0 0.0
      %1438 = vmatprep.subr.mxu0 0.0
      %1439 = vmatpush1.msra.mxu0 0.0
      %1440 = vmatprep.subr.mxu0 0.0
      %1441 = vmatpush1.msra.mxu0 0.0
      %1442 = vmatprep.subr.mxu0 0.0
      %1443 = vmatpush1.msra.mxu0 0.0
      %1444 = vmatprep.subr.mxu0 0.0
      %1445 = vmatpush1.msra.mxu0 0.0
      %1446 = vmatprep.subr.mxu0 0.0
      %1447 = vmatpush1.msra.mxu0 0.0
      %1448 = vmatprep.subr.mxu0 0.0
      %1449 = vmatpush1.msra.mxu0 0.0
      %1450 = vmatprep.subr.mxu0 0.0
      %1451 = vmatpush1.msra.mxu0 0.0
      %1452 = vmatprep.subr.mxu0 0.0
      %1453 = vmatpush1.msra.mxu0 0.0
      %1454 = vmatprep.subr.mxu0 0.0
      %1455 = vmatpush1.msra.mxu0 0.0
      %1456 = vmatprep.subr.mxu0 0.0
      %1457 = vmatpush1.msra.mxu0 0.0
      %1458 = vmatprep.subr.mxu0 0.0
      %1459 = vmatpush1.msra.mxu0 0.0
      %1460 = vmatprep.subr.mxu0 0.0
      %1461 = vmatpush1.msra.mxu0 0.0
      %1462 = vmatprep.subr.mxu0 0.0
      %1463 = vmatpush1.msra.mxu0 0.0
      %1464 = vmatprep.subr.mxu0 0.0
      %1465 = vmatpush1.msra.mxu0 0.0
      %1466 = vmatprep.subr.mxu0 0.0
      %1467 = vmatpush1.msra.mxu0 0.0
      %1468 = vmatprep.subr.mxu0 0.0
      %1469 = vmatpush1.msra.mxu0 0.0
      %1470 = vmatprep.subr.mxu0 0.0
      %1471 = vmatpush1.msra.mxu0 0.0
      %1472 = vmatprep.subr.mxu0 0.0
      %1473 = vmatpush1.msra.mxu0 0.0
      %1474 = vmatprep.subr.mxu0 0.0
      %1475 = vmatpush1.msra.mxu0 0.0
      %1476 = vmatprep.subr.mxu0 0.0
      %1477 = vmatpush1.msra.mxu0 0.0
      %1478 = vmatprep.subr.mxu0 0.0
      %1479 = vmatpush1.msra.mxu0 0.0
      %1480 = vmatprep.subr.mxu0 0.0
      %1481 = vmatpush1.msra.mxu0 0.0
      %1482 = vmatprep.subr.mxu0 0.0
      %1483 = vmatpush1.msra.mxu0 0.0
      %1484 = vmatprep.subr.mxu0 0.0
      %1485 = vmatpush1.msra.mxu0 0.0
      %1486 = vmatprep.mubr.f32.mxu0 0.0
      %1487 = vmatmul.mubr.f32.gmra.mrb[0].mxu0 %v1343
      %v1488 = vpop.f32.mrb[0].mxu0
      %v1489 = vadd.f32 0.0, %v1488
      %v1490 = vpop.f32.mrb[0].mxu0
      %1491 = vdwg.mxu0
      %v1492 = vadd.f32 %v1323, %v1418
      %v1493 = vadd.f32 %v1324, %v1420
      %v1494 = vadd.f32 %v1325, %v1489
      %s1495 = scalar_lea.vmem %s1, 56
      %v1496 = vld [vmem:[%s1495] sm:$0xff]
      %v1497 = vld [vmem:[%s326] sm:$0xff]
      %v1498 = vld [vmem:[%s326 + $0x8] sm:$0xf]
      %v1501 = vcombine.high %v1497, %v1497
      %1502 = vrot.lane.b32.xlu0 %v1497, 91
      %v1503 = vpop.permute.xlu0 %1502
      %1504 = vrot.lane.b32.xlu0 %v1501, 91
      %v1505 = vpop.permute.xlu0 %1504
      %1506 = vrot.lane.b32.xlu0 %v1498, 91
      %v1507 = vpop.permute.xlu0 %1506
      %vm1508 = vcmask 744448
      %v1509 = vsel %vm1508, %v1503, %v1505
      %v1510 = vsel %vm1508, %v1505, %v1507
      %v1512 = vsel %vm348, %v1496, 0
      %v1514 = vsel %vm352, %v1509, 0
      %v1516 = vsel %vm352, %v1510, 0
      %v1518 = vsel %vm352, %v1507, 0
      %1520 = vmatprep.subr.mxu0 %v1516
      %1521 = vmatpush1.msra.mxu0 %v1514
      %1522 = vmatprep.subr.mxu0 0.0
      %1523 = vmatpush1.msra.mxu0 0.0
      %1524 = vmatprep.subr.mxu0 0.0
      %1525 = vmatpush1.msra.mxu0 0.0
      %1526 = vmatprep.subr.mxu0 0.0
      %1527 = vmatpush1.msra.mxu0 0.0
      %1528 = vmatprep.subr.mxu0 0.0
      %1529 = vmatpush1.msra.mxu0 0.0
      %1530 = vmatprep.subr.mxu0 0.0
      %1531 = vmatpush1.msra.mxu0 0.0
      %1532 = vmatprep.subr.mxu0 0.0
      %1533 = vmatpush1.msra.mxu0 0.0
      %1534 = vmatprep.subr.mxu0 0.0
      %1535 = vmatpush1.msra.mxu0 0.0
      %1536 = vmatprep.subr.mxu0 0.0
      %1537 = vmatpush1.msra.mxu0 0.0
      %1538 = vmatprep.subr.mxu0 0.0
      %1539 = vmatpush1.msra.mxu0 0.0
      %1540 = vmatprep.subr.mxu0 0.0
      %1541 = vmatpush1.msra.mxu0 0.0
      %1542 = vmatprep.subr.mxu0 0.0
      %1543 = vmatpush1.msra.mxu0 0.0
      %1544 = vmatprep.subr.mxu0 0.0
      %1545 = vmatpush1.msra.mxu0 0.0
      %1546 = vmatprep.subr.mxu0 0.0
      %1547 = vmatpush1.msra.mxu0 0.0
      %1548 = vmatprep.subr.mxu0 0.0
      %1549 = vmatpush1.msra.mxu0 0.0
      %1550 = vmatprep.subr.mxu0 0.0
      %1551 = vmatpush1.msra.mxu0 0.0
      %1552 = vmatprep.subr.mxu0 0.0
      %1553 = vmatpush1.msra.mxu0 0.0
      %1554 = vmatprep.subr.mxu0 0.0
      %1555 = vmatpush1.msra.mxu0 0.0
      %1556 = vmatprep.subr.mxu0 0.0
      %1557 = vmatpush1.msra.mxu0 0.0
      %1558 = vmatprep.subr.mxu0 0.0
      %1559 = vmatpush1.msra.mxu0 0.0
      %1560 = vmatprep.subr.mxu0 0.0
      %1561 = vmatpush1.msra.mxu0 0.0
      %1562 = vmatprep.subr.mxu0 0.0
      %1563 = vmatpush1.msra.mxu0 0.0
      %1564 = vmatprep.subr.mxu0 0.0
      %1565 = vmatpush1.msra.mxu0 0.0
      %1566 = vmatprep.subr.mxu0 0.0
      %1567 = vmatpush1.msra.mxu0 0.0
      %1568 = vmatprep.subr.mxu0 0.0
      %1569 = vmatpush1.msra.mxu0 0.0
      %1570 = vmatprep.subr.mxu0 0.0
      %1571 = vmatpush1.msra.mxu0 0.0
      %1572 = vmatprep.subr.mxu0 0.0
      %1573 = vmatpush1.msra.mxu0 0.0
      %1574 = vmatprep.subr.mxu0 0.0
      %1575 = vmatpush1.msra.mxu0 0.0
      %1576 = vmatprep.subr.mxu0 0.0
      %1577 = vmatpush1.msra.mxu0 0.0
      %1578 = vmatprep.subr.mxu0 0.0
      %1579 = vmatpush1.msra.mxu0 0.0
      %1580 = vmatprep.subr.mxu0 0.0
      %1581 = vmatpush1.msra.mxu0 0.0
      %1582 = vmatprep.subr.mxu0 0.0
      %1583 = vmatpush1.msra.mxu0 0.0
      %1584 = vmatprep.mubr.f32.mxu0 0.0
      %1585 = vmatmul.mubr.f32.gmra.mrb[0].mxu0 %v1512
      %v1586 = vpop.f32.mrb[0].mxu0
      %v1587 = vadd.f32 0.0, %v1586
      %v1588 = vpop.f32.mrb[0].mxu0
      %v1589 = vadd.f32 0.0, %v1588
      %1590 = vdwg.mxu0
      %1591 = vmatprep.subr.mxu0 0.0
      %1592 = vmatpush1.msra.mxu0 %v1518
      %1593 = vmatprep.subr.mxu0 0.0
      %1594 = vmatpush1.msra.mxu0 0.0
      %1595 = vmatprep.subr.mxu0 0.0
      %1596 = vmatpush1.msra.mxu0 0.0
      %1597 = vmatprep.subr.mxu0 0.0
      %1598 = vmatpush1.msra.mxu0 0.0
      %1599 = vmatprep.subr.mxu0 0.0
      %1600 = vmatpush1.msra.mxu0 0.0
      %1601 = vmatprep.subr.mxu0 0.0
      %1602 = vmatpush1.msra.mxu0 0.0
      %1603 = vmatprep.subr.mxu0 0.0
      %1604 = vmatpush1.msra.mxu0 0.0
      %1605 = vmatprep.subr.mxu0 0.0
      %1606 = vmatpush1.msra.mxu0 0.0
      %1607 = vmatprep.subr.mxu0 0.0
      %1608 = vmatpush1.msra.mxu0 0.0
      %1609 = vmatprep.subr.mxu0 0.0
      %1610 = vmatpush1.msra.mxu0 0.0
      %1611 = vmatprep.subr.mxu0 0.0
      %1612 = vmatpush1.msra.mxu0 0.0
      %1613 = vmatprep.subr.mxu0 0.0
      %1614 = vmatpush1.msra.mxu0 0.0
      %1615 = vmatprep.subr.mxu0 0.0
      %1616 = vmatpush1.msra.mxu0 0.0
      %1617 = vmatprep.subr.mxu0 0.0
      %1618 = vmatpush1.msra.mxu0 0.0
      %1619 = vmatprep.subr.mxu0 0.0
      %1620 = vmatpush1.msra.mxu0 0.0
      %1621 = vmatprep.subr.mxu0 0.0
      %1622 = vmatpush1.msra.mxu0 0.0
      %1623 = vmatprep.subr.mxu0 0.0
      %1624 = vmatpush1.msra.mxu0 0.0
      %1625 = vmatprep.subr.mxu0 0.0
      %1626 = vmatpush1.msra.mxu0 0.0
      %1627 = vmatprep.subr.mxu0 0.0
      %1628 = vmatpush1.msra.mxu0 0.0
      %1629 = vmatprep.subr.mxu0 0.0
      %1630 = vmatpush1.msra.mxu0 0.0
      %1631 = vmatprep.subr.mxu0 0.0
      %1632 = vmatpush1.msra.mxu0 0.0
      %1633 = vmatprep.subr.mxu0 0.0
      %1634 = vmatpush1.msra.mxu0 0.0
      %1635 = vmatprep.subr.mxu0 0.0
      %1636 = vmatpush1.msra.mxu0 0.0
      %1637 = vmatprep.subr.mxu0 0.0
      %1638 = vmatpush1.msra.mxu0 0.0
      %1639 = vmatprep.subr.mxu0 0.0
      %1640 = vmatpush1.msra.mxu0 0.0
      %1641 = vmatprep.subr.mxu0 0.0
      %1642 = vmatpush1.msra.mxu0 0.0
      %1643 = vmatprep.subr.mxu0 0.0
      %1644 = vmatpush1.msra.mxu0 0.0
      %1645 = vmatprep.subr.mxu0 0.0
      %1646 = vmatpush1.msra.mxu0 0.0
      %1647 = vmatprep.subr.mxu0 0.0
      %1648 = vmatpush1.msra.mxu0 0.0
      %1649 = vmatprep.subr.mxu0 0.0
      %1650 = vmatpush1.msra.mxu0 0.0
      %1651 = vmatprep.subr.mxu0 0.0
      %1652 = vmatpush1.msra.mxu0 0.0
      %1653 = vmatprep.subr.mxu0 0.0
      %1654 = vmatpush1.msra.mxu0 0.0
      %1655 = vmatprep.mubr.f32.mxu0 0.0
      %1656 = vmatmul.mubr.f32.gmra.mrb[0].mxu0 %v1512
      %v1657 = vpop.f32.mrb[0].mxu0
      %v1658 = vadd.f32 0.0, %v1657
      %v1659 = vpop.f32.mrb[0].mxu0
      %1660 = vdwg.mxu0
      %v1661 = vadd.f32 %v1492, %v1587
      %v1662 = vadd.f32 %v1493, %v1589
      %v1663 = vadd.f32 %v1494, %v1658
      %s1664 = scalar_lea.vmem %s1, 64
      %v1665 = vld [vmem:[%s1664] sm:$0xff]
      %v1666 = vld [vmem:[%s326] sm:$0xff]
      %v1667 = vld [vmem:[%s326 + $0x8] sm:$0xf]
      %v1670 = vcombine.high %v1666, %v1666
      %1671 = vrot.lane.b32.xlu0 %v1666, 90
      %v1672 = vpop.permute.xlu0 %1671
      %1673 = vrot.lane.b32.xlu0 %v1670, 90
      %v1674 = vpop.permute.xlu0 %1673
      %1675 = vrot.lane.b32.xlu0 %v1667, 90
      %v1676 = vpop.permute.xlu0 %1675
      %vm1677 = vcmask 736256
      %v1678 = vsel %vm1677, %v1672, %v1674
      %v1679 = vsel %vm1677, %v1674, %v1676
      %v1681 = vsel %vm348, %v1665, 0
      %v1683 = vsel %vm352, %v1678, 0
      %v1685 = vsel %vm352, %v1679, 0
      %v1687 = vsel %vm352, %v1676, 0
      %1689 = vmatprep.subr.mxu0 %v1685
      %1690 = vmatpush1.msra.mxu0 %v1683
      %1691 = vmatprep.subr.mxu0 0.0
      %1692 = vmatpush1.msra.mxu0 0.0
      %1693 = vmatprep.subr.mxu0 0.0
      %1694 = vmatpush1.msra.mxu0 0.0
      %1695 = vmatprep.subr.mxu0 0.0
      %1696 = vmatpush1.msra.mxu0 0.0
      %1697 = vmatprep.subr.mxu0 0.0
      %1698 = vmatpush1.msra.mxu0 0.0
      %1699 = vmatprep.subr.mxu0 0.0
      %1700 = vmatpush1.msra.mxu0 0.0
      %1701 = vmatprep.subr.mxu0 0.0
      %1702 = vmatpush1.msra.mxu0 0.0
      %1703 = vmatprep.subr.mxu0 0.0
      %1704 = vmatpush1.msra.mxu0 0.0
      %1705 = vmatprep.subr.mxu0 0.0
      %1706 = vmatpush1.msra.mxu0 0.0
      %1707 = vmatprep.subr.mxu0 0.0
      %1708 = vmatpush1.msra.mxu0 0.0
      %1709 = vmatprep.subr.mxu0 0.0
      %1710 = vmatpush1.msra.mxu0 0.0
      %1711 = vmatprep.subr.mxu0 0.0
      %1712 = vmatpush1.msra.mxu0 0.0
      %1713 = vmatprep.subr.mxu0 0.0
      %1714 = vmatpush1.msra.mxu0 0.0
      %1715 = vmatprep.subr.mxu0 0.0
      %1716 = vmatpush1.msra.mxu0 0.0
      %1717 = vmatprep.subr.mxu0 0.0
      %1718 = vmatpush1.msra.mxu0 0.0
      %1719 = vmatprep.subr.mxu0 0.0
      %1720 = vmatpush1.msra.mxu0 0.0
      %1721 = vmatprep.subr.mxu0 0.0
      %1722 = vmatpush1.msra.mxu0 0.0
      %1723 = vmatprep.subr.mxu0 0.0
      %1724 = vmatpush1.msra.mxu0 0.0
      %1725 = vmatprep.subr.mxu0 0.0
      %1726 = vmatpush1.msra.mxu0 0.0
      %1727 = vmatprep.subr.mxu0 0.0
      %1728 = vmatpush1.msra.mxu0 0.0
      %1729 = vmatprep.subr.mxu0 0.0
      %1730 = vmatpush1.msra.mxu0 0.0
      %1731 = vmatprep.subr.mxu0 0.0
      %1732 = vmatpush1.msra.mxu0 0.0
      %1733 = vmatprep.subr.mxu0 0.0
      %1734 = vmatpush1.msra.mxu0 0.0
      %1735 = vmatprep.subr.mxu0 0.0
      %1736 = vmatpush1.msra.mxu0 0.0
      %1737 = vmatprep.subr.mxu0 0.0
      %1738 = vmatpush1.msra.mxu0 0.0
      %1739 = vmatprep.subr.mxu0 0.0
      %1740 = vmatpush1.msra.mxu0 0.0
      %1741 = vmatprep.subr.mxu0 0.0
      %1742 = vmatpush1.msra.mxu0 0.0
      %1743 = vmatprep.subr.mxu0 0.0
      %1744 = vmatpush1.msra.mxu0 0.0
      %1745 = vmatprep.subr.mxu0 0.0
      %1746 = vmatpush1.msra.mxu0 0.0
      %1747 = vmatprep.subr.mxu0 0.0
      %1748 = vmatpush1.msra.mxu0 0.0
      %1749 = vmatprep.subr.mxu0 0.0
      %1750 = vmatpush1.msra.mxu0 0.0
      %1751 = vmatprep.subr.mxu0 0.0
      %1752 = vmatpush1.msra.mxu0 0.0
      %1753 = vmatprep.mubr.f32.mxu0 0.0
      %1754 = vmatmul.mubr.f32.gmra.mrb[0].mxu0 %v1681
      %v1755 = vpop.f32.mrb[0].mxu0
      %v1756 = vadd.f32 0.0, %v1755
      %v1757 = vpop.f32.mrb[0].mxu0
      %v1758 = vadd.f32 0.0, %v1757
      %1759 = vdwg.mxu0
      %1760 = vmatprep.subr.mxu0 0.0
      %1761 = vmatpush1.msra.mxu0 %v1687
      %1762 = vmatprep.subr.mxu0 0.0
      %1763 = vmatpush1.msra.mxu0 0.0
      %1764 = vmatprep.subr.mxu0 0.0
      %1765 = vmatpush1.msra.mxu0 0.0
      %1766 = vmatprep.subr.mxu0 0.0
      %1767 = vmatpush1.msra.mxu0 0.0
      %1768 = vmatprep.subr.mxu0 0.0
      %1769 = vmatpush1.msra.mxu0 0.0
      %1770 = vmatprep.subr.mxu0 0.0
      %1771 = vmatpush1.msra.mxu0 0.0
      %1772 = vmatprep.subr.mxu0 0.0
      %1773 = vmatpush1.msra.mxu0 0.0
      %1774 = vmatprep.subr.mxu0 0.0
      %1775 = vmatpush1.msra.mxu0 0.0
      %1776 = vmatprep.subr.mxu0 0.0
      %1777 = vmatpush1.msra.mxu0 0.0
      %1778 = vmatprep.subr.mxu0 0.0
      %1779 = vmatpush1.msra.mxu0 0.0
      %1780 = vmatprep.subr.mxu0 0.0
      %1781 = vmatpush1.msra.mxu0 0.0
      %1782 = vmatprep.subr.mxu0 0.0
      %1783 = vmatpush1.msra.mxu0 0.0
      %1784 = vmatprep.subr.mxu0 0.0
      %1785 = vmatpush1.msra.mxu0 0.0
      %1786 = vmatprep.subr.mxu0 0.0
      %1787 = vmatpush1.msra.mxu0 0.0
      %1788 = vmatprep.subr.mxu0 0.0
      %1789 = vmatpush1.msra.mxu0 0.0
      %1790 = vmatprep.subr.mxu0 0.0
      %1791 = vmatpush1.msra.mxu0 0.0
      %1792 = vmatprep.subr.mxu0 0.0
      %1793 = vmatpush1.msra.mxu0 0.0
      %1794 = vmatprep.subr.mxu0 0.0
      %1795 = vmatpush1.msra.mxu0 0.0
      %1796 = vmatprep.subr.mxu0 0.0
      %1797 = vmatpush1.msra.mxu0 0.0
      %1798 = vmatprep.subr.mxu0 0.0
      %1799 = vmatpush1.msra.mxu0 0.0
      %1800 = vmatprep.subr.mxu0 0.0
      %1801 = vmatpush1.msra.mxu0 0.0
      %1802 = vmatprep.subr.mxu0 0.0
      %1803 = vmatpush1.msra.mxu0 0.0
      %1804 = vmatprep.subr.mxu0 0.0
      %1805 = vmatpush1.msra.mxu0 0.0
      %1806 = vmatprep.subr.mxu0 0.0
      %1807 = vmatpush1.msra.mxu0 0.0
      %1808 = vmatprep.subr.mxu0 0.0
      %1809 = vmatpush1.msra.mxu0 0.0
      %1810 = vmatprep.subr.mxu0 0.0
      %1811 = vmatpush1.msra.mxu0 0.0
      %1812 = vmatprep.subr.mxu0 0.0
      %1813 = vmatpush1.msra.mxu0 0.0
      %1814 = vmatprep.subr.mxu0 0.0
      %1815 = vmatpush1.msra.mxu0 0.0
      %1816 = vmatprep.subr.mxu0 0.0
      %1817 = vmatpush1.msra.mxu0 0.0
      %1818 = vmatprep.subr.mxu0 0.0
      %1819 = vmatpush1.msra.mxu0 0.0
      %1820 = vmatprep.subr.mxu0 0.0
      %1821 = vmatpush1.msra.mxu0 0.0
      %1822 = vmatprep.subr.mxu0 0.0
      %1823 = vmatpush1.msra.mxu0 0.0
      %1824 = vmatprep.mubr.f32.mxu0 0.0
      %1825 = vmatmul.mubr.f32.gmra.mrb[0].mxu0 %v1681
      %v1826 = vpop.f32.mrb[0].mxu0
      %v1827 = vadd.f32 0.0, %v1826
      %v1828 = vpop.f32.mrb[0].mxu0
      %1829 = vdwg.mxu0
      %v1830 = vadd.f32 %v1661, %v1756
      %v1831 = vadd.f32 %v1662, %v1758
      %v1832 = vadd.f32 %v1663, %v1827
      %v1833 = vld [vmem:[%s2] sm:$0xff]
      %1835 = vset.pattern.permute.xlu0 0
      %1836 = vperm.xlu0 %1835, %v1833
      %v1837 = vpop.permute.xlu0 %1836
      %v1839 = vadd.f32 %v1830, %v1837
      %v1840 = vadd.f32 %v1831, %v1837
      %v1841 = vadd.f32 %v1832, %v1837
      %v1842 = vmax.f32 %v1839, 0.0
      %v1843 = vmax.f32 %v1840, 0.0
      %v1844 = vmax.f32 %v1841, 0.0
      %v1845 = vld [vmem:[%s7] sm:$0x7]
      %v1847 = vlaneseq
      %v1848 = vshrl.u32 %v1847, 7
      %v1849 = vsub.s32 0, %v1848
      %v1850 = vrot.slane %v1845, %v1849
      %v1851 = vlaneseq
      %v1852 = vshrl.u32 %v1851, 7
      %v1853 = vsub.s32 1, %v1852
      %v1854 = vrot.slane %v1845, %v1853
      %v1855 = vlaneseq
      %v1856 = vshrl.u32 %v1855, 7
      %v1857 = vsub.s32 2, %v1856
      %v1858 = vrot.slane %v1845, %v1857
      %v1862 = vmul.f32 %v1842, %v1850
      %v1863 = vmul.f32 %v1843, %v1854
      %v1864 = vmul.f32 %v1844, %v1858
      %1865 = vst [vmem:[#allocation2] sm:$0xff] 0.0
      %1866 = vst [vmem:[#allocation2 + $0x8] sm:$0xff] 0.0
      %vm1867 = vcmask 556032
      %1868 = vst.msk [vmem:[#allocation2 + $0x10] sm:$0xff] %vm1867, 0.0
      %1872 = vrot.lane.b32.xlu0 %v1862, 19
      %v1873 = vpop.permute.xlu0 %1872
      %1874 = vrot.lane.b32.xlu0 %v1863, 19
      %v1875 = vpop.permute.xlu0 %1874
      %1876 = vrot.lane.b32.xlu0 %v1864, 19
      %v1877 = vpop.permute.xlu0 %1876
      %vm1878 = vcmask 154624
      %v1879 = vsel %vm1878, %v1873, %v1875
      %v1880 = vsel %vm1878, %v1875, %v1877
      %vm1884 = vcmask 1047704
      %1885 = vst.msk [vmem:[#allocation2] sm:$0xff] %vm1884, %v1873
      %1886 = vst [vmem:[#allocation2 + $0x8] sm:$0xff] %v1879
      %vm1887 = vcmask 400384
      %1888 = vst.msk [vmem:[#allocation2 + $0x10] sm:$0xff] %vm1887, %v1880
      %v1889 = vld [vmem:[%s3] sm:$0xff]
      %v1890 = vld [vmem:[#allocation2] sm:$0xff]
      %v1891 = vld [vmem:[#allocation2 + $0x8] sm:$0xff]
      %v1892 = vld [vmem:[#allocation2 + $0x10] sm:$0xff]
      %s1893 = scalar_lea.vmem %s3, 8
      %v1894 = vld [vmem:[%s1893] sm:$0xff]
      %1898 = vrot.lane.b32.xlu0 %v1890, 127
      %v1899 = vpop.permute.xlu0 %1898
      %1900 = vrot.lane.b32.xlu0 %v1891, 127
      %v1901 = vpop.permute.xlu0 %1900
      %1902 = vrot.lane.b32.xlu0 %v1892, 127
      %v1903 = vpop.permute.xlu0 %1902
      %v1904 = vsel %vm345, %v1899, %v1901
      %v1905 = vsel %vm345, %v1901, %v1903
      %vm1909 = vcmask 64512
      %v1911 = vsel %vm1909, %v1894, 0
      %1913 = vmatprep.subr.mxu0 %v1905
      %1914 = vmatpush1.msra.mxu0 %v1904
      %1915 = vmatprep.subr.mxu0 0.0
      %1916 = vmatpush1.msra.mxu0 0.0
      %1917 = vmatprep.subr.mxu0 0.0
      %1918 = vmatpush1.msra.mxu0 0.0
      %1919 = vmatprep.subr.mxu0 0.0
      %1920 = vmatpush1.msra.mxu0 0.0
      %1921 = vmatprep.subr.mxu0 0.0
      %1922 = vmatpush1.msra.mxu0 0.0
      %1923 = vmatprep.subr.mxu0 0.0
      %1924 = vmatpush1.msra.mxu0 0.0
      %1925 = vmatprep.subr.mxu0 0.0
      %1926 = vmatpush1.msra.mxu0 0.0
      %1927 = vmatprep.subr.mxu0 0.0
      %1928 = vmatpush1.msra.mxu0 0.0
      %1929 = vmatprep.subr.mxu0 0.0
      %1930 = vmatpush1.msra.mxu0 0.0
      %1931 = vmatprep.subr.mxu0 0.0
      %1932 = vmatpush1.msra.mxu0 0.0
      %1933 = vmatprep.subr.mxu0 0.0
      %1934 = vmatpush1.msra.mxu0 0.0
      %1935 = vmatprep.subr.mxu0 0.0
      %1936 = vmatpush1.msra.mxu0 0.0
      %1937 = vmatprep.subr.mxu0 0.0
      %1938 = vmatpush1.msra.mxu0 0.0
      %1939 = vmatprep.subr.mxu0 0.0
      %1940 = vmatpush1.msra.mxu0 0.0
      %1941 = vmatprep.subr.mxu0 0.0
      %1942 = vmatpush1.msra.mxu0 0.0
      %1943 = vmatprep.subr.mxu0 0.0
      %1944 = vmatpush1.msra.mxu0 0.0
      %1945 = vmatprep.subr.mxu0 0.0
      %1946 = vmatpush1.msra.mxu0 0.0
      %1947 = vmatprep.subr.mxu0 0.0
      %1948 = vmatpush1.msra.mxu0 0.0
      %1949 = vmatprep.subr.mxu0 0.0
      %1950 = vmatpush1.msra.mxu0 0.0
      %1951 = vmatprep.subr.mxu0 0.0
      %1952 = vmatpush1.msra.mxu0 0.0
      %1953 = vmatprep.subr.mxu0 0.0
      %1954 = vmatpush1.msra.mxu0 0.0
      %1955 = vmatprep.subr.mxu0 0.0
      %1956 = vmatpush1.msra.mxu0 0.0
      %1957 = vmatprep.subr.mxu0 0.0
      %1958 = vmatpush1.msra.mxu0 0.0
      %1959 = vmatprep.subr.mxu0 0.0
      %1960 = vmatpush1.msra.mxu0 0.0
      %1961 = vmatprep.subr.mxu0 0.0
      %1962 = vmatpush1.msra.mxu0 0.0
      %1963 = vmatprep.subr.mxu0 0.0
      %1964 = vmatpush1.msra.mxu0 0.0
      %1965 = vmatprep.subr.mxu0 0.0
      %1966 = vmatpush1.msra.mxu0 0.0
      %1967 = vmatprep.subr.mxu0 0.0
      %1968 = vmatpush1.msra.mxu0 0.0
      %1969 = vmatprep.subr.mxu0 0.0
      %1970 = vmatpush1.msra.mxu0 0.0
      %1971 = vmatprep.subr.mxu0 0.0
      %1972 = vmatpush1.msra.mxu0 0.0
      %1973 = vmatprep.subr.mxu0 0.0
      %1974 = vmatpush1.msra.mxu0 0.0
      %1975 = vmatprep.subr.mxu0 0.0
      %1976 = vmatpush1.msra.mxu0 0.0
      %1977 = vmatprep.mubr.f32.mxu0 0.0
      %1978 = vmatmul.mubr.f32.gmra.mrb[0].mxu0 %v1911
      %v1979 = vpop.f32.mrb[0].mxu0
      %v1980 = vadd.f32 0.0, %v1979
      %v1981 = vpop.f32.mrb[0].mxu0
      %v1982 = vadd.f32 0.0, %v1981
      %1983 = vdwg.mxu0
      %1984 = vmatprep.subr.mxu0 0.0
      %1985 = vmatpush1.msra.mxu0 %v1903
      %1986 = vmatprep.subr.mxu0 0.0
      %1987 = vmatpush1.msra.mxu0 0.0
      %1988 = vmatprep.subr.mxu0 0.0
      %1989 = vmatpush1.msra.mxu0 0.0
      %1990 = vmatprep.subr.mxu0 0.0
      %1991 = vmatpush1.msra.mxu0 0.0
      %1992 = vmatprep.subr.mxu0 0.0
      %1993 = vmatpush1.msra.mxu0 0.0
      %1994 = vmatprep.subr.mxu0 0.0
      %1995 = vmatpush1.msra.mxu0 0.0
      %1996 = vmatprep.subr.mxu0 0.0
      %1997 = vmatpush1.msra.mxu0 0.0
      %1998 = vmatprep.subr.mxu0 0.0
      %1999 = vmatpush1.msra.mxu0 0.0
      %2000 = vmatprep.subr.mxu0 0.0
      %2001 = vmatpush1.msra.mxu0 0.0
      %2002 = vmatprep.subr.mxu0 0.0
      %2003 = vmatpush1.msra.mxu0 0.0
      %2004 = vmatprep.subr.mxu0 0.0
      %2005 = vmatpush1.msra.mxu0 0.0
      %2006 = vmatprep.subr.mxu0 0.0
      %2007 = vmatpush1.msra.mxu0 0.0
      %2008 = vmatprep.subr.mxu0 0.0
      %2009 = vmatpush1.msra.mxu0 0.0
      %2010 = vmatprep.subr.mxu0 0.0
      %2011 = vmatpush1.msra.mxu0 0.0
      %2012 = vmatprep.subr.mxu0 0.0
      %2013 = vmatpush1.msra.mxu0 0.0
      %2014 = vmatprep.subr.mxu0 0.0
      %2015 = vmatpush1.msra.mxu0 0.0
      %2016 = vmatprep.subr.mxu0 0.0
      %2017 = vmatpush1.msra.mxu0 0.0
      %2018 = vmatprep.subr.mxu0 0.0
      %2019 = vmatpush1.msra.mxu0 0.0
      %2020 = vmatprep.subr.mxu0 0.0
      %2021 = vmatpush1.msra.mxu0 0.0
      %2022 = vmatprep.subr.mxu0 0.0
      %2023 = vmatpush1.msra.mxu0 0.0
      %2024 = vmatprep.subr.mxu0 0.0
      %2025 = vmatpush1.msra.mxu0 0.0
      %2026 = vmatprep.subr.mxu0 0.0
      %2027 = vmatpush1.msra.mxu0 0.0
      %2028 = vmatprep.subr.mxu0 0.0
      %2029 = vmatpush1.msra.mxu0 0.0
      %2030 = vmatprep.subr.mxu0 0.0
      %2031 = vmatpush1.msra.mxu0 0.0
      %2032 = vmatprep.subr.mxu0 0.0
      %2033 = vmatpush1.msra.mxu0 0.0
      %2034 = vmatprep.subr.mxu0 0.0
      %2035 = vmatpush1.msra.mxu0 0.0
      %2036 = vmatprep.subr.mxu0 0.0
      %2037 = vmatpush1.msra.mxu0 0.0
      %2038 = vmatprep.subr.mxu0 0.0
      %2039 = vmatpush1.msra.mxu0 0.0
      %2040 = vmatprep.subr.mxu0 0.0
      %2041 = vmatpush1.msra.mxu0 0.0
      %2042 = vmatprep.subr.mxu0 0.0
      %2043 = vmatpush1.msra.mxu0 0.0
      %2044 = vmatprep.subr.mxu0 0.0
      %2045 = vmatpush1.msra.mxu0 0.0
      %2046 = vmatprep.subr.mxu0 0.0
      %2047 = vmatpush1.msra.mxu0 0.0
      %2048 = vmatprep.mubr.f32.mxu0 0.0
      %2049 = vmatmul.mubr.f32.gmra.mrb[0].mxu0 %v1911
      %v2050 = vpop.f32.mrb[0].mxu0
      %v2051 = vadd.f32 0.0, %v2050
      %v2052 = vpop.f32.mrb[0].mxu0
      %2053 = vdwg.mxu0
      %v2055 = vsel %vm1909, %v1889, 0
      %2057 = vmatprep.subr.mxu0 %v1891
      %2058 = vmatpush1.msra.mxu0 %v1890
      %2059 = vmatprep.subr.mxu0 0.0
      %2060 = vmatpush1.msra.mxu0 0.0
      %2061 = vmatprep.subr.mxu0 0.0
      %2062 = vmatpush1.msra.mxu0 0.0
      %2063 = vmatprep.subr.mxu0 0.0
      %2064 = vmatpush1.msra.mxu0 0.0
      %2065 = vmatprep.subr.mxu0 0.0
      %2066 = vmatpush1.msra.mxu0 0.0
      %2067 = vmatprep.subr.mxu0 0.0
      %2068 = vmatpush1.msra.mxu0 0.0
      %2069 = vmatprep.subr.mxu0 0.0
      %2070 = vmatpush1.msra.mxu0 0.0
      %2071 = vmatprep.subr.mxu0 0.0
      %2072 = vmatpush1.msra.mxu0 0.0
      %2073 = vmatprep.subr.mxu0 0.0
      %2074 = vmatpush1.msra.mxu0 0.0
      %2075 = vmatprep.subr.mxu0 0.0
      %2076 = vmatpush1.msra.mxu0 0.0
      %2077 = vmatprep.subr.mxu0 0.0
      %2078 = vmatpush1.msra.mxu0 0.0
      %2079 = vmatprep.subr.mxu0 0.0
      %2080 = vmatpush1.msra.mxu0 0.0
      %2081 = vmatprep.subr.mxu0 0.0
      %2082 = vmatpush1.msra.mxu0 0.0
      %2083 = vmatprep.subr.mxu0 0.0
      %2084 = vmatpush1.msra.mxu0 0.0
      %2085 = vmatprep.subr.mxu0 0.0
      %2086 = vmatpush1.msra.mxu0 0.0
      %2087 = vmatprep.subr.mxu0 0.0
      %2088 = vmatpush1.msra.mxu0 0.0
      %2089 = vmatprep.subr.mxu0 0.0
      %2090 = vmatpush1.msra.mxu0 0.0
      %2091 = vmatprep.subr.mxu0 0.0
      %2092 = vmatpush1.msra.mxu0 0.0
      %2093 = vmatprep.subr.mxu0 0.0
      %2094 = vmatpush1.msra.mxu0 0.0
      %2095 = vmatprep.subr.mxu0 0.0
      %2096 = vmatpush1.msra.mxu0 0.0
      %2097 = vmatprep.subr.mxu0 0.0
      %2098 = vmatpush1.msra.mxu0 0.0
      %2099 = vmatprep.subr.mxu0 0.0
      %2100 = vmatpush1.msra.mxu0 0.0
      %2101 = vmatprep.subr.mxu0 0.0
      %2102 = vmatpush1.msra.mxu0 0.0
      %2103 = vmatprep.subr.mxu0 0.0
      %2104 = vmatpush1.msra.mxu0 0.0
      %2105 = vmatprep.subr.mxu0 0.0
      %2106 = vmatpush1.msra.mxu0 0.0
      %2107 = vmatprep.subr.mxu0 0.0
      %2108 = vmatpush1.msra.mxu0 0.0
      %2109 = vmatprep.subr.mxu0 0.0
      %2110 = vmatpush1.msra.mxu0 0.0
      %2111 = vmatprep.subr.mxu0 0.0
      %2112 = vmatpush1.msra.mxu0 0.0
      %2113 = vmatprep.subr.mxu0 0.0
      %2114 = vmatpush1.msra.mxu0 0.0
      %2115 = vmatprep.subr.mxu0 0.0
      %2116 = vmatpush1.msra.mxu0 0.0
      %2117 = vmatprep.subr.mxu0 0.0
      %2118 = vmatpush1.msra.mxu0 0.0
      %2119 = vmatprep.subr.mxu0 0.0
      %2120 = vmatpush1.msra.mxu0 0.0
      %2121 = vmatprep.mubr.f32.mxu0 0.0
      %2122 = vmatmul.mubr.f32.gmra.mrb[0].mxu0 %v2055
      %v2123 = vpop.f32.mrb[0].mxu0
      %v2124 = vadd.f32 %v1980, %v2123
      %v2125 = vpop.f32.mrb[0].mxu0
      %v2126 = vadd.f32 %v1982, %v2125
      %2127 = vdwg.mxu0
      %2128 = vmatprep.subr.mxu0 0.0
      %2129 = vmatpush1.msra.mxu0 %v1892
      %2130 = vmatprep.subr.mxu0 0.0
      %2131 = vmatpush1.msra.mxu0 0.0
      %2132 = vmatprep.subr.mxu0 0.0
      %2133 = vmatpush1.msra.mxu0 0.0
      %2134 = vmatprep.subr.mxu0 0.0
      %2135 = vmatpush1.msra.mxu0 0.0
      %2136 = vmatprep.subr.mxu0 0.0
      %2137 = vmatpush1.msra.mxu0 0.0
      %2138 = vmatprep.subr.mxu0 0.0
      %2139 = vmatpush1.msra.mxu0 0.0
      %2140 = vmatprep.subr.mxu0 0.0
      %2141 = vmatpush1.msra.mxu0 0.0
      %2142 = vmatprep.subr.mxu0 0.0
      %2143 = vmatpush1.msra.mxu0 0.0
      %2144 = vmatprep.subr.mxu0 0.0
      %2145 = vmatpush1.msra.mxu0 0.0
      %2146 = vmatprep.subr.mxu0 0.0
      %2147 = vmatpush1.msra.mxu0 0.0
      %2148 = vmatprep.subr.mxu0 0.0
      %2149 = vmatpush1.msra.mxu0 0.0
      %2150 = vmatprep.subr.mxu0 0.0
      %2151 = vmatpush1.msra.mxu0 0.0
      %2152 = vmatprep.subr.mxu0 0.0
      %2153 = vmatpush1.msra.mxu0 0.0
      %2154 = vmatprep.subr.mxu0 0.0
      %2155 = vmatpush1.msra.mxu0 0.0
      %2156 = vmatprep.subr.mxu0 0.0
      %2157 = vmatpush1.msra.mxu0 0.0
      %2158 = vmatprep.subr.mxu0 0.0
      %2159 = vmatpush1.msra.mxu0 0.0
      %2160 = vmatprep.subr.mxu0 0.0
      %2161 = vmatpush1.msra.mxu0 0.0
      %2162 = vmatprep.subr.mxu0 0.0
      %2163 = vmatpush1.msra.mxu0 0.0
      %2164 = vmatprep.subr.mxu0 0.0
      %2165 = vmatpush1.msra.mxu0 0.0
      %2166 = vmatprep.subr.mxu0 0.0
      %2167 = vmatpush1.msra.mxu0 0.0
      %2168 = vmatprep.subr.mxu0 0.0
      %2169 = vmatpush1.msra.mxu0 0.0
      %2170 = vmatprep.subr.mxu0 0.0
      %2171 = vmatpush1.msra.mxu0 0.0
      %2172 = vmatprep.subr.mxu0 0.0
      %2173 = vmatpush1.msra.mxu0 0.0
      %2174 = vmatprep.subr.mxu0 0.0
      %2175 = vmatpush1.msra.mxu0 0.0
      %2176 = vmatprep.subr.mxu0 0.0
      %2177 = vmatpush1.msra.mxu0 0.0
      %2178 = vmatprep.subr.mxu0 0.0
      %2179 = vmatpush1.msra.mxu0 0.0
      %2180 = vmatprep.subr.mxu0 0.0
      %2181 = vmatpush1.msra.mxu0 0.0
      %2182 = vmatprep.subr.mxu0 0.0
      %2183 = vmatpush1.msra.mxu0 0.0
      %2184 = vmatprep.subr.mxu0 0.0
      %2185 = vmatpush1.msra.mxu0 0.0
      %2186 = vmatprep.subr.mxu0 0.0
      %2187 = vmatpush1.msra.mxu0 0.0
      %2188 = vmatprep.subr.mxu0 0.0
      %2189 = vmatpush1.msra.mxu0 0.0
      %2190 = vmatprep.subr.mxu0 0.0
      %2191 = vmatpush1.msra.mxu0 0.0
      %2192 = vmatprep.mubr.f32.mxu0 0.0
      %2193 = vmatmul.mubr.f32.gmra.mrb[0].mxu0 %v2055
      %v2194 = vpop.f32.mrb[0].mxu0
      %v2195 = vadd.f32 %v2051, %v2194
      %v2196 = vpop.f32.mrb[0].mxu0
      %2197 = vdwg.mxu0
      %s2198 = scalar_lea.vmem %s3, 16
      %v2199 = vld [vmem:[%s2198] sm:$0xff]
      %2200 = vrot.lane.b32.xlu0 %v1890, 126
      %v2201 = vpop.permute.xlu0 %2200
      %2202 = vrot.lane.b32.xlu0 %v1891, 126
      %v2203 = vpop.permute.xlu0 %2202
      %2204 = vrot.lane.b32.xlu0 %v1892, 126
      %v2205 = vpop.permute.xlu0 %2204
      %v2206 = vsel %vm663, %v2201, %v2203
      %v2207 = vsel %vm663, %v2203, %v2205
      %v2212 = vsel %vm1909, %v2199, 0
      %2214 = vmatprep.subr.mxu0 %v2207
      %2215 = vmatpush1.msra.mxu0 %v2206
      %2216 = vmatprep.subr.mxu0 0.0
      %2217 = vmatpush1.msra.mxu0 0.0
      %2218 = vmatprep.subr.mxu0 0.0
      %2219 = vmatpush1.msra.mxu0 0.0
      %2220 = vmatprep.subr.mxu0 0.0
      %2221 = vmatpush1.msra.mxu0 0.0
      %2222 = vmatprep.subr.mxu0 0.0
      %2223 = vmatpush1.msra.mxu0 0.0
      %2224 = vmatprep.subr.mxu0 0.0
      %2225 = vmatpush1.msra.mxu0 0.0
      %2226 = vmatprep.subr.mxu0 0.0
      %2227 = vmatpush1.msra.mxu0 0.0
      %2228 = vmatprep.subr.mxu0 0.0
      %2229 = vmatpush1.msra.mxu0 0.0
      %2230 = vmatprep.subr.mxu0 0.0
      %2231 = vmatpush1.msra.mxu0 0.0
      %2232 = vmatprep.subr.mxu0 0.0
      %2233 = vmatpush1.msra.mxu0 0.0
      %2234 = vmatprep.subr.mxu0 0.0
      %2235 = vmatpush1.msra.mxu0 0.0
      %2236 = vmatprep.subr.mxu0 0.0
      %2237 = vmatpush1.msra.mxu0 0.0
      %2238 = vmatprep.subr.mxu0 0.0
      %2239 = vmatpush1.msra.mxu0 0.0
      %2240 = vmatprep.subr.mxu0 0.0
      %2241 = vmatpush1.msra.mxu0 0.0
      %2242 = vmatprep.subr.mxu0 0.0
      %2243 = vmatpush1.msra.mxu0 0.0
      %2244 = vmatprep.subr.mxu0 0.0
      %2245 = vmatpush1.msra.mxu0 0.0
      %2246 = vmatprep.subr.mxu0 0.0
      %2247 = vmatpush1.msra.mxu0 0.0
      %2248 = vmatprep.subr.mxu0 0.0
      %2249 = vmatpush1.msra.mxu0 0.0
      %2250 = vmatprep.subr.mxu0 0.0
      %2251 = vmatpush1.msra.mxu0 0.0
      %2252 = vmatprep.subr.mxu0 0.0
      %2253 = vmatpush1.msra.mxu0 0.0
      %2254 = vmatprep.subr.mxu0 0.0
      %2255 = vmatpush1.msra.mxu0 0.0
      %2256 = vmatprep.subr.mxu0 0.0
      %2257 = vmatpush1.msra.mxu0 0.0
      %2258 = vmatprep.subr.mxu0 0.0
      %2259 = vmatpush1.msra.mxu0 0.0
      %2260 = vmatprep.subr.mxu0 0.0
      %2261 = vmatpush1.msra.mxu0 0.0
      %2262 = vmatprep.subr.mxu0 0.0
      %2263 = vmatpush1.msra.mxu0 0.0
      %2264 = vmatprep.subr.mxu0 0.0
      %2265 = vmatpush1.msra.mxu0 0.0
      %2266 = vmatprep.subr.mxu0 0.0
      %2267 = vmatpush1.msra.mxu0 0.0
      %2268 = vmatprep.subr.mxu0 0.0
      %2269 = vmatpush1.msra.mxu0 0.0
      %2270 = vmatprep.subr.mxu0 0.0
      %2271 = vmatpush1.msra.mxu0 0.0
      %2272 = vmatprep.subr.mxu0 0.0
      %2273 = vmatpush1.msra.mxu0 0.0
      %2274 = vmatprep.subr.mxu0 0.0
      %2275 = vmatpush1.msra.mxu0 0.0
      %2276 = vmatprep.subr.mxu0 0.0
      %2277 = vmatpush1.msra.mxu0 0.0
      %2278 = vmatprep.mubr.f32.mxu0 0.0
      %2279 = vmatmul.mubr.f32.gmra.mrb[0].mxu0 %v2212
      %v2280 = vpop.f32.mrb[0].mxu0
      %v2281 = vadd.f32 0.0, %v2280
      %v2282 = vpop.f32.mrb[0].mxu0
      %v2283 = vadd.f32 0.0, %v2282
      %2284 = vdwg.mxu0
      %2285 = vmatprep.subr.mxu0 0.0
      %2286 = vmatpush1.msra.mxu0 %v2205
      %2287 = vmatprep.subr.mxu0 0.0
      %2288 = vmatpush1.msra.mxu0 0.0
      %2289 = vmatprep.subr.mxu0 0.0
      %2290 = vmatpush1.msra.mxu0 0.0
      %2291 = vmatprep.subr.mxu0 0.0
      %2292 = vmatpush1.msra.mxu0 0.0
      %2293 = vmatprep.subr.mxu0 0.0
      %2294 = vmatpush1.msra.mxu0 0.0
      %2295 = vmatprep.subr.mxu0 0.0
      %2296 = vmatpush1.msra.mxu0 0.0
      %2297 = vmatprep.subr.mxu0 0.0
      %2298 = vmatpush1.msra.mxu0 0.0
      %2299 = vmatprep.subr.mxu0 0.0
      %2300 = vmatpush1.msra.mxu0 0.0
      %2301 = vmatprep.subr.mxu0 0.0
      %2302 = vmatpush1.msra.mxu0 0.0
      %2303 = vmatprep.subr.mxu0 0.0
      %2304 = vmatpush1.msra.mxu0 0.0
      %2305 = vmatprep.subr.mxu0 0.0
      %2306 = vmatpush1.msra.mxu0 0.0
      %2307 = vmatprep.subr.mxu0 0.0
      %2308 = vmatpush1.msra.mxu0 0.0
      %2309 = vmatprep.subr.mxu0 0.0
      %2310 = vmatpush1.msra.mxu0 0.0
      %2311 = vmatprep.subr.mxu0 0.0
      %2312 = vmatpush1.msra.mxu0 0.0
      %2313 = vmatprep.subr.mxu0 0.0
      %2314 = vmatpush1.msra.mxu0 0.0
      %2315 = vmatprep.subr.mxu0 0.0
      %2316 = vmatpush1.msra.mxu0 0.0
      %2317 = vmatprep.subr.mxu0 0.0
      %2318 = vmatpush1.msra.mxu0 0.0
      %2319 = vmatprep.subr.mxu0 0.0
      %2320 = vmatpush1.msra.mxu0 0.0
      %2321 = vmatprep.subr.mxu0 0.0
      %2322 = vmatpush1.msra.mxu0 0.0
      %2323 = vmatprep.subr.mxu0 0.0
      %2324 = vmatpush1.msra.mxu0 0.0
      %2325 = vmatprep.subr.mxu0 0.0
      %2326 = vmatpush1.msra.mxu0 0.0
      %2327 = vmatprep.subr.mxu0 0.0
      %2328 = vmatpush1.msra.mxu0 0.0
      %2329 = vmatprep.subr.mxu0 0.0
      %2330 = vmatpush1.msra.mxu0 0.0
      %2331 = vmatprep.subr.mxu0 0.0
      %2332 = vmatpush1.msra.mxu0 0.0
      %2333 = vmatprep.subr.mxu0 0.0
      %2334 = vmatpush1.msra.mxu0 0.0
      %2335 = vmatprep.subr.mxu0 0.0
      %2336 = vmatpush1.msra.mxu0 0.0
      %2337 = vmatprep.subr.mxu0 0.0
      %2338 = vmatpush1.msra.mxu0 0.0
      %2339 = vmatprep.subr.mxu0 0.0
      %2340 = vmatpush1.msra.mxu0 0.0
      %2341 = vmatprep.subr.mxu0 0.0
      %2342 = vmatpush1.msra.mxu0 0.0
      %2343 = vmatprep.subr.mxu0 0.0
      %2344 = vmatpush1.msra.mxu0 0.0
      %2345 = vmatprep.subr.mxu0 0.0
      %2346 = vmatpush1.msra.mxu0 0.0
      %2347 = vmatprep.subr.mxu0 0.0
      %2348 = vmatpush1.msra.mxu0 0.0
      %2349 = vmatprep.mubr.f32.mxu0 0.0
      %2350 = vmatmul.mubr.f32.gmra.mrb[0].mxu0 %v2212
      %v2351 = vpop.f32.mrb[0].mxu0
      %v2352 = vadd.f32 0.0, %v2351
      %v2353 = vpop.f32.mrb[0].mxu0
      %2354 = vdwg.mxu0
      %v2355 = vadd.f32 %v2124, %v2281
      %v2356 = vadd.f32 %v2126, %v2283
      %v2357 = vadd.f32 %v2195, %v2352
      %s2358 = scalar_lea.vmem %s3, 24
      %v2359 = vld [vmem:[%s2358] sm:$0xff]
      %2360 = vrot.lane.b32.xlu0 %v1890, 110
      %v2361 = vpop.permute.xlu0 %2360
      %2362 = vrot.lane.b32.xlu0 %v1891, 110
      %v2363 = vpop.permute.xlu0 %2362
      %2364 = vrot.lane.b32.xlu0 %v1892, 110
      %v2365 = vpop.permute.xlu0 %2364
      %v2366 = vsel %vm832, %v2361, %v2363
      %v2367 = vsel %vm832, %v2363, %v2365
      %v2372 = vsel %vm1909, %v2359, 0
      %2374 = vmatprep.subr.mxu0 %v2367
      %2375 = vmatpush1.msra.mxu0 %v2366
      %2376 = vmatprep.subr.mxu0 0.0
      %2377 = vmatpush1.msra.mxu0 0.0
      %2378 = vmatprep.subr.mxu0 0.0
      %2379 = vmatpush1.msra.mxu0 0.0
      %2380 = vmatprep.subr.mxu0 0.0
      %2381 = vmatpush1.msra.mxu0 0.0
      %2382 = vmatprep.subr.mxu0 0.0
      %2383 = vmatpush1.msra.mxu0 0.0
      %2384 = vmatprep.subr.mxu0 0.0
      %2385 = vmatpush1.msra.mxu0 0.0
      %2386 = vmatprep.subr.mxu0 0.0
      %2387 = vmatpush1.msra.mxu0 0.0
      %2388 = vmatprep.subr.mxu0 0.0
      %2389 = vmatpush1.msra.mxu0 0.0
      %2390 = vmatprep.subr.mxu0 0.0
      %2391 = vmatpush1.msra.mxu0 0.0
      %2392 = vmatprep.subr.mxu0 0.0
      %2393 = vmatpush1.msra.mxu0 0.0
      %2394 = vmatprep.subr.mxu0 0.0
      %2395 = vmatpush1.msra.mxu0 0.0
      %2396 = vmatprep.subr.mxu0 0.0
      %2397 = vmatpush1.msra.mxu0 0.0
      %2398 = vmatprep.subr.mxu0 0.0
      %2399 = vmatpush1.msra.mxu0 0.0
      %2400 = vmatprep.subr.mxu0 0.0
      %2401 = vmatpush1.msra.mxu0 0.0
      %2402 = vmatprep.subr.mxu0 0.0
      %2403 = vmatpush1.msra.mxu0 0.0
      %2404 = vmatprep.subr.mxu0 0.0
      %2405 = vmatpush1.msra.mxu0 0.0
      %2406 = vmatprep.subr.mxu0 0.0
      %2407 = vmatpush1.msra.mxu0 0.0
      %2408 = vmatprep.subr.mxu0 0.0
      %2409 = vmatpush1.msra.mxu0 0.0
      %2410 = vmatprep.subr.mxu0 0.0
      %2411 = vmatpush1.msra.mxu0 0.0
      %2412 = vmatprep.subr.mxu0 0.0
      %2413 = vmatpush1.msra.mxu0 0.0
      %2414 = vmatprep.subr.mxu0 0.0
      %2415 = vmatpush1.msra.mxu0 0.0
      %2416 = vmatprep.subr.mxu0 0.0
      %2417 = vmatpush1.msra.mxu0 0.0
      %2418 = vmatprep.subr.mxu0 0.0
      %2419 = vmatpush1.msra.mxu0 0.0
      %2420 = vmatprep.subr.mxu0 0.0
      %2421 = vmatpush1.msra.mxu0 0.0
      %2422 = vmatprep.subr.mxu0 0.0
      %2423 = vmatpush1.msra.mxu0 0.0
      %2424 = vmatprep.subr.mxu0 0.0
      %2425 = vmatpush1.msra.mxu0 0.0
      %2426 = vmatprep.subr.mxu0 0.0
      %2427 = vmatpush1.msra.mxu0 0.0
      %2428 = vmatprep.subr.mxu0 0.0
      %2429 = vmatpush1.msra.mxu0 0.0
      %2430 = vmatprep.subr.mxu0 0.0
      %2431 = vmatpush1.msra.mxu0 0.0
      %2432 = vmatprep.subr.mxu0 0.0
      %2433 = vmatpush1.msra.mxu0 0.0
      %2434 = vmatprep.subr.mxu0 0.0
      %2435 = vmatpush1.msra.mxu0 0.0
      %2436 = vmatprep.subr.mxu0 0.0
      %2437 = vmatpush1.msra.mxu0 0.0
      %2438 = vmatprep.mubr.f32.mxu0 0.0
      %2439 = vmatmul.mubr.f32.gmra.mrb[0].mxu0 %v2372
      %v2440 = vpop.f32.mrb[0].mxu0
      %v2441 = vadd.f32 0.0, %v2440
      %v2442 = vpop.f32.mrb[0].mxu0
      %v2443 = vadd.f32 0.0, %v2442
      %2444 = vdwg.mxu0
      %2445 = vmatprep.subr.mxu0 0.0
      %2446 = vmatpush1.msra.mxu0 %v2365
      %2447 = vmatprep.subr.mxu0 0.0
      %2448 = vmatpush1.msra.mxu0 0.0
      %2449 = vmatprep.subr.mxu0 0.0
      %2450 = vmatpush1.msra.mxu0 0.0
      %2451 = vmatprep.subr.mxu0 0.0
      %2452 = vmatpush1.msra.mxu0 0.0
      %2453 = vmatprep.subr.mxu0 0.0
      %2454 = vmatpush1.msra.mxu0 0.0
      %2455 = vmatprep.subr.mxu0 0.0
      %2456 = vmatpush1.msra.mxu0 0.0
      %2457 = vmatprep.subr.mxu0 0.0
      %2458 = vmatpush1.msra.mxu0 0.0
      %2459 = vmatprep.subr.mxu0 0.0
      %2460 = vmatpush1.msra.mxu0 0.0
      %2461 = vmatprep.subr.mxu0 0.0
      %2462 = vmatpush1.msra.mxu0 0.0
      %2463 = vmatprep.subr.mxu0 0.0
      %2464 = vmatpush1.msra.mxu0 0.0
      %2465 = vmatprep.subr.mxu0 0.0
      %2466 = vmatpush1.msra.mxu0 0.0
      %2467 = vmatprep.subr.mxu0 0.0
      %2468 = vmatpush1.msra.mxu0 0.0
      %2469 = vmatprep.subr.mxu0 0.0
      %2470 = vmatpush1.msra.mxu0 0.0
      %2471 = vmatprep.subr.mxu0 0.0
      %2472 = vmatpush1.msra.mxu0 0.0
      %2473 = vmatprep.subr.mxu0 0.0
      %2474 = vmatpush1.msra.mxu0 0.0
      %2475 = vmatprep.subr.mxu0 0.0
      %2476 = vmatpush1.msra.mxu0 0.0
      %2477 = vmatprep.subr.mxu0 0.0
      %2478 = vmatpush1.msra.mxu0 0.0
      %2479 = vmatprep.subr.mxu0 0.0
      %2480 = vmatpush1.msra.mxu0 0.0
      %2481 = vmatprep.subr.mxu0 0.0
      %2482 = vmatpush1.msra.mxu0 0.0
      %2483 = vmatprep.subr.mxu0 0.0
      %2484 = vmatpush1.msra.mxu0 0.0
      %2485 = vmatprep.subr.mxu0 0.0
      %2486 = vmatpush1.msra.mxu0 0.0
      %2487 = vmatprep.subr.mxu0 0.0
      %2488 = vmatpush1.msra.mxu0 0.0
      %2489 = vmatprep.subr.mxu0 0.0
      %2490 = vmatpush1.msra.mxu0 0.0
      %2491 = vmatprep.subr.mxu0 0.0
      %2492 = vmatpush1.msra.mxu0 0.0
      %2493 = vmatprep.subr.mxu0 0.0
      %2494 = vmatpush1.msra.mxu0 0.0
      %2495 = vmatprep.subr.mxu0 0.0
      %2496 = vmatpush1.msra.mxu0 0.0
      %2497 = vmatprep.subr.mxu0 0.0
      %2498 = vmatpush1.msra.mxu0 0.0
      %2499 = vmatprep.subr.mxu0 0.0
      %2500 = vmatpush1.msra.mxu0 0.0
      %2501 = vmatprep.subr.mxu0 0.0
      %2502 = vmatpush1.msra.mxu0 0.0
      %2503 = vmatprep.subr.mxu0 0.0
      %2504 = vmatpush1.msra.mxu0 0.0
      %2505 = vmatprep.subr.mxu0 0.0
      %2506 = vmatpush1.msra.mxu0 0.0
      %2507 = vmatprep.subr.mxu0 0.0
      %2508 = vmatpush1.msra.mxu0 0.0
      %2509 = vmatprep.mubr.f32.mxu0 0.0
      %2510 = vmatmul.mubr.f32.gmra.mrb[0].mxu0 %v2372
      %v2511 = vpop.f32.mrb[0].mxu0
      %v2512 = vadd.f32 0.0, %v2511
      %v2513 = vpop.f32.mrb[0].mxu0
      %2514 = vdwg.mxu0
      %v2515 = vadd.f32 %v2355, %v2441
      %v2516 = vadd.f32 %v2356, %v2443
      %v2517 = vadd.f32 %v2357, %v2512
      %s2518 = scalar_lea.vmem %s3, 32
      %v2519 = vld [vmem:[%s2518] sm:$0xff]
      %2520 = vrot.lane.b32.xlu0 %v1890, 109
      %v2521 = vpop.permute.xlu0 %2520
      %2522 = vrot.lane.b32.xlu0 %v1891, 109
      %v2523 = vpop.permute.xlu0 %2522
      %2524 = vrot.lane.b32.xlu0 %v1892, 109
      %v2525 = vpop.permute.xlu0 %2524
      %v2526 = vsel %vm1001, %v2521, %v2523
      %v2527 = vsel %vm1001, %v2523, %v2525
      %v2532 = vsel %vm1909, %v2519, 0
      %2534 = vmatprep.subr.mxu0 %v2527
      %2535 = vmatpush1.msra.mxu0 %v2526
      %2536 = vmatprep.subr.mxu0 0.0
      %2537 = vmatpush1.msra.mxu0 0.0
      %2538 = vmatprep.subr.mxu0 0.0
      %2539 = vmatpush1.msra.mxu0 0.0
      %2540 = vmatprep.subr.mxu0 0.0
      %2541 = vmatpush1.msra.mxu0 0.0
      %2542 = vmatprep.subr.mxu0 0.0
      %2543 = vmatpush1.msra.mxu0 0.0
      %2544 = vmatprep.subr.mxu0 0.0
      %2545 = vmatpush1.msra.mxu0 0.0
      %2546 = vmatprep.subr.mxu0 0.0
      %2547 = vmatpush1.msra.mxu0 0.0
      %2548 = vmatprep.subr.mxu0 0.0
      %2549 = vmatpush1.msra.mxu0 0.0
      %2550 = vmatprep.subr.mxu0 0.0
      %2551 = vmatpush1.msra.mxu0 0.0
      %2552 = vmatprep.subr.mxu0 0.0
      %2553 = vmatpush1.msra.mxu0 0.0
      %2554 = vmatprep.subr.mxu0 0.0
      %2555 = vmatpush1.msra.mxu0 0.0
      %2556 = vmatprep.subr.mxu0 0.0
      %2557 = vmatpush1.msra.mxu0 0.0
      %2558 = vmatprep.subr.mxu0 0.0
      %2559 = vmatpush1.msra.mxu0 0.0
      %2560 = vmatprep.subr.mxu0 0.0
      %2561 = vmatpush1.msra.mxu0 0.0
      %2562 = vmatprep.subr.mxu0 0.0
      %2563 = vmatpush1.msra.mxu0 0.0
      %2564 = vmatprep.subr.mxu0 0.0
      %2565 = vmatpush1.msra.mxu0 0.0
      %2566 = vmatprep.subr.mxu0 0.0
      %2567 = vmatpush1.msra.mxu0 0.0
      %2568 = vmatprep.subr.mxu0 0.0
      %2569 = vmatpush1.msra.mxu0 0.0
      %2570 = vmatprep.subr.mxu0 0.0
      %2571 = vmatpush1.msra.mxu0 0.0
      %2572 = vmatprep.subr.mxu0 0.0
      %2573 = vmatpush1.msra.mxu0 0.0
      %2574 = vmatprep.subr.mxu0 0.0
      %2575 = vmatpush1.msra.mxu0 0.0
      %2576 = vmatprep.subr.mxu0 0.0
      %2577 = vmatpush1.msra.mxu0 0.0
      %2578 = vmatprep.subr.mxu0 0.0
      %2579 = vmatpush1.msra.mxu0 0.0
      %2580 = vmatprep.subr.mxu0 0.0
      %2581 = vmatpush1.msra.mxu0 0.0
      %2582 = vmatprep.subr.mxu0 0.0
      %2583 = vmatpush1.msra.mxu0 0.0
      %2584 = vmatprep.subr.mxu0 0.0
      %2585 = vmatpush1.msra.mxu0 0.0
      %2586 = vmatprep.subr.mxu0 0.0
      %2587 = vmatpush1.msra.mxu0 0.0
      %2588 = vmatprep.subr.mxu0 0.0
      %2589 = vmatpush1.msra.mxu0 0.0
      %2590 = vmatprep.subr.mxu0 0.0
      %2591 = vmatpush1.msra.mxu0 0.0
      %2592 = vmatprep.subr.mxu0 0.0
      %2593 = vmatpush1.msra.mxu0 0.0
      %2594 = vmatprep.subr.mxu0 0.0
      %2595 = vmatpush1.msra.mxu0 0.0
      %2596 = vmatprep.subr.mxu0 0.0
      %2597 = vmatpush1.msra.mxu0 0.0
      %2598 = vmatprep.mubr.f32.mxu0 0.0
      %2599 = vmatmul.mubr.f32.gmra.mrb[0].mxu0 %v2532
      %v2600 = vpop.f32.mrb[0].mxu0
      %v2601 = vadd.f32 0.0, %v2600
      %v2602 = vpop.f32.mrb[0].mxu0
      %v2603 = vadd.f32 0.0, %v2602
      %2604 = vdwg.mxu0
      %2605 = vmatprep.subr.mxu0 0.0
      %2606 = vmatpush1.msra.mxu0 %v2525
      %2607 = vmatprep.subr.mxu0 0.0
      %2608 = vmatpush1.msra.mxu0 0.0
      %2609 = vmatprep.subr.mxu0 0.0
      %2610 = vmatpush1.msra.mxu0 0.0
      %2611 = vmatprep.subr.mxu0 0.0
      %2612 = vmatpush1.msra.mxu0 0.0
      %2613 = vmatprep.subr.mxu0 0.0
      %2614 = vmatpush1.msra.mxu0 0.0
      %2615 = vmatprep.subr.mxu0 0.0
      %2616 = vmatpush1.msra.mxu0 0.0
      %2617 = vmatprep.subr.mxu0 0.0
      %2618 = vmatpush1.msra.mxu0 0.0
      %2619 = vmatprep.subr.mxu0 0.0
      %2620 = vmatpush1.msra.mxu0 0.0
      %2621 = vmatprep.subr.mxu0 0.0
      %2622 = vmatpush1.msra.mxu0 0.0
      %2623 = vmatprep.subr.mxu0 0.0
      %2624 = vmatpush1.msra.mxu0 0.0
      %2625 = vmatprep.subr.mxu0 0.0
      %2626 = vmatpush1.msra.mxu0 0.0
      %2627 = vmatprep.subr.mxu0 0.0
      %2628 = vmatpush1.msra.mxu0 0.0
      %2629 = vmatprep.subr.mxu0 0.0
      %2630 = vmatpush1.msra.mxu0 0.0
      %2631 = vmatprep.subr.mxu0 0.0
      %2632 = vmatpush1.msra.mxu0 0.0
      %2633 = vmatprep.subr.mxu0 0.0
      %2634 = vmatpush1.msra.mxu0 0.0
      %2635 = vmatprep.subr.mxu0 0.0
      %2636 = vmatpush1.msra.mxu0 0.0
      %2637 = vmatprep.subr.mxu0 0.0
      %2638 = vmatpush1.msra.mxu0 0.0
      %2639 = vmatprep.subr.mxu0 0.0
      %2640 = vmatpush1.msra.mxu0 0.0
      %2641 = vmatprep.subr.mxu0 0.0
      %2642 = vmatpush1.msra.mxu0 0.0
      %2643 = vmatprep.subr.mxu0 0.0
      %2644 = vmatpush1.msra.mxu0 0.0
      %2645 = vmatprep.subr.mxu0 0.0
      %2646 = vmatpush1.msra.mxu0 0.0
      %2647 = vmatprep.subr.mxu0 0.0
      %2648 = vmatpush1.msra.mxu0 0.0
      %2649 = vmatprep.subr.mxu0 0.0
      %2650 = vmatpush1.msra.mxu0 0.0
      %2651 = vmatprep.subr.mxu0 0.0
      %2652 = vmatpush1.msra.mxu0 0.0
      %2653 = vmatprep.subr.mxu0 0.0
      %2654 = vmatpush1.msra.mxu0 0.0
      %2655 = vmatprep.subr.mxu0 0.0
      %2656 = vmatpush1.msra.mxu0 0.0
      %2657 = vmatprep.subr.mxu0 0.0
      %2658 = vmatpush1.msra.mxu0 0.0
      %2659 = vmatprep.subr.mxu0 0.0
      %2660 = vmatpush1.msra.mxu0 0.0
      %2661 = vmatprep.subr.mxu0 0.0
      %2662 = vmatpush1.msra.mxu0 0.0
      %2663 = vmatprep.subr.mxu0 0.0
      %2664 = vmatpush1.msra.mxu0 0.0
      %2665 = vmatprep.subr.mxu0 0.0
      %2666 = vmatpush1.msra.mxu0 0.0
      %2667 = vmatprep.subr.mxu0 0.0
      %2668 = vmatpush1.msra.mxu0 0.0
      %2669 = vmatprep.mubr.f32.mxu0 0.0
      %2670 = vmatmul.mubr.f32.gmra.mrb[0].mxu0 %v2532
      %v2671 = vpop.f32.mrb[0].mxu0
      %v2672 = vadd.f32 0.0, %v2671
      %v2673 = vpop.f32.mrb[0].mxu0
      %2674 = vdwg.mxu0
      %v2675 = vadd.f32 %v2515, %v2601
      %v2676 = vadd.f32 %v2516, %v2603
      %v2677 = vadd.f32 %v2517, %v2672
      %s2678 = scalar_lea.vmem %s3, 40
      %v2679 = vld [vmem:[%s2678] sm:$0xff]
      %2680 = vrot.lane.b32.xlu0 %v1890, 108
      %v2681 = vpop.permute.xlu0 %2680
      %2682 = vrot.lane.b32.xlu0 %v1891, 108
      %v2683 = vpop.permute.xlu0 %2682
      %2684 = vrot.lane.b32.xlu0 %v1892, 108
      %v2685 = vpop.permute.xlu0 %2684
      %v2686 = vsel %vm1170, %v2681, %v2683
      %v2687 = vsel %vm1170, %v2683, %v2685
      %v2692 = vsel %vm1909, %v2679, 0
      %2694 = vmatprep.subr.mxu0 %v2687
      %2695 = vmatpush1.msra.mxu0 %v2686
      %2696 = vmatprep.subr.mxu0 0.0
      %2697 = vmatpush1.msra.mxu0 0.0
      %2698 = vmatprep.subr.mxu0 0.0
      %2699 = vmatpush1.msra.mxu0 0.0
      %2700 = vmatprep.subr.mxu0 0.0
      %2701 = vmatpush1.msra.mxu0 0.0
      %2702 = vmatprep.subr.mxu0 0.0
      %2703 = vmatpush1.msra.mxu0 0.0
      %2704 = vmatprep.subr.mxu0 0.0
      %2705 = vmatpush1.msra.mxu0 0.0
      %2706 = vmatprep.subr.mxu0 0.0
      %2707 = vmatpush1.msra.mxu0 0.0
      %2708 = vmatprep.subr.mxu0 0.0
      %2709 = vmatpush1.msra.mxu0 0.0
      %2710 = vmatprep.subr.mxu0 0.0
      %2711 = vmatpush1.msra.mxu0 0.0
      %2712 = vmatprep.subr.mxu0 0.0
      %2713 = vmatpush1.msra.mxu0 0.0
      %2714 = vmatprep.subr.mxu0 0.0
      %2715 = vmatpush1.msra.mxu0 0.0
      %2716 = vmatprep.subr.mxu0 0.0
      %2717 = vmatpush1.msra.mxu0 0.0
      %2718 = vmatprep.subr.mxu0 0.0
      %2719 = vmatpush1.msra.mxu0 0.0
      %2720 = vmatprep.subr.mxu0 0.0
      %2721 = vmatpush1.msra.mxu0 0.0
      %2722 = vmatprep.subr.mxu0 0.0
      %2723 = vmatpush1.msra.mxu0 0.0
      %2724 = vmatprep.subr.mxu0 0.0
      %2725 = vmatpush1.msra.mxu0 0.0
      %2726 = vmatprep.subr.mxu0 0.0
      %2727 = vmatpush1.msra.mxu0 0.0
      %2728 = vmatprep.subr.mxu0 0.0
      %2729 = vmatpush1.msra.mxu0 0.0
      %2730 = vmatprep.subr.mxu0 0.0
      %2731 = vmatpush1.msra.mxu0 0.0
      %2732 = vmatprep.subr.mxu0 0.0
      %2733 = vmatpush1.msra.mxu0 0.0
      %2734 = vmatprep.subr.mxu0 0.0
      %2735 = vmatpush1.msra.mxu0 0.0
      %2736 = vmatprep.subr.mxu0 0.0
      %2737 = vmatpush1.msra.mxu0 0.0
      %2738 = vmatprep.subr.mxu0 0.0
      %2739 = vmatpush1.msra.mxu0 0.0
      %2740 = vmatprep.subr.mxu0 0.0
      %2741 = vmatpush1.msra.mxu0 0.0
      %2742 = vmatprep.subr.mxu0 0.0
      %2743 = vmatpush1.msra.mxu0 0.0
      %2744 = vmatprep.subr.mxu0 0.0
      %2745 = vmatpush1.msra.mxu0 0.0
      %2746 = vmatprep.subr.mxu0 0.0
      %2747 = vmatpush1.msra.mxu0 0.0
      %2748 = vmatprep.subr.mxu0 0.0
      %2749 = vmatpush1.msra.mxu0 0.0
      %2750 = vmatprep.subr.mxu0 0.0
      %2751 = vmatpush1.msra.mxu0 0.0
      %2752 = vmatprep.subr.mxu0 0.0
      %2753 = vmatpush1.msra.mxu0 0.0
      %2754 = vmatprep.subr.mxu0 0.0
      %2755 = vmatpush1.msra.mxu0 0.0
      %2756 = vmatprep.subr.mxu0 0.0
      %2757 = vmatpush1.msra.mxu0 0.0
      %2758 = vmatprep.mubr.f32.mxu0 0.0
      %2759 = vmatmul.mubr.f32.gmra.mrb[0].mxu0 %v2692
      %v2760 = vpop.f32.mrb[0].mxu0
      %v2761 = vadd.f32 0.0, %v2760
      %v2762 = vpop.f32.mrb[0].mxu0
      %v2763 = vadd.f32 0.0, %v2762
      %2764 = vdwg.mxu0
      %2765 = vmatprep.subr.mxu0 0.0
      %2766 = vmatpush1.msra.mxu0 %v2685
      %2767 = vmatprep.subr.mxu0 0.0
      %2768 = vmatpush1.msra.mxu0 0.0
      %2769 = vmatprep.subr.mxu0 0.0
      %2770 = vmatpush1.msra.mxu0 0.0
      %2771 = vmatprep.subr.mxu0 0.0
      %2772 = vmatpush1.msra.mxu0 0.0
      %2773 = vmatprep.subr.mxu0 0.0
      %2774 = vmatpush1.msra.mxu0 0.0
      %2775 = vmatprep.subr.mxu0 0.0
      %2776 = vmatpush1.msra.mxu0 0.0
      %2777 = vmatprep.subr.mxu0 0.0
      %2778 = vmatpush1.msra.mxu0 0.0
      %2779 = vmatprep.subr.mxu0 0.0
      %2780 = vmatpush1.msra.mxu0 0.0
      %2781 = vmatprep.subr.mxu0 0.0
      %2782 = vmatpush1.msra.mxu0 0.0
      %2783 = vmatprep.subr.mxu0 0.0
      %2784 = vmatpush1.msra.mxu0 0.0
      %2785 = vmatprep.subr.mxu0 0.0
      %2786 = vmatpush1.msra.mxu0 0.0
      %2787 = vmatprep.subr.mxu0 0.0
      %2788 = vmatpush1.msra.mxu0 0.0
      %2789 = vmatprep.subr.mxu0 0.0
      %2790 = vmatpush1.msra.mxu0 0.0
      %2791 = vmatprep.subr.mxu0 0.0
      %2792 = vmatpush1.msra.mxu0 0.0
      %2793 = vmatprep.subr.mxu0 0.0
      %2794 = vmatpush1.msra.mxu0 0.0
      %2795 = vmatprep.subr.mxu0 0.0
      %2796 = vmatpush1.msra.mxu0 0.0
      %2797 = vmatprep.subr.mxu0 0.0
      %2798 = vmatpush1.msra.mxu0 0.0
      %2799 = vmatprep.subr.mxu0 0.0
      %2800 = vmatpush1.msra.mxu0 0.0
      %2801 = vmatprep.subr.mxu0 0.0
      %2802 = vmatpush1.msra.mxu0 0.0
      %2803 = vmatprep.subr.mxu0 0.0
      %2804 = vmatpush1.msra.mxu0 0.0
      %2805 = vmatprep.subr.mxu0 0.0
      %2806 = vmatpush1.msra.mxu0 0.0
      %2807 = vmatprep.subr.mxu0 0.0
      %2808 = vmatpush1.msra.mxu0 0.0
      %2809 = vmatprep.subr.mxu0 0.0
      %2810 = vmatpush1.msra.mxu0 0.0
      %2811 = vmatprep.subr.mxu0 0.0
      %2812 = vmatpush1.msra.mxu0 0.0
      %2813 = vmatprep.subr.mxu0 0.0
      %2814 = vmatpush1.msra.mxu0 0.0
      %2815 = vmatprep.subr.mxu0 0.0
      %2816 = vmatpush1.msra.mxu0 0.0
      %2817 = vmatprep.subr.mxu0 0.0
      %2818 = vmatpush1.msra.mxu0 0.0
      %2819 = vmatprep.subr.mxu0 0.0
      %2820 = vmatpush1.msra.mxu0 0.0
      %2821 = vmatprep.subr.mxu0 0.0
      %2822 = vmatpush1.msra.mxu0 0.0
      %2823 = vmatprep.subr.mxu0 0.0
      %2824 = vmatpush1.msra.mxu0 0.0
      %2825 = vmatprep.subr.mxu0 0.0
      %2826 = vmatpush1.msra.mxu0 0.0
      %2827 = vmatprep.subr.mxu0 0.0
      %2828 = vmatpush1.msra.mxu0 0.0
      %2829 = vmatprep.mubr.f32.mxu0 0.0
      %2830 = vmatmul.mubr.f32.gmra.mrb[0].mxu0 %v2692
      %v2831 = vpop.f32.mrb[0].mxu0
      %v2832 = vadd.f32 0.0, %v2831
      %v2833 = vpop.f32.mrb[0].mxu0
      %2834 = vdwg.mxu0
      %v2835 = vadd.f32 %v2675, %v2761
      %v2836 = vadd.f32 %v2676, %v2763
      %v2837 = vadd.f32 %v2677, %v2832
      %s2838 = scalar_lea.vmem %s3, 48
      %v2839 = vld [vmem:[%s2838] sm:$0xff]
      %2840 = vrot.lane.b32.xlu0 %v1890, 92
      %v2841 = vpop.permute.xlu0 %2840
      %2842 = vrot.lane.b32.xlu0 %v1891, 92
      %v2843 = vpop.permute.xlu0 %2842
      %2844 = vrot.lane.b32.xlu0 %v1892, 92
      %v2845 = vpop.permute.xlu0 %2844
      %v2846 = vsel %vm1339, %v2841, %v2843
      %v2847 = vsel %vm1339, %v2843, %v2845
      %v2852 = vsel %vm1909, %v2839, 0
      %2854 = vmatprep.subr.mxu0 %v2847
      %2855 = vmatpush1.msra.mxu0 %v2846
      %2856 = vmatprep.subr.mxu0 0.0
      %2857 = vmatpush1.msra.mxu0 0.0
      %2858 = vmatprep.subr.mxu0 0.0
      %2859 = vmatpush1.msra.mxu0 0.0
      %2860 = vmatprep.subr.mxu0 0.0
      %2861 = vmatpush1.msra.mxu0 0.0
      %2862 = vmatprep.subr.mxu0 0.0
      %2863 = vmatpush1.msra.mxu0 0.0
      %2864 = vmatprep.subr.mxu0 0.0
      %2865 = vmatpush1.msra.mxu0 0.0
      %2866 = vmatprep.subr.mxu0 0.0
      %2867 = vmatpush1.msra.mxu0 0.0
      %2868 = vmatprep.subr.mxu0 0.0
      %2869 = vmatpush1.msra.mxu0 0.0
      %2870 = vmatprep.subr.mxu0 0.0
      %2871 = vmatpush1.msra.mxu0 0.0
      %2872 = vmatprep.subr.mxu0 0.0
      %2873 = vmatpush1.msra.mxu0 0.0
      %2874 = vmatprep.subr.mxu0 0.0
      %2875 = vmatpush1.msra.mxu0 0.0
      %2876 = vmatprep.subr.mxu0 0.0
      %2877 = vmatpush1.msra.mxu0 0.0
      %2878 = vmatprep.subr.mxu0 0.0
      %2879 = vmatpush1.msra.mxu0 0.0
      %2880 = vmatprep.subr.mxu0 0.0
      %2881 = vmatpush1.msra.mxu0 0.0
      %2882 = vmatprep.subr.mxu0 0.0
      %2883 = vmatpush1.msra.mxu0 0.0
      %2884 = vmatprep.subr.mxu0 0.0
      %2885 = vmatpush1.msra.mxu0 0.0
      %2886 = vmatprep.subr.mxu0 0.0
      %2887 = vmatpush1.msra.mxu0 0.0
      %2888 = vmatprep.subr.mxu0 0.0
      %2889 = vmatpush1.msra.mxu0 0.0
      %2890 = vmatprep.subr.mxu0 0.0
      %2891 = vmatpush1.msra.mxu0 0.0
      %2892 = vmatprep.subr.mxu0 0.0
      %2893 = vmatpush1.msra.mxu0 0.0
      %2894 = vmatprep.subr.mxu0 0.0
      %2895 = vmatpush1.msra.mxu0 0.0
      %2896 = vmatprep.subr.mxu0 0.0
      %2897 = vmatpush1.msra.mxu0 0.0
      %2898 = vmatprep.subr.mxu0 0.0
      %2899 = vmatpush1.msra.mxu0 0.0
      %2900 = vmatprep.subr.mxu0 0.0
      %2901 = vmatpush1.msra.mxu0 0.0
      %2902 = vmatprep.subr.mxu0 0.0
      %2903 = vmatpush1.msra.mxu0 0.0
      %2904 = vmatprep.subr.mxu0 0.0
      %2905 = vmatpush1.msra.mxu0 0.0
      %2906 = vmatprep.subr.mxu0 0.0
      %2907 = vmatpush1.msra.mxu0 0.0
      %2908 = vmatprep.subr.mxu0 0.0
      %2909 = vmatpush1.msra.mxu0 0.0
      %2910 = vmatprep.subr.mxu0 0.0
      %2911 = vmatpush1.msra.mxu0 0.0
      %2912 = vmatprep.subr.mxu0 0.0
      %2913 = vmatpush1.msra.mxu0 0.0
      %2914 = vmatprep.subr.mxu0 0.0
      %2915 = vmatpush1.msra.mxu0 0.0
      %2916 = vmatprep.subr.mxu0 0.0
      %2917 = vmatpush1.msra.mxu0 0.0
      %2918 = vmatprep.mubr.f32.mxu0 0.0
      %2919 = vmatmul.mubr.f32.gmra.mrb[0].mxu0 %v2852
      %v2920 = vpop.f32.mrb[0].mxu0
      %v2921 = vadd.f32 0.0, %v2920
      %v2922 = vpop.f32.mrb[0].mxu0
      %v2923 = vadd.f32 0.0, %v2922
      %2924 = vdwg.mxu0
      %2925 = vmatprep.subr.mxu0 0.0
      %2926 = vmatpush1.msra.mxu0 %v2845
      %2927 = vmatprep.subr.mxu0 0.0
      %2928 = vmatpush1.msra.mxu0 0.0
      %2929 = vmatprep.subr.mxu0 0.0
      %2930 = vmatpush1.msra.mxu0 0.0
      %2931 = vmatprep.subr.mxu0 0.0
      %2932 = vmatpush1.msra.mxu0 0.0
      %2933 = vmatprep.subr.mxu0 0.0
      %2934 = vmatpush1.msra.mxu0 0.0
      %2935 = vmatprep.subr.mxu0 0.0
      %2936 = vmatpush1.msra.mxu0 0.0
      %2937 = vmatprep.subr.mxu0 0.0
      %2938 = vmatpush1.msra.mxu0 0.0
      %2939 = vmatprep.subr.mxu0 0.0
      %2940 = vmatpush1.msra.mxu0 0.0
      %2941 = vmatprep.subr.mxu0 0.0
      %2942 = vmatpush1.msra.mxu0 0.0
      %2943 = vmatprep.subr.mxu0 0.0
      %2944 = vmatpush1.msra.mxu0 0.0
      %2945 = vmatprep.subr.mxu0 0.0
      %2946 = vmatpush1.msra.mxu0 0.0
      %2947 = vmatprep.subr.mxu0 0.0
      %2948 = vmatpush1.msra.mxu0 0.0
      %2949 = vmatprep.subr.mxu0 0.0
      %2950 = vmatpush1.msra.mxu0 0.0
      %2951 = vmatprep.subr.mxu0 0.0
      %2952 = vmatpush1.msra.mxu0 0.0
      %2953 = vmatprep.subr.mxu0 0.0
      %2954 = vmatpush1.msra.mxu0 0.0
      %2955 = vmatprep.subr.mxu0 0.0
      %2956 = vmatpush1.msra.mxu0 0.0
      %2957 = vmatprep.subr.mxu0 0.0
      %2958 = vmatpush1.msra.mxu0 0.0
      %2959 = vmatprep.subr.mxu0 0.0
      %2960 = vmatpush1.msra.mxu0 0.0
      %2961 = vmatprep.subr.mxu0 0.0
      %2962 = vmatpush1.msra.mxu0 0.0
      %2963 = vmatprep.subr.mxu0 0.0
      %2964 = vmatpush1.msra.mxu0 0.0
      %2965 = vmatprep.subr.mxu0 0.0
      %2966 = vmatpush1.msra.mxu0 0.0
      %2967 = vmatprep.subr.mxu0 0.0
      %2968 = vmatpush1.msra.mxu0 0.0
      %2969 = vmatprep.subr.mxu0 0.0
      %2970 = vmatpush1.msra.mxu0 0.0
      %2971 = vmatprep.subr.mxu0 0.0
      %2972 = vmatpush1.msra.mxu0 0.0
      %2973 = vmatprep.subr.mxu0 0.0
      %2974 = vmatpush1.msra.mxu0 0.0
      %2975 = vmatprep.subr.mxu0 0.0
      %2976 = vmatpush1.msra.mxu0 0.0
      %2977 = vmatprep.subr.mxu0 0.0
      %2978 = vmatpush1.msra.mxu0 0.0
      %2979 = vmatprep.subr.mxu0 0.0
      %2980 = vmatpush1.msra.mxu0 0.0
      %2981 = vmatprep.subr.mxu0 0.0
      %2982 = vmatpush1.msra.mxu0 0.0
      %2983 = vmatprep.subr.mxu0 0.0
      %2984 = vmatpush1.msra.mxu0 0.0
      %2985 = vmatprep.subr.mxu0 0.0
      %2986 = vmatpush1.msra.mxu0 0.0
      %2987 = vmatprep.subr.mxu0 0.0
      %2988 = vmatpush1.msra.mxu0 0.0
      %2989 = vmatprep.mubr.f32.mxu0 0.0
      %2990 = vmatmul.mubr.f32.gmra.mrb[0].mxu0 %v2852
      %v2991 = vpop.f32.mrb[0].mxu0
      %v2992 = vadd.f32 0.0, %v2991
      %v2993 = vpop.f32.mrb[0].mxu0
      %2994 = vdwg.mxu0
      %v2995 = vadd.f32 %v2835, %v2921
      %v2996 = vadd.f32 %v2836, %v2923
      %v2997 = vadd.f32 %v2837, %v2992
      %s2998 = scalar_lea.vmem %s3, 56
      %v2999 = vld [vmem:[%s2998] sm:$0xff]
      %3000 = vrot.lane.b32.xlu0 %v1890, 91
      %v3001 = vpop.permute.xlu0 %3000
      %3002 = vrot.lane.b32.xlu0 %v1891, 91
      %v3003 = vpop.permute.xlu0 %3002
      %3004 = vrot.lane.b32.xlu0 %v1892, 91
      %v3005 = vpop.permute.xlu0 %3004
      %v3006 = vsel %vm1508, %v3001, %v3003
      %v3007 = vsel %vm1508, %v3003, %v3005
      %v3012 = vsel %vm1909, %v2999, 0
      %3014 = vmatprep.subr.mxu0 %v3007
      %3015 = vmatpush1.msra.mxu0 %v3006
      %3016 = vmatprep.subr.mxu0 0.0
      %3017 = vmatpush1.msra.mxu0 0.0
      %3018 = vmatprep.subr.mxu0 0.0
      %3019 = vmatpush1.msra.mxu0 0.0
      %3020 = vmatprep.subr.mxu0 0.0
      %3021 = vmatpush1.msra.mxu0 0.0
      %3022 = vmatprep.subr.mxu0 0.0
      %3023 = vmatpush1.msra.mxu0 0.0
      %3024 = vmatprep.subr.mxu0 0.0
      %3025 = vmatpush1.msra.mxu0 0.0
      %3026 = vmatprep.subr.mxu0 0.0
      %3027 = vmatpush1.msra.mxu0 0.0
      %3028 = vmatprep.subr.mxu0 0.0
      %3029 = vmatpush1.msra.mxu0 0.0
      %3030 = vmatprep.subr.mxu0 0.0
      %3031 = vmatpush1.msra.mxu0 0.0
      %3032 = vmatprep.subr.mxu0 0.0
      %3033 = vmatpush1.msra.mxu0 0.0
      %3034 = vmatprep.subr.mxu0 0.0
      %3035 = vmatpush1.msra.mxu0 0.0
      %3036 = vmatprep.subr.mxu0 0.0
      %3037 = vmatpush1.msra.mxu0 0.0
      %3038 = vmatprep.subr.mxu0 0.0
      %3039 = vmatpush1.msra.mxu0 0.0
      %3040 = vmatprep.subr.mxu0 0.0
      %3041 = vmatpush1.msra.mxu0 0.0
      %3042 = vmatprep.subr.mxu0 0.0
      %3043 = vmatpush1.msra.mxu0 0.0
      %3044 = vmatprep.subr.mxu0 0.0
      %3045 = vmatpush1.msra.mxu0 0.0
      %3046 = vmatprep.subr.mxu0 0.0
      %3047 = vmatpush1.msra.mxu0 0.0
      %3048 = vmatprep.subr.mxu0 0.0
      %3049 = vmatpush1.msra.mxu0 0.0
      %3050 = vmatprep.subr.mxu0 0.0
      %3051 = vmatpush1.msra.mxu0 0.0
      %3052 = vmatprep.subr.mxu0 0.0
      %3053 = vmatpush1.msra.mxu0 0.0
      %3054 = vmatprep.subr.mxu0 0.0
      %3055 = vmatpush1.msra.mxu0 0.0
      %3056 = vmatprep.subr.mxu0 0.0
      %3057 = vmatpush1.msra.mxu0 0.0
      %3058 = vmatprep.subr.mxu0 0.0
      %3059 = vmatpush1.msra.mxu0 0.0
      %3060 = vmatprep.subr.mxu0 0.0
      %3061 = vmatpush1.msra.mxu0 0.0
      %3062 = vmatprep.subr.mxu0 0.0
      %3063 = vmatpush1.msra.mxu0 0.0
      %3064 = vmatprep.subr.mxu0 0.0
      %3065 = vmatpush1.msra.mxu0 0.0
      %3066 = vmatprep.subr.mxu0 0.0
      %3067 = vmatpush1.msra.mxu0 0.0
      %3068 = vmatprep.subr.mxu0 0.0
      %3069 = vmatpush1.msra.mxu0 0.0
      %3070 = vmatprep.subr.mxu0 0.0
      %3071 = vmatpush1.msra.mxu0 0.0
      %3072 = vmatprep.subr.mxu0 0.0
      %3073 = vmatpush1.msra.mxu0 0.0
      %3074 = vmatprep.subr.mxu0 0.0
      %3075 = vmatpush1.msra.mxu0 0.0
      %3076 = vmatprep.subr.mxu0 0.0
      %3077 = vmatpush1.msra.mxu0 0.0
      %3078 = vmatprep.mubr.f32.mxu0 0.0
      %3079 = vmatmul.mubr.f32.gmra.mrb[0].mxu0 %v3012
      %v3080 = vpop.f32.mrb[0].mxu0
      %v3081 = vadd.f32 0.0, %v3080
      %v3082 = vpop.f32.mrb[0].mxu0
      %v3083 = vadd.f32 0.0, %v3082
      %3084 = vdwg.mxu0
      %3085 = vmatprep.subr.mxu0 0.0
      %3086 = vmatpush1.msra.mxu0 %v3005
      %3087 = vmatprep.subr.mxu0 0.0
      %3088 = vmatpush1.msra.mxu0 0.0
      %3089 = vmatprep.subr.mxu0 0.0
      %3090 = vmatpush1.msra.mxu0 0.0
      %3091 = vmatprep.subr.mxu0 0.0
      %3092 = vmatpush1.msra.mxu0 0.0
      %3093 = vmatprep.subr.mxu0 0.0
      %3094 = vmatpush1.msra.mxu0 0.0
      %3095 = vmatprep.subr.mxu0 0.0
      %3096 = vmatpush1.msra.mxu0 0.0
      %3097 = vmatprep.subr.mxu0 0.0
      %3098 = vmatpush1.msra.mxu0 0.0
      %3099 = vmatprep.subr.mxu0 0.0
      %3100 = vmatpush1.msra.mxu0 0.0
      %3101 = vmatprep.subr.mxu0 0.0
      %3102 = vmatpush1.msra.mxu0 0.0
      %3103 = vmatprep.subr.mxu0 0.0
      %3104 = vmatpush1.msra.mxu0 0.0
      %3105 = vmatprep.subr.mxu0 0.0
      %3106 = vmatpush1.msra.mxu0 0.0
      %3107 = vmatprep.subr.mxu0 0.0
      %3108 = vmatpush1.msra.mxu0 0.0
      %3109 = vmatprep.subr.mxu0 0.0
      %3110 = vmatpush1.msra.mxu0 0.0
      %3111 = vmatprep.subr.mxu0 0.0
      %3112 = vmatpush1.msra.mxu0 0.0
      %3113 = vmatprep.subr.mxu0 0.0
      %3114 = vmatpush1.msra.mxu0 0.0
      %3115 = vmatprep.subr.mxu0 0.0
      %3116 = vmatpush1.msra.mxu0 0.0
      %3117 = vmatprep.subr.mxu0 0.0
      %3118 = vmatpush1.msra.mxu0 0.0
      %3119 = vmatprep.subr.mxu0 0.0
      %3120 = vmatpush1.msra.mxu0 0.0
      %3121 = vmatprep.subr.mxu0 0.0
      %3122 = vmatpush1.msra.mxu0 0.0
      %3123 = vmatprep.subr.mxu0 0.0
      %3124 = vmatpush1.msra.mxu0 0.0
      %3125 = vmatprep.subr.mxu0 0.0
      %3126 = vmatpush1.msra.mxu0 0.0
      %3127 = vmatprep.subr.mxu0 0.0
      %3128 = vmatpush1.msra.mxu0 0.0
      %3129 = vmatprep.subr.mxu0 0.0
      %3130 = vmatpush1.msra.mxu0 0.0
      %3131 = vmatprep.subr.mxu0 0.0
      %3132 = vmatpush1.msra.mxu0 0.0
      %3133 = vmatprep.subr.mxu0 0.0
      %3134 = vmatpush1.msra.mxu0 0.0
      %3135 = vmatprep.subr.mxu0 0.0
      %3136 = vmatpush1.msra.mxu0 0.0
      %3137 = vmatprep.subr.mxu0 0.0
      %3138 = vmatpush1.msra.mxu0 0.0
      %3139 = vmatprep.subr.mxu0 0.0
      %3140 = vmatpush1.msra.mxu0 0.0
      %3141 = vmatprep.subr.mxu0 0.0
      %3142 = vmatpush1.msra.mxu0 0.0
      %3143 = vmatprep.subr.mxu0 0.0
      %3144 = vmatpush1.msra.mxu0 0.0
      %3145 = vmatprep.subr.mxu0 0.0
      %3146 = vmatpush1.msra.mxu0 0.0
      %3147 = vmatprep.subr.mxu0 0.0
      %3148 = vmatpush1.msra.mxu0 0.0
      %3149 = vmatprep.mubr.f32.mxu0 0.0
      %3150 = vmatmul.mubr.f32.gmra.mrb[0].mxu0 %v3012
      %v3151 = vpop.f32.mrb[0].mxu0
      %v3152 = vadd.f32 0.0, %v3151
      %v3153 = vpop.f32.mrb[0].mxu0
      %3154 = vdwg.mxu0
      %v3155 = vadd.f32 %v2995, %v3081
      %v3156 = vadd.f32 %v2996, %v3083
      %v3157 = vadd.f32 %v2997, %v3152
      %s3158 = scalar_lea.vmem %s3, 64
      %v3159 = vld [vmem:[%s3158] sm:$0xff]
      %3160 = vrot.lane.b32.xlu0 %v1890, 90
      %v3161 = vpop.permute.xlu0 %3160
      %3162 = vrot.lane.b32.xlu0 %v1891, 90
      %v3163 = vpop.permute.xlu0 %3162
      %3164 = vrot.lane.b32.xlu0 %v1892, 90
      %v3165 = vpop.permute.xlu0 %3164
      %v3166 = vsel %vm1677, %v3161, %v3163
      %v3167 = vsel %vm1677, %v3163, %v3165
      %v3172 = vsel %vm1909, %v3159, 0
      %3174 = vmatprep.subr.mxu0 %v3167
      %3175 = vmatpush1.msra.mxu0 %v3166
      %3176 = vmatprep.subr.mxu0 0.0
      %3177 = vmatpush1.msra.mxu0 0.0
      %3178 = vmatprep.subr.mxu0 0.0
      %3179 = vmatpush1.msra.mxu0 0.0
      %3180 = vmatprep.subr.mxu0 0.0
      %3181 = vmatpush1.msra.mxu0 0.0
      %3182 = vmatprep.subr.mxu0 0.0
      %3183 = vmatpush1.msra.mxu0 0.0
      %3184 = vmatprep.subr.mxu0 0.0
      %3185 = vmatpush1.msra.mxu0 0.0
      %3186 = vmatprep.subr.mxu0 0.0
      %3187 = vmatpush1.msra.mxu0 0.0
      %3188 = vmatprep.subr.mxu0 0.0
      %3189 = vmatpush1.msra.mxu0 0.0
      %3190 = vmatprep.subr.mxu0 0.0
      %3191 = vmatpush1.msra.mxu0 0.0
      %3192 = vmatprep.subr.mxu0 0.0
      %3193 = vmatpush1.msra.mxu0 0.0
      %3194 = vmatprep.subr.mxu0 0.0
      %3195 = vmatpush1.msra.mxu0 0.0
      %3196 = vmatprep.subr.mxu0 0.0
      %3197 = vmatpush1.msra.mxu0 0.0
      %3198 = vmatprep.subr.mxu0 0.0
      %3199 = vmatpush1.msra.mxu0 0.0
      %3200 = vmatprep.subr.mxu0 0.0
      %3201 = vmatpush1.msra.mxu0 0.0
      %3202 = vmatprep.subr.mxu0 0.0
      %3203 = vmatpush1.msra.mxu0 0.0
      %3204 = vmatprep.subr.mxu0 0.0
      %3205 = vmatpush1.msra.mxu0 0.0
      %3206 = vmatprep.subr.mxu0 0.0
      %3207 = vmatpush1.msra.mxu0 0.0
      %3208 = vmatprep.subr.mxu0 0.0
      %3209 = vmatpush1.msra.mxu0 0.0
      %3210 = vmatprep.subr.mxu0 0.0
      %3211 = vmatpush1.msra.mxu0 0.0
      %3212 = vmatprep.subr.mxu0 0.0
      %3213 = vmatpush1.msra.mxu0 0.0
      %3214 = vmatprep.subr.mxu0 0.0
      %3215 = vmatpush1.msra.mxu0 0.0
      %3216 = vmatprep.subr.mxu0 0.0
      %3217 = vmatpush1.msra.mxu0 0.0
      %3218 = vmatprep.subr.mxu0 0.0
      %3219 = vmatpush1.msra.mxu0 0.0
      %3220 = vmatprep.subr.mxu0 0.0
      %3221 = vmatpush1.msra.mxu0 0.0
      %3222 = vmatprep.subr.mxu0 0.0
      %3223 = vmatpush1.msra.mxu0 0.0
      %3224 = vmatprep.subr.mxu0 0.0
      %3225 = vmatpush1.msra.mxu0 0.0
      %3226 = vmatprep.subr.mxu0 0.0
      %3227 = vmatpush1.msra.mxu0 0.0
      %3228 = vmatprep.subr.mxu0 0.0
      %3229 = vmatpush1.msra.mxu0 0.0
      %3230 = vmatprep.subr.mxu0 0.0
      %3231 = vmatpush1.msra.mxu0 0.0
      %3232 = vmatprep.subr.mxu0 0.0
      %3233 = vmatpush1.msra.mxu0 0.0
      %3234 = vmatprep.subr.mxu0 0.0
      %3235 = vmatpush1.msra.mxu0 0.0
      %3236 = vmatprep.subr.mxu0 0.0
      %3237 = vmatpush1.msra.mxu0 0.0
      %3238 = vmatprep.mubr.f32.mxu0 0.0
      %3239 = vmatmul.mubr.f32.gmra.mrb[0].mxu0 %v3172
      %v3240 = vpop.f32.mrb[0].mxu0
      %v3241 = vadd.f32 0.0, %v3240
      %v3242 = vpop.f32.mrb[0].mxu0
      %v3243 = vadd.f32 0.0, %v3242
      %3244 = vdwg.mxu0
      %3245 = vmatprep.subr.mxu0 0.0
      %3246 = vmatpush1.msra.mxu0 %v3165
      %3247 = vmatprep.subr.mxu0 0.0
      %3248 = vmatpush1.msra.mxu0 0.0
      %3249 = vmatprep.subr.mxu0 0.0
      %3250 = vmatpush1.msra.mxu0 0.0
      %3251 = vmatprep.subr.mxu0 0.0
      %3252 = vmatpush1.msra.mxu0 0.0
      %3253 = vmatprep.subr.mxu0 0.0
      %3254 = vmatpush1.msra.mxu0 0.0
      %3255 = vmatprep.subr.mxu0 0.0
      %3256 = vmatpush1.msra.mxu0 0.0
      %3257 = vmatprep.subr.mxu0 0.0
      %3258 = vmatpush1.msra.mxu0 0.0
      %3259 = vmatprep.subr.mxu0 0.0
      %3260 = vmatpush1.msra.mxu0 0.0
      %3261 = vmatprep.subr.mxu0 0.0
      %3262 = vmatpush1.msra.mxu0 0.0
      %3263 = vmatprep.subr.mxu0 0.0
      %3264 = vmatpush1.msra.mxu0 0.0
      %3265 = vmatprep.subr.mxu0 0.0
      %3266 = vmatpush1.msra.mxu0 0.0
      %3267 = vmatprep.subr.mxu0 0.0
      %3268 = vmatpush1.msra.mxu0 0.0
      %3269 = vmatprep.subr.mxu0 0.0
      %3270 = vmatpush1.msra.mxu0 0.0
      %3271 = vmatprep.subr.mxu0 0.0
      %3272 = vmatpush1.msra.mxu0 0.0
      %3273 = vmatprep.subr.mxu0 0.0
      %3274 = vmatpush1.msra.mxu0 0.0
      %3275 = vmatprep.subr.mxu0 0.0
      %3276 = vmatpush1.msra.mxu0 0.0
      %3277 = vmatprep.subr.mxu0 0.0
      %3278 = vmatpush1.msra.mxu0 0.0
      %3279 = vmatprep.subr.mxu0 0.0
      %3280 = vmatpush1.msra.mxu0 0.0
      %3281 = vmatprep.subr.mxu0 0.0
      %3282 = vmatpush1.msra.mxu0 0.0
      %3283 = vmatprep.subr.mxu0 0.0
      %3284 = vmatpush1.msra.mxu0 0.0
      %3285 = vmatprep.subr.mxu0 0.0
      %3286 = vmatpush1.msra.mxu0 0.0
      %3287 = vmatprep.subr.mxu0 0.0
      %3288 = vmatpush1.msra.mxu0 0.0
      %3289 = vmatprep.subr.mxu0 0.0
      %3290 = vmatpush1.msra.mxu0 0.0
      %3291 = vmatprep.subr.mxu0 0.0
      %3292 = vmatpush1.msra.mxu0 0.0
      %3293 = vmatprep.subr.mxu0 0.0
      %3294 = vmatpush1.msra.mxu0 0.0
      %3295 = vmatprep.subr.mxu0 0.0
      %3296 = vmatpush1.msra.mxu0 0.0
      %3297 = vmatprep.subr.mxu0 0.0
      %3298 = vmatpush1.msra.mxu0 0.0
      %3299 = vmatprep.subr.mxu0 0.0
      %3300 = vmatpush1.msra.mxu0 0.0
      %3301 = vmatprep.subr.mxu0 0.0
      %3302 = vmatpush1.msra.mxu0 0.0
      %3303 = vmatprep.subr.mxu0 0.0
      %3304 = vmatpush1.msra.mxu0 0.0
      %3305 = vmatprep.subr.mxu0 0.0
      %3306 = vmatpush1.msra.mxu0 0.0
      %3307 = vmatprep.subr.mxu0 0.0
      %3308 = vmatpush1.msra.mxu0 0.0
      %3309 = vmatprep.mubr.f32.mxu0 0.0
      %3310 = vmatmul.mubr.f32.gmra.mrb[0].mxu0 %v3172
      %v3311 = vpop.f32.mrb[0].mxu0
      %v3312 = vadd.f32 0.0, %v3311
      %v3313 = vpop.f32.mrb[0].mxu0
      %3314 = vdwg.mxu0
      %v3315 = vadd.f32 %v3155, %v3241
      %v3316 = vadd.f32 %v3156, %v3243
      %v3317 = vadd.f32 %v3157, %v3312
      %v3318 = vld [vmem:[%s8] sm:$0xff]
      %v3319 = vld [vmem:[%s8 + $0x8] sm:$0xff]
      %v3320 = vld [vmem:[%s8 + $0x10] sm:$0xff]
      %v3321 = vld [vmem:[%s8 + $0x18] sm:$0xff]
      %v3322 = vld [vmem:[%s8 + $0x20] sm:$0xff]
      %v3323 = vld [vmem:[%s8 + $0x28] sm:$0xff]
      %v3324 = vld [vmem:[%s8 + $0x30] sm:$0xff]
      %v3325 = vld [vmem:[%s8 + $0x38] sm:$0xff]
      %v3326 = vld [vmem:[%s8 + $0x40] sm:$0xff]
      %v3327 = vld [vmem:[%s8 + $0x48] sm:$0xff]
      %v3328 = vld [vmem:[%s8 + $0x50] sm:$0xff]
      %v3329 = vld [vmem:[%s8 + $0x58] sm:$0xff]
      %v3330 = vld [vmem:[%s8 + $0x60] sm:$0xff]
      %v3331 = vld [vmem:[%s8 + $0x68] sm:$0xff]
      %v3332 = vld [vmem:[%s8 + $0x70] sm:$0xff]
      %v3333 = vld [vmem:[%s8 + $0x78] sm:$0xff]
      %v3334 = vld [vmem:[%s8 + $0x80] sm:$0xff]
      %v3335 = vld [vmem:[%s8 + $0x88] sm:$0xff]
      %v3336 = vld [vmem:[%s8 + $0x90] sm:$0xff]
      %v3337 = vld [vmem:[%s8 + $0x98] sm:$0xff]
      %v3338 = vld [vmem:[%s8 + $0xa0] sm:$0xff]
      %v3339 = vld [vmem:[%s8 + $0xa8] sm:$0xff]
      %v3340 = vld [vmem:[%s8 + $0xb0] sm:$0xff]
      %v3341 = vld [vmem:[%s8 + $0xb8] sm:$0xff]
      %v3342 = vld [vmem:[%s8 + $0xc0] sm:$0xff]
      %v3343 = vld [vmem:[%s8 + $0xc8] sm:$0xff]
      %v3344 = vld [vmem:[%s8 + $0xd0] sm:$0xff]
      %v3345 = vld [vmem:[%s8 + $0xd8] sm:$0xff]
      %v3346 = vld [vmem:[%s8 + $0xe0] sm:$0xff]
      %v3347 = vld [vmem:[%s8 + $0xe8] sm:$0xff]
      %v3348 = vld [vmem:[%s8 + $0xf0] sm:$0xff]
      %v3349 = vld [vmem:[%s8 + $0xf8] sm:$0xff]
      %v3350 = vld [vmem:[%s8 + $0x100] sm:$0xff]
      %v3351 = vld [vmem:[%s8 + $0x108] sm:$0xff]
      %v3352 = vld [vmem:[%s8 + $0x110] sm:$0xff]
      %v3353 = vld [vmem:[%s8 + $0x118] sm:$0x3f]
      %v3354 = vld [vmem:[%s4] sm:$0xff]
      %3356 = vset.pattern.permute.xlu0 0
      %3357 = vperm.xlu0 %3356, %v3354
      %v3358 = vpop.permute.xlu0 %3357
      %vm3360 = vcmask 244736
      %v3362 = vsel %vm3360, %v3317, 0
      %vm3364 = vcmask 1045504
      %v3366 = vsel %vm3364, %v3353, 0
      %3368 = vmatprep.subr.mxu0 0.0
      %3369 = vmatpush1.msra.mxu0 %v3318
      %3370 = vmatprep.subr.mxu0 0.0
      %3371 = vmatpush1.msra.mxu0 %v3319
      %3372 = vmatprep.subr.mxu0 0.0
      %3373 = vmatpush1.msra.mxu0 %v3320
      %3374 = vmatprep.subr.mxu0 0.0
      %3375 = vmatpush1.msra.mxu0 %v3321
      %3376 = vmatprep.subr.mxu0 0.0
      %3377 = vmatpush1.msra.mxu0 %v3322
      %3378 = vmatprep.subr.mxu0 0.0
      %3379 = vmatpush1.msra.mxu0 %v3323
      %3380 = vmatprep.subr.mxu0 0.0
      %3381 = vmatpush1.msra.mxu0 %v3324
      %3382 = vmatprep.subr.mxu0 0.0
      %3383 = vmatpush1.msra.mxu0 %v3325
      %3384 = vmatprep.subr.mxu0 0.0
      %3385 = vmatpush1.msra.mxu0 %v3326
      %3386 = vmatprep.subr.mxu0 0.0
      %3387 = vmatpush1.msra.mxu0 %v3327
      %3388 = vmatprep.subr.mxu0 0.0
      %3389 = vmatpush1.msra.mxu0 %v3328
      %3390 = vmatprep.subr.mxu0 0.0
      %3391 = vmatpush1.msra.mxu0 %v3329
      %3392 = vmatprep.subr.mxu0 0.0
      %3393 = vmatpush1.msra.mxu0 %v3330
      %3394 = vmatprep.subr.mxu0 0.0
      %3395 = vmatpush1.msra.mxu0 %v3331
      %3396 = vmatprep.subr.mxu0 0.0
      %3397 = vmatpush1.msra.mxu0 %v3332
      %3398 = vmatprep.subr.mxu0 0.0
      %3399 = vmatpush1.msra.mxu0 %v3333
      %3400 = vmatprep.subr.mxu0 0.0
      %3401 = vmatpush1.msra.mxu0 %v3334
      %3402 = vmatprep.subr.mxu0 0.0
      %3403 = vmatpush1.msra.mxu0 %v3335
      %3404 = vmatprep.subr.mxu0 0.0
      %3405 = vmatpush1.msra.mxu0 %v3336
      %3406 = vmatprep.subr.mxu0 0.0
      %3407 = vmatpush1.msra.mxu0 %v3337
      %3408 = vmatprep.subr.mxu0 0.0
      %3409 = vmatpush1.msra.mxu0 %v3338
      %3410 = vmatprep.subr.mxu0 0.0
      %3411 = vmatpush1.msra.mxu0 %v3339
      %3412 = vmatprep.subr.mxu0 0.0
      %3413 = vmatpush1.msra.mxu0 %v3340
      %3414 = vmatprep.subr.mxu0 0.0
      %3415 = vmatpush1.msra.mxu0 %v3341
      %3416 = vmatprep.subr.mxu0 0.0
      %3417 = vmatpush1.msra.mxu0 %v3342
      %3418 = vmatprep.subr.mxu0 0.0
      %3419 = vmatpush1.msra.mxu0 %v3343
      %3420 = vmatprep.subr.mxu0 0.0
      %3421 = vmatpush1.msra.mxu0 %v3344
      %3422 = vmatprep.subr.mxu0 0.0
      %3423 = vmatpush1.msra.mxu0 %v3345
      %3424 = vmatprep.subr.mxu0 0.0
      %3425 = vmatpush1.msra.mxu0 %v3346
      %3426 = vmatprep.subr.mxu0 0.0
      %3427 = vmatpush1.msra.mxu0 %v3347
      %3428 = vmatprep.subr.mxu0 0.0
      %3429 = vmatpush1.msra.mxu0 %v3348
      %3430 = vmatprep.subr.mxu0 0.0
      %3431 = vmatpush1.msra.mxu0 %v3349
      %3432 = vmatprep.mubr.f32.mxu0 %v3316
      %3433 = vmatmul.mubr.f32.gmra.mrb[0].mxu0 %v3315
      %v3434 = vpop.f32.mrb[0].mxu0
      %v3435 = vadd.f32 %v3358, %v3434
      %v3436 = vpop.f32.mrb[0].mxu0
      %3437 = vdwg.mxu0
      %3438 = vmatprep.subr.mxu0 0.0
      %3439 = vmatpush1.msra.mxu0 %v3350
      %3440 = vmatprep.subr.mxu0 0.0
      %3441 = vmatpush1.msra.mxu0 %v3351
      %3442 = vmatprep.subr.mxu0 0.0
      %3443 = vmatpush1.msra.mxu0 %v3352
      %3444 = vmatprep.subr.mxu0 0.0
      %3445 = vmatpush1.msra.mxu0 %v3366
      %3446 = vmatprep.subr.mxu0 0.0
      %3447 = vmatpush1.msra.mxu0 0.0
      %3448 = vmatprep.subr.mxu0 0.0
      %3449 = vmatpush1.msra.mxu0 0.0
      %3450 = vmatprep.subr.mxu0 0.0
      %3451 = vmatpush1.msra.mxu0 0.0
      %3452 = vmatprep.subr.mxu0 0.0
      %3453 = vmatpush1.msra.mxu0 0.0
      %3454 = vmatprep.subr.mxu0 0.0
      %3455 = vmatpush1.msra.mxu0 0.0
      %3456 = vmatprep.subr.mxu0 0.0
      %3457 = vmatpush1.msra.mxu0 0.0
      %3458 = vmatprep.subr.mxu0 0.0
      %3459 = vmatpush1.msra.mxu0 0.0
      %3460 = vmatprep.subr.mxu0 0.0
      %3461 = vmatpush1.msra.mxu0 0.0
      %3462 = vmatprep.subr.mxu0 0.0
      %3463 = vmatpush1.msra.mxu0 0.0
      %3464 = vmatprep.subr.mxu0 0.0
      %3465 = vmatpush1.msra.mxu0 0.0
      %3466 = vmatprep.subr.mxu0 0.0
      %3467 = vmatpush1.msra.mxu0 0.0
      %3468 = vmatprep.subr.mxu0 0.0
      %3469 = vmatpush1.msra.mxu0 0.0
      %3470 = vmatprep.subr.mxu0 0.0
      %3471 = vmatpush1.msra.mxu0 0.0
      %3472 = vmatprep.subr.mxu0 0.0
      %3473 = vmatpush1.msra.mxu0 0.0
      %3474 = vmatprep.subr.mxu0 0.0
      %3475 = vmatpush1.msra.mxu0 0.0
      %3476 = vmatprep.subr.mxu0 0.0
      %3477 = vmatpush1.msra.mxu0 0.0
      %3478 = vmatprep.subr.mxu0 0.0
      %3479 = vmatpush1.msra.mxu0 0.0
      %3480 = vmatprep.subr.mxu0 0.0
      %3481 = vmatpush1.msra.mxu0 0.0
      %3482 = vmatprep.subr.mxu0 0.0
      %3483 = vmatpush1.msra.mxu0 0.0
      %3484 = vmatprep.subr.mxu0 0.0
      %3485 = vmatpush1.msra.mxu0 0.0
      %3486 = vmatprep.subr.mxu0 0.0
      %3487 = vmatpush1.msra.mxu0 0.0
      %3488 = vmatprep.subr.mxu0 0.0
      %3489 = vmatpush1.msra.mxu0 0.0
      %3490 = vmatprep.subr.mxu0 0.0
      %3491 = vmatpush1.msra.mxu0 0.0
      %3492 = vmatprep.subr.mxu0 0.0
      %3493 = vmatpush1.msra.mxu0 0.0
      %3494 = vmatprep.subr.mxu0 0.0
      %3495 = vmatpush1.msra.mxu0 0.0
      %3496 = vmatprep.subr.mxu0 0.0
      %3497 = vmatpush1.msra.mxu0 0.0
      %3498 = vmatprep.subr.mxu0 0.0
      %3499 = vmatpush1.msra.mxu0 0.0
      %3500 = vmatprep.subr.mxu0 0.0
      %3501 = vmatpush1.msra.mxu0 0.0
      %3502 = vmatprep.mubr.f32.mxu0 0.0
      %3503 = vmatmul.mubr.f32.gmra.mrb[0].mxu0 %v3362
      %v3504 = vpop.f32.mrb[0].mxu0
      %v3505 = vadd.f32 %v3435, %v3504
      %v3506 = vpop.f32.mrb[0].mxu0
      %3507 = vdwg.mxu0
      %v3508 = vld [vmem:[%s326] sm:$0xff]
      %v3509 = vld [vmem:[%s326 + $0x8] sm:$0xf]
      %v3512 = vcombine.high %v3508, %v3508
      %3513 = vrot.lane.b32.xlu0 %v3508, 109
      %v3514 = vpop.permute.xlu0 %3513
      %3515 = vrot.lane.b32.xlu0 %v3512, 109
      %v3516 = vpop.permute.xlu0 %3515
      %3517 = vrot.lane.b32.xlu0 %v3509, 109
      %v3518 = vpop.permute.xlu0 %3517
      %v3519 = vsel %vm1001, %v3514, %v3516
      %v3520 = vsel %vm1001, %v3516, %v3518
      %v3523 = vsel %vm3360, %v3518, 0
      %3525 = vmatprep.subr.mxu0 0.0
      %3526 = vmatpush1.msra.mxu0 %v3318
      %3527 = vmatprep.subr.mxu0 0.0
      %3528 = vmatpush1.msra.mxu0 %v3319
      %3529 = vmatprep.subr.mxu0 0.0
      %3530 = vmatpush1.msra.mxu0 %v3320
      %3531 = vmatprep.subr.mxu0 0.0
      %3532 = vmatpush1.msra.mxu0 %v3321
      %3533 = vmatprep.subr.mxu0 0.0
      %3534 = vmatpush1.msra.mxu0 %v3322
      %3535 = vmatprep.subr.mxu0 0.0
      %3536 = vmatpush1.msra.mxu0 %v3323
      %3537 = vmatprep.subr.mxu0 0.0
      %3538 = vmatpush1.msra.mxu0 %v3324
      %3539 = vmatprep.subr.mxu0 0.0
      %3540 = vmatpush1.msra.mxu0 %v3325
      %3541 = vmatprep.subr.mxu0 0.0
      %3542 = vmatpush1.msra.mxu0 %v3326
      %3543 = vmatprep.subr.mxu0 0.0
      %3544 = vmatpush1.msra.mxu0 %v3327
      %3545 = vmatprep.subr.mxu0 0.0
      %3546 = vmatpush1.msra.mxu0 %v3328
      %3547 = vmatprep.subr.mxu0 0.0
      %3548 = vmatpush1.msra.mxu0 %v3329
      %3549 = vmatprep.subr.mxu0 0.0
      %3550 = vmatpush1.msra.mxu0 %v3330
      %3551 = vmatprep.subr.mxu0 0.0
      %3552 = vmatpush1.msra.mxu0 %v3331
      %3553 = vmatprep.subr.mxu0 0.0
      %3554 = vmatpush1.msra.mxu0 %v3332
      %3555 = vmatprep.subr.mxu0 0.0
      %3556 = vmatpush1.msra.mxu0 %v3333
      %3557 = vmatprep.subr.mxu0 0.0
      %3558 = vmatpush1.msra.mxu0 %v3334
      %3559 = vmatprep.subr.mxu0 0.0
      %3560 = vmatpush1.msra.mxu0 %v3335
      %3561 = vmatprep.subr.mxu0 0.0
      %3562 = vmatpush1.msra.mxu0 %v3336
      %3563 = vmatprep.subr.mxu0 0.0
      %3564 = vmatpush1.msra.mxu0 %v3337
      %3565 = vmatprep.subr.mxu0 0.0
      %3566 = vmatpush1.msra.mxu0 %v3338
      %3567 = vmatprep.subr.mxu0 0.0
      %3568 = vmatpush1.msra.mxu0 %v3339
      %3569 = vmatprep.subr.mxu0 0.0
      %3570 = vmatpush1.msra.mxu0 %v3340
      %3571 = vmatprep.subr.mxu0 0.0
      %3572 = vmatpush1.msra.mxu0 %v3341
      %3573 = vmatprep.subr.mxu0 0.0
      %3574 = vmatpush1.msra.mxu0 %v3342
      %3575 = vmatprep.subr.mxu0 0.0
      %3576 = vmatpush1.msra.mxu0 %v3343
      %3577 = vmatprep.subr.mxu0 0.0
      %3578 = vmatpush1.msra.mxu0 %v3344
      %3579 = vmatprep.subr.mxu0 0.0
      %3580 = vmatpush1.msra.mxu0 %v3345
      %3581 = vmatprep.subr.mxu0 0.0
      %3582 = vmatpush1.msra.mxu0 %v3346
      %3583 = vmatprep.subr.mxu0 0.0
      %3584 = vmatpush1.msra.mxu0 %v3347
      %3585 = vmatprep.subr.mxu0 0.0
      %3586 = vmatpush1.msra.mxu0 %v3348
      %3587 = vmatprep.subr.mxu0 0.0
      %3588 = vmatpush1.msra.mxu0 %v3349
      %3589 = vmatprep.mubr.f32.mxu0 %v3520
      %3590 = vmatmul.mubr.f32.gmra.mrb[0].mxu0 %v3519
      %v3591 = vpop.f32.mrb[0].mxu0
      %v3592 = vadd.f32 0.0, %v3591
      %v3593 = vpop.f32.mrb[0].mxu0
      %3594 = vdwg.mxu0
      %3595 = vmatprep.subr.mxu0 0.0
      %3596 = vmatpush1.msra.mxu0 %v3350
      %3597 = vmatprep.subr.mxu0 0.0
      %3598 = vmatpush1.msra.mxu0 %v3351
      %3599 = vmatprep.subr.mxu0 0.0
      %3600 = vmatpush1.msra.mxu0 %v3352
      %3601 = vmatprep.subr.mxu0 0.0
      %3602 = vmatpush1.msra.mxu0 %v3366
      %3603 = vmatprep.subr.mxu0 0.0
      %3604 = vmatpush1.msra.mxu0 0.0
      %3605 = vmatprep.subr.mxu0 0.0
      %3606 = vmatpush1.msra.mxu0 0.0
      %3607 = vmatprep.subr.mxu0 0.0
      %3608 = vmatpush1.msra.mxu0 0.0
      %3609 = vmatprep.subr.mxu0 0.0
      %3610 = vmatpush1.msra.mxu0 0.0
      %3611 = vmatprep.subr.mxu0 0.0
      %3612 = vmatpush1.msra.mxu0 0.0
      %3613 = vmatprep.subr.mxu0 0.0
      %3614 = vmatpush1.msra.mxu0 0.0
      %3615 = vmatprep.subr.mxu0 0.0
      %3616 = vmatpush1.msra.mxu0 0.0
      %3617 = vmatprep.subr.mxu0 0.0
      %3618 = vmatpush1.msra.mxu0 0.0
      %3619 = vmatprep.subr.mxu0 0.0
      %3620 = vmatpush1.msra.mxu0 0.0
      %3621 = vmatprep.subr.mxu0 0.0
      %3622 = vmatpush1.msra.mxu0 0.0
      %3623 = vmatprep.subr.mxu0 0.0
      %3624 = vmatpush1.msra.mxu0 0.0
      %3625 = vmatprep.subr.mxu0 0.0
      %3626 = vmatpush1.msra.mxu0 0.0
      %3627 = vmatprep.subr.mxu0 0.0
      %3628 = vmatpush1.msra.mxu0 0.0
      %3629 = vmatprep.subr.mxu0 0.0
      %3630 = vmatpush1.msra.mxu0 0.0
      %3631 = vmatprep.subr.mxu0 0.0
      %3632 = vmatpush1.msra.mxu0 0.0
      %3633 = vmatprep.subr.mxu0 0.0
      %3634 = vmatpush1.msra.mxu0 0.0
      %3635 = vmatprep.subr.mxu0 0.0
      %3636 = vmatpush1.msra.mxu0 0.0
      %3637 = vmatprep.subr.mxu0 0.0
      %3638 = vmatpush1.msra.mxu0 0.0
      %3639 = vmatprep.subr.mxu0 0.0
      %3640 = vmatpush1.msra.mxu0 0.0
      %3641 = vmatprep.subr.mxu0 0.0
      %3642 = vmatpush1.msra.mxu0 0.0
      %3643 = vmatprep.subr.mxu0 0.0
      %3644 = vmatpush1.msra.mxu0 0.0
      %3645 = vmatprep.subr.mxu0 0.0
      %3646 = vmatpush1.msra.mxu0 0.0
      %3647 = vmatprep.subr.mxu0 0.0
      %3648 = vmatpush1.msra.mxu0 0.0
      %3649 = vmatprep.subr.mxu0 0.0
      %3650 = vmatpush1.msra.mxu0 0.0
      %3651 = vmatprep.subr.mxu0 0.0
      %3652 = vmatpush1.msra.mxu0 0.0
      %3653 = vmatprep.subr.mxu0 0.0
      %3654 = vmatpush1.msra.mxu0 0.0
      %3655 = vmatprep.subr.mxu0 0.0
      %3656 = vmatpush1.msra.mxu0 0.0
      %3657 = vmatprep.subr.mxu0 0.0
      %3658 = vmatpush1.msra.mxu0 0.0
      %3659 = vmatprep.mubr.f32.mxu0 0.0
      %3660 = vmatmul.mubr.f32.gmra.mrb[0].mxu0 %v3523
      %v3661 = vpop.f32.mrb[0].mxu0
      %v3662 = vadd.f32 %v3592, %v3661
      %v3663 = vpop.f32.mrb[0].mxu0
      %3664 = vdwg.mxu0
      %v3665 = vld [vmem:[%s5] sm:$0xff]
      %v3666 = vld [vmem:[%s6] sm:$0xff]
      %3668 = vset.pattern.permute.xlu0 0
      %3669 = vperm.xlu0 %3668, %v3666
      %v3670 = vpop.permute.xlu0 %3669
      %v3673 = vsel %vm348, %v3665, 0
      %v3676 = vsel %vm352, %v3662, 0
      %3678 = vmatprep.subr.mxu0 0.0
      %3679 = vmatpush1.msra.mxu0 %v3676
      %3680 = vmatprep.subr.mxu0 0.0
      %3681 = vmatpush1.msra.mxu0 0.0
      %3682 = vmatprep.subr.mxu0 0.0
      %3683 = vmatpush1.msra.mxu0 0.0
      %3684 = vmatprep.subr.mxu0 0.0
      %3685 = vmatpush1.msra.mxu0 0.0
      %3686 = vmatprep.subr.mxu0 0.0
      %3687 = vmatpush1.msra.mxu0 0.0
      %3688 = vmatprep.subr.mxu0 0.0
      %3689 = vmatpush1.msra.mxu0 0.0
      %3690 = vmatprep.subr.mxu0 0.0
      %3691 = vmatpush1.msra.mxu0 0.0
      %3692 = vmatprep.subr.mxu0 0.0
      %3693 = vmatpush1.msra.mxu0 0.0
      %3694 = vmatprep.subr.mxu0 0.0
      %3695 = vmatpush1.msra.mxu0 0.0
      %3696 = vmatprep.subr.mxu0 0.0
      %3697 = vmatpush1.msra.mxu0 0.0
      %3698 = vmatprep.subr.mxu0 0.0
      %3699 = vmatpush1.msra.mxu0 0.0
      %3700 = vmatprep.subr.mxu0 0.0
      %3701 = vmatpush1.msra.mxu0 0.0
      %3702 = vmatprep.subr.mxu0 0.0
      %3703 = vmatpush1.msra.mxu0 0.0
      %3704 = vmatprep.subr.mxu0 0.0
      %3705 = vmatpush1.msra.mxu0 0.0
      %3706 = vmatprep.subr.mxu0 0.0
      %3707 = vmatpush1.msra.mxu0 0.0
      %3708 = vmatprep.subr.mxu0 0.0
      %3709 = vmatpush1.msra.mxu0 0.0
      %3710 = vmatprep.subr.mxu0 0.0
      %3711 = vmatpush1.msra.mxu0 0.0
      %3712 = vmatprep.subr.mxu0 0.0
      %3713 = vmatpush1.msra.mxu0 0.0
      %3714 = vmatprep.subr.mxu0 0.0
      %3715 = vmatpush1.msra.mxu0 0.0
      %3716 = vmatprep.subr.mxu0 0.0
      %3717 = vmatpush1.msra.mxu0 0.0
      %3718 = vmatprep.subr.mxu0 0.0
      %3719 = vmatpush1.msra.mxu0 0.0
      %3720 = vmatprep.subr.mxu0 0.0
      %3721 = vmatpush1.msra.mxu0 0.0
      %3722 = vmatprep.subr.mxu0 0.0
      %3723 = vmatpush1.msra.mxu0 0.0
      %3724 = vmatprep.subr.mxu0 0.0
      %3725 = vmatpush1.msra.mxu0 0.0
      %3726 = vmatprep.subr.mxu0 0.0
      %3727 = vmatpush1.msra.mxu0 0.0
      %3728 = vmatprep.subr.mxu0 0.0
      %3729 = vmatpush1.msra.mxu0 0.0
      %3730 = vmatprep.subr.mxu0 0.0
      %3731 = vmatpush1.msra.mxu0 0.0
      %3732 = vmatprep.subr.mxu0 0.0
      %3733 = vmatpush1.msra.mxu0 0.0
      %3734 = vmatprep.subr.mxu0 0.0
      %3735 = vmatpush1.msra.mxu0 0.0
      %3736 = vmatprep.subr.mxu0 0.0
      %3737 = vmatpush1.msra.mxu0 0.0
      %3738 = vmatprep.subr.mxu0 0.0
      %3739 = vmatpush1.msra.mxu0 0.0
      %3740 = vmatprep.subr.mxu0 0.0
      %3741 = vmatpush1.msra.mxu0 0.0
      %3742 = vmatprep.mubr.f32.mxu0 0.0
      %3743 = vmatmul.mubr.f32.gmra.mrb[0].mxu0 %v3673
      %v3744 = vpop.f32.mrb[0].mxu0
      %v3745 = vadd.f32 %v3670, %v3744
      %v3746 = vpop.f32.mrb[0].mxu0
      %3747 = vdwg.mxu0
      %v3748 = vadd.f32 %v3505, %v3745
      %vm3749 = vcmask 523264
      %3750 = vst.msk [vmem:[%s330] sm:$0xff] %vm3749, %v3748
      %p3751 = scmp.lt.s32.totalorder %s20, 1
      %s3752 = scalar_select %p3751, %s20, 1
      %s3753 = smul.addr %s3752, 8
      %s3754 = scalar_lea.vmem %s9, %s3753
      // Predicated region
      $region57: #{first_resblock_forward.1} parent=55 // pred_check
        %p3755 = pneg %p232
      $region58: #{first_resblock_forward.1} parent=55 // pred_check_branch
        %3757 = sbr.rel (%p3755) target = $region60
      $region59: #{first_resblock_forward.1} parent=55 // pred_region
        _
      $region60: #{first_resblock_forward.1} parent=55 // pred_fallthru
        _
    $region56: #{first_resblock_forward.1} parent=5 // pred_fallthru
      _
    %p3758 = scmp.le.s32.totalorder 2, %s15
    // Predicated region
    $region61: #{first_resblock_forward.1} parent=5 // pred_check
      %p3759 = pneg %p3758
    $region62: #{first_resblock_forward.1} parent=5 // pred_check_branch
      %3761 = sbr.rel (%p3759) target = $region64
    $region63: #{first_resblock_forward.1} parent=5 // pred_region
      %s3762 = ssub.s32 %s15, 2
      // Predicated region
      $region65: #{first_resblock_forward.1} parent=63 // pred_check
        %p3763 = pneg %p238
      $region66: #{first_resblock_forward.1} parent=63 // pred_check_branch
        %3765 = sbr.rel (%p3763) target = $region68
      $region67: #{first_resblock_forward.1} parent=63 // pred_region
        %p3766 = scmp.lt.s32.totalorder %s21, 1
        %s3767 = scalar_select %p3766, %s21, 1
        %s3768 = smul.addr %s3767, 8
        %s3769 = scalar_lea.vmem %s9, %s3768
      $region68: #{first_resblock_forward.1} parent=63 // pred_fallthru
        _
    $region64: #{first_resblock_forward.1} parent=5 // pred_fallthru
      _
  $region6: #{first_resblock_forward.1} parent=0 // loop_footer
    %s19 = sadd.s32 1, %s15
  $region7: #{first_resblock_forward.1} parent=0 // loop_footer_branch
    %14 = sbr.rel target = $region3
  $region8: #{first_resblock_forward.1} parent=0 // loop_exit
    _

</llo_original>
